<compile_context>
chip_gen: v7x
topology: tpu7x:2x2x1
jax: 0.10.0
libtpu: 0.0.40
codegen_flags: <defaults>
</compile_context>

<pallas_src>
import functools

import numpy as np
import jax
import jax.numpy as jnp
from jax.experimental import pallas as pl
from jax.experimental.pallas import tpu as pltpu


def _iwt_fused_kernel(ll_ref, hh_ref, cdup_ref, csgn_ref, rse_ref, rso_ref, out_ref):
    """One (batch, row-tile) step of the fused inverse Haar transform.

    Blocks:
      ll_ref : (1, T, W)     x1 rows (flattened (channel, h) on sublanes, w on lanes)
      hh_ref : (1, 3, T, W)  x2, x3, x4 rows
      cdup   : (CC, 2CC)     column scatter  w -> {2w: +1, 2w+1: +1}
      csgn   : (CC, 2CC)     column scatter  w -> {2w: -1, 2w+1: +1}
      rse    : (2RC, RC)     row scatter     k -> 2k
      rso    : (2RC, RC)     row scatter     k -> 2k+1
      out_ref: (1, 2T, 2W)   output rows/cols fully interleaved (final layout)
    """
    dot = functools.partial(jnp.dot, preferred_element_type=jnp.float32,
                            precision=jax.lax.Precision.HIGHEST)

    x1 = ll_ref[0].astype(jnp.float32)
    x2 = hh_ref[0, 0].astype(jnp.float32)
    x3 = hh_ref[0, 1].astype(jnp.float32)
    x4 = hh_ref[0, 2].astype(jnp.float32)

    # Butterfly with the 1/2 folded once:
    #   even output rows: (x1 - x3)/2 -/+ (x2 - x4)/2    (sign by column parity)
    #   odd  output rows: (x1 + x3)/2 -/+ (x2 + x4)/2
    ue = (x1 - x3) * 0.5
    ve = (x2 - x4) * 0.5
    uo = (x1 + x3) * 0.5
    vo = (x2 + x4) * 0.5

    cdup = cdup_ref[...]
    csgn = csgn_ref[...]
    rse = rse_ref[...]
    rso = rso_ref[...]

    T, W = x1.shape
    CC = cdup.shape[0]
    RC = rse.shape[1]

    for c0 in range(0, W, CC):
        c1 = c0 + CC
        # Column (lane) riffle on the MXU: 2CC output columns already interleaved.
        top = dot(ue[:, c0:c1], cdup) + dot(ve[:, c0:c1], csgn)   # (T, 2CC) even rows
        bot = dot(uo[:, c0:c1], cdup) + dot(vo[:, c0:c1], csgn)   # (T, 2CC) odd rows
        for r0 in range(0, T, RC):
            r1 = r0 + RC
            # Row (sublane) riffle on the MXU; result is the final pixel layout.
            blk = dot(rse, top[r0:r1, :]) + dot(rso, bot[r0:r1, :])   # (2RC, 2CC)
            out_ref[0, 2 * r0:2 * r1, 2 * c0:2 * c1] = blk


def _riffle_matrices(CC, RC):
    """0/+-1 scatter matrices for the column (right) and row (left) riffles."""
    w = np.arange(CC)
    cdup = np.zeros((CC, 2 * CC), np.float32)
    cdup[w, 2 * w] = 1.0
    cdup[w, 2 * w + 1] = 1.0
    csgn = np.zeros((CC, 2 * CC), np.float32)
    csgn[w, 2 * w] = -1.0
    csgn[w, 2 * w + 1] = 1.0
    k = np.arange(RC)
    rse = np.zeros((2 * RC, RC), np.float32)
    rse[2 * k, k] = 1.0
    rso = np.zeros((2 * RC, RC), np.float32)
    rso[2 * k + 1, k] = 1.0
    return (jnp.asarray(cdup), jnp.asarray(csgn), jnp.asarray(rse), jnp.asarray(rso))


def _pick_row_tile(R, W, B, budget_bytes):
    """Largest row tile that fits the VMEM budget while keeping >=8 grid steps."""
    # Valid tiles: divisors of R that are sublane-dense (x8) or R itself.
    divs = [d for d in range(1, R + 1) if R % d == 0 and (d % 8 == 0 or d == R)]
    # Double-buffered per-step footprint ~= 64 * T * W bytes
    # (4 f32 subband blocks in + one (2T, 2W) f32 block out, x2 buffers).
    fit = [d for d in divs if 64 * d * W <= budget_bytes] or [min(divs)]

    def steps(d):
        return B * (R // d)

    # Keep both v7x TensorCores / the pipeline busy before growing the tile.
    pool = ([d for d in fit if steps(d) >= 8]
            or [d for d in fit if steps(d) >= 2]
            or fit)
    return max(pool)


def winv_iwt(LL, HH):
    B, c_ll, H, W = LL.shape
    assert HH.shape[0] == B and HH.shape[2] == H and HH.shape[3] == W
    c_hh = HH.shape[1]
    assert (c_ll + c_hh) % 4 == 0
    c_out = (c_ll + c_hh) // 4

    if c_ll != c_out:
        # TODO(synk): never taken for WinvIWT (LL carries C, HH carries 3C); a
        # zero-copy version would feed per-subband channel offsets via scalar
        # prefetch instead of this XLA concatenate fallback.
        x = jnp.concatenate([LL, HH], axis=1)
        LL, HH = x[:, :c_out], x[:, c_out:]

    R = c_out * H                      # rows per batch: flattened (channel, h)
    ll3 = LL.reshape(B, R, W)          # free reshape of contiguous NCHW
    hh4 = HH.reshape(B, 3, R, W)       # free reshape: subband-major split of 3C

    # Generation-aware VMEM gating (v7x has 64 MiB/TC; v5e/v6e have 128 MiB).
    try:
        vmem_cap = int(pltpu.get_tpu_info().vmem_capacity_bytes)
    except Exception:
        vmem_cap = 64 * 1024 * 1024    # conservative: v7x per-TensorCore VMEM
    tile_budget = min(vmem_cap // 3, 24 * 1024 * 1024)
    vmem_limit = int(min(vmem_cap * 3 // 4, 96 * 1024 * 1024))

    T = _pick_row_tile(R, W, B, tile_budget)
    CC = 128 if W % 128 == 0 else W    # column-riffle chunk: caps MXU MACs/elem
    RC = 128 if T % 128 == 0 else T    # row-riffle chunk
    cdup, csgn, rse, rso = _riffle_matrices(CC, RC)

    grid = (B, R // T)

    out = pl.pallas_call(
        _iwt_fused_kernel,
        out_shape=jax.ShapeDtypeStruct((B, 2 * R, 2 * W), jnp.float32),
        grid=grid,
        in_specs=[
            pl.BlockSpec((1, T, W), lambda b, t: (b, t, 0)),
            pl.BlockSpec((1, 3, T, W), lambda b, t: (b, 0, t, 0)),
            # Constant-index blocks: fetched once, reused every grid step.
            pl.BlockSpec((CC, 2 * CC), lambda b, t: (0, 0)),
            pl.BlockSpec((CC, 2 * CC), lambda b, t: (0, 0)),
            pl.BlockSpec((2 * RC, RC), lambda b, t: (0, 0)),
            pl.BlockSpec((2 * RC, RC), lambda b, t: (0, 0)),
        ],
        out_specs=pl.BlockSpec((1, 2 * T, 2 * W), lambda b, t: (b, t, 0)),
        compiler_params=pltpu.CompilerParams(
            dimension_semantics=("parallel", "parallel"),
            vmem_limit_bytes=vmem_limit,
        ),
    )(ll3, hh4, cdup, csgn, rse, rso)

    # (B, c_out*2H, 2W) -> (B, c_out, 2H, 2W): contiguous reinterpretation, free.
    return out.reshape(B, c_out, 2 * H, 2 * W)


def iwt_reference(LL, HH):
    """Pure-JAX reference matching the PyTorch iwt_init(cat([LL, HH], 1))."""
    x = jnp.concatenate([LL, HH], axis=1).astype(jnp.float32)
    B, C, H, W = x.shape
    c = C // 4
    x1 = x[:, 0:c] / 2.0
    x2 = x[:, c:2 * c] / 2.0
    x3 = x[:, 2 * c:3 * c] / 2.0
    x4 = x[:, 3 * c:4 * c] / 2.0
    h = jnp.zeros((B, c, 2 * H, 2 * W), jnp.float32)
    h = h.at[:, :, 0::2, 0::2].set(x1 - x2 - x3 + x4)
    h = h.at[:, :, 1::2, 0::2].set(x1 - x2 + x3 - x4)
    h = h.at[:, :, 0::2, 1::2].set(x1 + x2 - x3 - x4)
    h = h.at[:, :, 1::2, 1::2].set(x1 + x2 + x3 + x4)
    return h


if __name__ == "__main__":
    # WinvIWT has no learnable parameters (requires_grad = False).
    B, C_out, H, W = 2, 4, 16, 16
    key = jax.random.PRNGKey(0)
    k1, k2 = jax.random.split(key)
    LL = jax.random.normal(k1, (B, C_out, H, W), dtype=jnp.float32)
    HH = jax.random.normal(k2, (B, 3 * C_out, H, W), dtype=jnp.float32)

    out = jax.block_until_ready(winv_iwt(LL, HH))
    ref = jax.block_until_ready(iwt_reference(LL, HH))

    assert out.shape == (B, C_out, 2 * H, 2 * W), out.shape
    assert out.dtype == jnp.float32
    assert jnp.allclose(out, ref, atol=1e-5, rtol=1e-5)

    print("KERNEL_OK")
</pallas_src>

<mosaic_0001>
module attributes {stable_mosaic.version = 11 : i64} {
  func.func @_iwt_fused_kernel(%arg0: i32, %arg1: i32, %arg2: memref<1x16x16xf32, #tpu.memory_space<vmem>>, %arg3: memref<1x3x16x16xf32, #tpu.memory_space<vmem>>, %arg4: memref<16x32xf32, #tpu.memory_space<vmem>>, %arg5: memref<16x32xf32, #tpu.memory_space<vmem>>, %arg6: memref<32x16xf32, #tpu.memory_space<vmem>>, %arg7: memref<32x16xf32, #tpu.memory_space<vmem>>, %arg8: memref<1x32x32xf32, #tpu.memory_space<vmem>>) attributes {dimension_semantics = [#tpu.dimension_semantics<parallel>, #tpu.dimension_semantics<parallel>], iteration_bounds = array<i64: 2, 4>, scalar_prefetch = 0 : i64, scratch_operands = 0 : i64, tpu.core_type = #tpu.core_type<tc>, window_params = [{transform_indices = @transform_0, window_bounds = array<i64: 1, 16, 16>}, {transform_indices = @transform_1, window_bounds = array<i64: 1, 3, 16, 16>}, {pipeline_mode = #tpu.pipeline_mode<synchronous>, transform_indices = @transform_2, window_bounds = array<i64: 16, 32>}, {pipeline_mode = #tpu.pipeline_mode<synchronous>, transform_indices = @transform_3, window_bounds = array<i64: 16, 32>}, {pipeline_mode = #tpu.pipeline_mode<synchronous>, transform_indices = @transform_4, window_bounds = array<i64: 32, 16>}, {pipeline_mode = #tpu.pipeline_mode<synchronous>, transform_indices = @transform_5, window_bounds = array<i64: 32, 16>}, {transform_indices = @transform_6, window_bounds = array<i64: 1, 32, 32>}]} {
    %c0 = arith.constant 0 : index
    %c0_0 = arith.constant 0 : index
    %c0_1 = arith.constant 0 : index
    %0 = vector.load %arg2[%c0, %c0_0, %c0_1] : memref<1x16x16xf32, #tpu.memory_space<vmem>>, vector<1x16x16xf32>
    %1 = vector.shape_cast %0 : vector<1x16x16xf32> to vector<16x16xf32>
    %c0_2 = arith.constant 0 : index
    %c0_3 = arith.constant 0 : index
    %c0_4 = arith.constant 0 : index
    %c0_5 = arith.constant 0 : index
    %2 = vector.load %arg3[%c0_2, %c0_3, %c0_4, %c0_5] : memref<1x3x16x16xf32, #tpu.memory_space<vmem>>, vector<1x1x16x16xf32>
    %3 = vector.shape_cast %2 : vector<1x1x16x16xf32> to vector<16x16xf32>
    %c0_6 = arith.constant 0 : index
    %c1 = arith.constant 1 : index
    %c0_7 = arith.constant 0 : index
    %c0_8 = arith.constant 0 : index
    %4 = vector.load %arg3[%c0_6, %c1, %c0_7, %c0_8] : memref<1x3x16x16xf32, #tpu.memory_space<vmem>>, vector<1x1x16x16xf32>
    %5 = vector.shape_cast %4 : vector<1x1x16x16xf32> to vector<16x16xf32>
    %c0_9 = arith.constant 0 : index
    %c2 = arith.constant 2 : index
    %c0_10 = arith.constant 0 : index
    %c0_11 = arith.constant 0 : index
    %6 = vector.load %arg3[%c0_9, %c2, %c0_10, %c0_11] : memref<1x3x16x16xf32, #tpu.memory_space<vmem>>, vector<1x1x16x16xf32>
    %7 = vector.shape_cast %6 : vector<1x1x16x16xf32> to vector<16x16xf32>
    %8 = arith.subf %1, %5 : vector<16x16xf32>
    %cst = arith.constant 5.000000e-01 : f32
    %9 = vector.broadcast %cst : f32 to vector<16x16xf32>
    %10 = arith.mulf %8, %9 : vector<16x16xf32>
    %11 = arith.subf %3, %7 : vector<16x16xf32>
    %cst_12 = arith.constant 5.000000e-01 : f32
    %12 = vector.broadcast %cst_12 : f32 to vector<16x16xf32>
    %13 = arith.mulf %11, %12 : vector<16x16xf32>
    %14 = arith.addf %1, %5 : vector<16x16xf32>
    %cst_13 = arith.constant 5.000000e-01 : f32
    %15 = vector.broadcast %cst_13 : f32 to vector<16x16xf32>
    %16 = arith.mulf %14, %15 : vector<16x16xf32>
    %17 = arith.addf %3, %7 : vector<16x16xf32>
    %cst_14 = arith.constant 5.000000e-01 : f32
    %18 = vector.broadcast %cst_14 : f32 to vector<16x16xf32>
    %19 = arith.mulf %17, %18 : vector<16x16xf32>
    %c0_15 = arith.constant 0 : index
    %c0_16 = arith.constant 0 : index
    %20 = vector.load %arg4[%c0_15, %c0_16] : memref<16x32xf32, #tpu.memory_space<vmem>>, vector<16x32xf32>
    %c0_17 = arith.constant 0 : index
    %c0_18 = arith.constant 0 : index
    %21 = vector.load %arg5[%c0_17, %c0_18] : memref<16x32xf32, #tpu.memory_space<vmem>>, vector<16x32xf32>
    %c0_19 = arith.constant 0 : index
    %c0_20 = arith.constant 0 : index
    %22 = vector.load %arg6[%c0_19, %c0_20] : memref<32x16xf32, #tpu.memory_space<vmem>>, vector<32x16xf32>
    %c0_21 = arith.constant 0 : index
    %c0_22 = arith.constant 0 : index
    %23 = vector.load %arg7[%c0_21, %c0_22] : memref<32x16xf32, #tpu.memory_space<vmem>>, vector<32x16xf32>
    %cst_23 = arith.constant dense<0.000000e+00> : vector<16x32xf32>
    %24 = tpu.matmul %10, %20, %cst_23 {dimension_numbers = #tpu.dot_dimension_numbers<[1], [0], [0], [1], [0, 0, 1, 1], [], []>, precision = #tpu.contract_precision<fp32>} : vector<16x16xf32>, vector<16x32xf32>, vector<16x32xf32> -> vector<16x32xf32>
    %cst_24 = arith.constant dense<0.000000e+00> : vector<16x32xf32>
    %25 = tpu.matmul %13, %21, %cst_24 {dimension_numbers = #tpu.dot_dimension_numbers<[1], [0], [0], [1], [0, 0, 1, 1], [], []>, precision = #tpu.contract_precision<fp32>} : vector<16x16xf32>, vector<16x32xf32>, vector<16x32xf32> -> vector<16x32xf32>
    %26 = arith.addf %24, %25 : vector<16x32xf32>
    %cst_25 = arith.constant dense<0.000000e+00> : vector<16x32xf32>
    %27 = tpu.matmul %16, %20, %cst_25 {dimension_numbers = #tpu.dot_dimension_numbers<[1], [0], [0], [1], [0, 0, 1, 1], [], []>, precision = #tpu.contract_precision<fp32>} : vector<16x16xf32>, vector<16x32xf32>, vector<16x32xf32> -> vector<16x32xf32>
    %cst_26 = arith.constant dense<0.000000e+00> : vector<16x32xf32>
    %28 = tpu.matmul %19, %21, %cst_26 {dimension_numbers = #tpu.dot_dimension_numbers<[1], [0], [0], [1], [0, 0, 1, 1], [], []>, precision = #tpu.contract_precision<fp32>} : vector<16x16xf32>, vector<16x32xf32>, vector<16x32xf32> -> vector<16x32xf32>
    %29 = arith.addf %27, %28 : vector<16x32xf32>
    %cst_27 = arith.constant dense<0.000000e+00> : vector<32x32xf32>
    %30 = tpu.matmul %22, %26, %cst_27 {dimension_numbers = #tpu.dot_dimension_numbers<[1], [0], [0], [1], [0, 0, 1, 1], [], []>, precision = #tpu.contract_precision<fp32>} : vector<32x16xf32>, vector<16x32xf32>, vector<32x32xf32> -> vector<32x32xf32>
    %cst_28 = arith.constant dense<0.000000e+00> : vector<32x32xf32>
    %31 = tpu.matmul %23, %29, %cst_28 {dimension_numbers = #tpu.dot_dimension_numbers<[1], [0], [0], [1], [0, 0, 1, 1], [], []>, precision = #tpu.contract_precision<fp32>} : vector<32x16xf32>, vector<16x32xf32>, vector<32x32xf32> -> vector<32x32xf32>
    %32 = arith.addf %30, %31 : vector<32x32xf32>
    %c0_29 = arith.constant 0 : index
    %c0_30 = arith.constant 0 : index
    %c0_31 = arith.constant 0 : index
    %33 = vector.load %arg8[%c0_29, %c0_30, %c0_31] : memref<1x32x32xf32, #tpu.memory_space<vmem>>, vector<1x32x32xf32>
    %34 = vector.shape_cast %33 : vector<1x32x32xf32> to vector<32x32xf32>
    %35 = vector.shape_cast %32 : vector<32x32xf32> to vector<1x32x32xf32>
    tpu.vector_store %arg8[%c0_29, %c0_30, %c0_31], %35 {strides = array<i32>} : memref<1x32x32xf32, #tpu.memory_space<vmem>>, vector<1x32x32xf32>,
    return
  }
  func.func @transform_0(%arg0: i32, %arg1: i32) -> (i32, i32, i32) {
    %c0_i32 = arith.constant 0 : i32
    %c0_i32_0 = arith.constant 0 : i32
    return %arg0, %arg1, %c0_i32 : i32, i32, i32
  }
  func.func @transform_1(%arg0: i32, %arg1: i32) -> (i32, i32, i32, i32) {
    %c0_i32 = arith.constant 0 : i32
    %c0_i32_0 = arith.constant 0 : i32
    %c0_i32_1 = arith.constant 0 : i32
    return %arg0, %c0_i32, %arg1, %c0_i32_0 : i32, i32, i32, i32
  }
  func.func @transform_2(%arg0: i32, %arg1: i32) -> (i32, i32) {
    %c0_i32 = arith.constant 0 : i32
    %c0_i32_0 = arith.constant 0 : i32
    %c0_i32_1 = arith.constant 0 : i32
    return %c0_i32, %c0_i32_0 : i32, i32
  }
  func.func @transform_3(%arg0: i32, %arg1: i32) -> (i32, i32) {
    %c0_i32 = arith.constant 0 : i32
    %c0_i32_0 = arith.constant 0 : i32
    %c0_i32_1 = arith.constant 0 : i32
    return %c0_i32, %c0_i32_0 : i32, i32
  }
  func.func @transform_4(%arg0: i32, %arg1: i32) -> (i32, i32) {
    %c0_i32 = arith.constant 0 : i32
    %c0_i32_0 = arith.constant 0 : i32
    %c0_i32_1 = arith.constant 0 : i32
    return %c0_i32, %c0_i32_0 : i32, i32
  }
  func.func @transform_5(%arg0: i32, %arg1: i32) -> (i32, i32) {
    %c0_i32 = arith.constant 0 : i32
    %c0_i32_0 = arith.constant 0 : i32
    %c0_i32_1 = arith.constant 0 : i32
    return %c0_i32, %c0_i32_0 : i32, i32
  }
  func.func @transform_6(%arg0: i32, %arg1: i32) -> (i32, i32, i32) {
    %c0_i32 = arith.constant 0 : i32
    %c0_i32_0 = arith.constant 0 : i32
    return %arg0, %arg1, %c0_i32 : i32, i32, i32
  }
}

</mosaic_0001>

<llo_original>
// kernel: tpu_custom_call.1
$region0: #{tpu_custom_call.1}
  #allocation0 [shape = 'u32[]', space=smem, size = 0x4, offset = 0x4, fixed_abs, tag = 'smem constant byte address 0x4 - core index']
  #allocation1 [shape = 'u32[144,128]{1,0:T(1,128)}', space=vmem, size = 0x12000, scoped, tag = 'internal scratch']
  %s0 = inlined_call_operand.vmem [shape: f32[2,64,16], index: 0, kind: input, shape index: {}]
  %s1 = inlined_call_operand.vmem [shape: f32[2,3,64,16], index: 1, kind: input, shape index: {}]
  %s2 = inlined_call_operand.vmem [shape: f32[16,32], index: 2, kind: input, shape index: {}]
  %s3 = inlined_call_operand.vmem [shape: f32[16,32], index: 3, kind: input, shape index: {}]
  %s4 = inlined_call_operand.vmem [shape: f32[32,16], index: 4, kind: input, shape index: {}]
  %s5 = inlined_call_operand.vmem [shape: f32[32,16], index: 5, kind: input, shape index: {}]
  %s6 = inlined_call_operand.vmem [shape: f32[2,128,32], index: 6, kind: output, shape index: {}]
  %s7 = sld [smem:[#allocation0]]
  $region95: #{tpu_custom_call.1} parent=0
    _
  %s9 = ssub.s32 1, %s7
  %s10 = scalar_select 0, %s9, %s7
  $region1: #{tpu_custom_call.1} parent=0
    #allocation2 [shape = 'u8[49152]{0}', space=vmem, size = 0xc000, scoped, tag = 'input window, operand 1']
    loop: start=0, step=1, limit=10
    $region2: #{tpu_custom_call.1} parent=1 // loop_pre_header
      _
    $region3: #{tpu_custom_call.1} parent=1 // loop_header
      %s12 = sphi 0, %s16
      %p13 = scmp.ge.s32.totalorder %s12, 10
      %s19 = sphi 0, %s31
      %s20 = sphi 0, %s27
      %s21 = sphi 0, %s19
      %s22 = sphi 0, %s20
      %s23 = sphi 0, %s21
      %s24 = sphi 0, %s22
      %s36 = sphi 0, %s38
      %s39 = sphi 0, %s36
      %s40 = sphi 0, %s39
      %s56 = sphi 0, %s40
      %s64 = sphi 0, %s66
      %s67 = sphi 0, %s64
      %s68 = sphi 0, %s67
      %s84 = sphi 0, %s68
      %s88 = sphi 0, %s88
      %s90 = sphi 0, %s88
      %s91 = sphi 0, %s90
      %s105 = sphi 0, %s91
      %s109 = sphi 0, %s109
      %s111 = sphi 0, %s109
      %s112 = sphi 0, %s111
      %s126 = sphi 0, %s112
      %s130 = sphi 0, %s130
      %s132 = sphi 0, %s130
      %s133 = sphi 0, %s132
      %s147 = sphi 0, %s133
      %s151 = sphi 0, %s151
      %s153 = sphi 0, %s151
      %s154 = sphi 0, %s153
      %s168 = sphi 0, %s154
      %s176 = sphi 0, %s178
      %s179 = sphi 0, %s176
      %s180 = sphi 0, %s179
      %s196 = sphi 0, %s180
    $region4: #{tpu_custom_call.1} parent=1 // loop_header_branch
      %15 = sbr.rel (%p13) target = $region8
    $region5: #{tpu_custom_call.1} parent=1 // loop_body
      %s17 = ssub.s32 %s12, 1
      %s18 = ssub.s32 %s12, 2
      %s25 = sadd.s32 1, %s20
      %p26 = scmp.ge.s32.totalorder %s25, 4
      %s27 = scalar_select %p26, 0, %s25
      %s28 = sadd.s32 1, %s19
      %s29 = scalar_select %p26, %s28, %s19
      %p30 = scmp.ge.s32.totalorder %s29, 2
      %s31 = scalar_select %p30, 0, %s29
      %s32 = ssub.s32 %s19, %s31
      %s33 = ssub.s32 %s20, %s27
      %s34 = sor.u32 %s32, %s33
      %p35 = scmp.eq.s32.totalorder %s34, 0
      %s37 = sadd.s32 %s36, 1
      %s38 = scalar_select %p35, %s36, %s37
      %p41 = pneg %p35
      %p42 = scmp.eq.s32.totalorder %s12, 7
      %p43 = por %p41, %p42
      %p44 = scmp.ne.s32.totalorder %s36, %s39
      %p45 = scmp.eq.s32.totalorder %s12, 0
      %p46 = por %p44, %p45
      %p47 = scmp.ne.s32.totalorder %s36, %s39
      %p48 = scmp.eq.s32.totalorder %s17, 7
      %p49 = por %p47, %p48
      %p50 = scmp.ne.s32.totalorder %s39, %s40
      %p51 = scmp.eq.s32.totalorder %s17, 0
      %p52 = por %p50, %p51
      %p53 = scmp.ne.s32.totalorder %s39, %s40
      %p54 = scmp.eq.s32.totalorder %s18, 7
      %p55 = por %p53, %p54
      %p57 = scmp.ne.s32.totalorder %s40, %s56
      %p58 = scmp.eq.s32.totalorder %s18, 0
      %p59 = por %p57, %p58
      %s60 = ssub.s32 %s19, %s31
      %s61 = ssub.s32 %s20, %s27
      %s62 = sor.u32 %s60, %s61
      %p63 = scmp.eq.s32.totalorder %s62, 0
      %s65 = sadd.s32 %s64, 1
      %s66 = scalar_select %p63, %s64, %s65
      %p69 = pneg %p63
      %p70 = scmp.eq.s32.totalorder %s12, 7
      %p71 = por %p69, %p70
      %p72 = scmp.ne.s32.totalorder %s64, %s67
      %p73 = scmp.eq.s32.totalorder %s12, 0
      %p74 = por %p72, %p73
      %p75 = scmp.ne.s32.totalorder %s64, %s67
      %p76 = scmp.eq.s32.totalorder %s17, 7
      %p77 = por %p75, %p76
      %p78 = scmp.ne.s32.totalorder %s67, %s68
      %p79 = scmp.eq.s32.totalorder %s17, 0
      %p80 = por %p78, %p79
      %p81 = scmp.ne.s32.totalorder %s67, %s68
      %p82 = scmp.eq.s32.totalorder %s18, 7
      %p83 = por %p81, %p82
      %p85 = scmp.ne.s32.totalorder %s68, %s84
      %p86 = scmp.eq.s32.totalorder %s18, 0
      %p87 = por %p85, %p86
      %s89 = sadd.s32 %s88, 1
      %p92 = scmp.eq.s32.totalorder %s12, 7
      %p93 = scmp.ne.s32.totalorder %s88, %s90
      %p94 = scmp.eq.s32.totalorder %s12, 0
      %p95 = por %p93, %p94
      %p96 = scmp.ne.s32.totalorder %s88, %s90
      %p97 = scmp.eq.s32.totalorder %s17, 7
      %p98 = por %p96, %p97
      %p99 = scmp.ne.s32.totalorder %s90, %s91
      %p100 = scmp.eq.s32.totalorder %s17, 0
      %p101 = por %p99, %p100
      %p102 = scmp.ne.s32.totalorder %s90, %s91
      %p103 = scmp.eq.s32.totalorder %s18, 7
      %p104 = por %p102, %p103
      %p106 = scmp.ne.s32.totalorder %s91, %s105
      %p107 = scmp.eq.s32.totalorder %s18, 0
      %p108 = por %p106, %p107
      %s110 = sadd.s32 %s109, 1
      %p113 = scmp.eq.s32.totalorder %s12, 7
      %p114 = scmp.ne.s32.totalorder %s109, %s111
      %p115 = scmp.eq.s32.totalorder %s12, 0
      %p116 = por %p114, %p115
      %p117 = scmp.ne.s32.totalorder %s109, %s111
      %p118 = scmp.eq.s32.totalorder %s17, 7
      %p119 = por %p117, %p118
      %p120 = scmp.ne.s32.totalorder %s111, %s112
      %p121 = scmp.eq.s32.totalorder %s17, 0
      %p122 = por %p120, %p121
      %p123 = scmp.ne.s32.totalorder %s111, %s112
      %p124 = scmp.eq.s32.totalorder %s18, 7
      %p125 = por %p123, %p124
      %p127 = scmp.ne.s32.totalorder %s112, %s126
      %p128 = scmp.eq.s32.totalorder %s18, 0
      %p129 = por %p127, %p128
      %s131 = sadd.s32 %s130, 1
      %p134 = scmp.eq.s32.totalorder %s12, 7
      %p135 = scmp.ne.s32.totalorder %s130, %s132
      %p136 = scmp.eq.s32.totalorder %s12, 0
      %p137 = por %p135, %p136
      %p138 = scmp.ne.s32.totalorder %s130, %s132
      %p139 = scmp.eq.s32.totalorder %s17, 7
      %p140 = por %p138, %p139
      %p141 = scmp.ne.s32.totalorder %s132, %s133
      %p142 = scmp.eq.s32.totalorder %s17, 0
      %p143 = por %p141, %p142
      %p144 = scmp.ne.s32.totalorder %s132, %s133
      %p145 = scmp.eq.s32.totalorder %s18, 7
      %p146 = por %p144, %p145
      %p148 = scmp.ne.s32.totalorder %s133, %s147
      %p149 = scmp.eq.s32.totalorder %s18, 0
      %p150 = por %p148, %p149
      %s152 = sadd.s32 %s151, 1
      %p155 = scmp.eq.s32.totalorder %s12, 7
      %p156 = scmp.ne.s32.totalorder %s151, %s153
      %p157 = scmp.eq.s32.totalorder %s12, 0
      %p158 = por %p156, %p157
      %p159 = scmp.ne.s32.totalorder %s151, %s153
      %p160 = scmp.eq.s32.totalorder %s17, 7
      %p161 = por %p159, %p160
      %p162 = scmp.ne.s32.totalorder %s153, %s154
      %p163 = scmp.eq.s32.totalorder %s17, 0
      %p164 = por %p162, %p163
      %p165 = scmp.ne.s32.totalorder %s153, %s154
      %p166 = scmp.eq.s32.totalorder %s18, 7
      %p167 = por %p165, %p166
      %p169 = scmp.ne.s32.totalorder %s154, %s168
      %p170 = scmp.eq.s32.totalorder %s18, 0
      %p171 = por %p169, %p170
      %s172 = ssub.s32 %s19, %s31
      %s173 = ssub.s32 %s20, %s27
      %s174 = sor.u32 %s172, %s173
      %p175 = scmp.eq.s32.totalorder %s174, 0
      %s177 = sadd.s32 %s176, 1
      %s178 = scalar_select %p175, %s176, %s177
      %p181 = pneg %p175
      %p182 = scmp.eq.s32.totalorder %s12, 7
      %p183 = por %p181, %p182
      %p184 = scmp.ne.s32.totalorder %s176, %s179
      %p185 = scmp.eq.s32.totalorder %s12, 0
      %p186 = por %p184, %p185
      %p187 = scmp.ne.s32.totalorder %s176, %s179
      %p188 = scmp.eq.s32.totalorder %s17, 7
      %p189 = por %p187, %p188
      %p190 = scmp.ne.s32.totalorder %s179, %s180
      %p191 = scmp.eq.s32.totalorder %s17, 0
      %p192 = por %p190, %p191
      %p193 = scmp.ne.s32.totalorder %s179, %s180
      %p194 = scmp.eq.s32.totalorder %s18, 7
      %p195 = por %p193, %p194
      %p197 = scmp.ne.s32.totalorder %s180, %s196
      %p198 = scmp.eq.s32.totalorder %s18, 0
      %p199 = por %p197, %p198
      %p200 = scmp.le.s32.totalorder 1, %s12
      %p201 = scmp.lt.s32.totalorder %s12, 9
      %p202 = pnand %p200, %p201
      %p203 = pneg %p202
      // Predicated region
      $region9: #{tpu_custom_call.1} parent=5 // pred_check
        _
      $region10: #{tpu_custom_call.1} parent=5 // pred_check_branch
        %205 = sbr.rel (%p202) target = $region12
      $region11: #{tpu_custom_call.1} parent=5 // pred_region
        %s206 = ssub.s32 %s12, 1
        // Predicated region
        $region13: #{tpu_custom_call.1} parent=11 // pred_check
          %p207 = pneg %p101
        $region14: #{tpu_custom_call.1} parent=11 // pred_check_branch
          %209 = sbr.rel (%p207) target = $region16
        $region15: #{tpu_custom_call.1} parent=11 // pred_region
          _
        $region16: #{tpu_custom_call.1} parent=11 // pred_fallthru
          _
        // Predicated region
        $region17: #{tpu_custom_call.1} parent=11 // pred_check
          %p210 = pneg %p122
        $region18: #{tpu_custom_call.1} parent=11 // pred_check_branch
          %212 = sbr.rel (%p210) target = $region20
        $region19: #{tpu_custom_call.1} parent=11 // pred_region
          _
        $region20: #{tpu_custom_call.1} parent=11 // pred_fallthru
          _
        // Predicated region
        $region21: #{tpu_custom_call.1} parent=11 // pred_check
          %p213 = pneg %p143
        $region22: #{tpu_custom_call.1} parent=11 // pred_check_branch
          %215 = sbr.rel (%p213) target = $region24
        $region23: #{tpu_custom_call.1} parent=11 // pred_region
          _
        $region24: #{tpu_custom_call.1} parent=11 // pred_fallthru
          _
        // Predicated region
        $region25: #{tpu_custom_call.1} parent=11 // pred_check
          %p216 = pneg %p164
        $region26: #{tpu_custom_call.1} parent=11 // pred_check_branch
          %218 = sbr.rel (%p216) target = $region28
        $region27: #{tpu_custom_call.1} parent=11 // pred_region
          _
        $region28: #{tpu_custom_call.1} parent=11 // pred_fallthru
          _
      $region12: #{tpu_custom_call.1} parent=5 // pred_fallthru
        _
      %p219 = scmp.lt.s32.totalorder %s12, 8
      // Predicated region
      $region29: #{tpu_custom_call.1} parent=5 // pred_check
        %p220 = pneg %p219
      $region30: #{tpu_custom_call.1} parent=5 // pred_check_branch
        %222 = sbr.rel (%p220) target = $region32
      $region31: #{tpu_custom_call.1} parent=5 // pred_region
        // Predicated region
        $region33: #{tpu_custom_call.1} parent=31 // pred_check
          %p223 = pneg %p46
        $region34: #{tpu_custom_call.1} parent=31 // pred_check_branch
          %225 = sbr.rel (%p223) target = $region36
        $region35: #{tpu_custom_call.1} parent=31 // pred_region
          %s226 = smul.u32 2, %s20
          %p227 = scmp.lt.s32.totalorder %s19, 1
          %s228 = scalar_select %p227, %s19, 1
          %p229 = scmp.lt.s32.totalorder %s226, 7
          %s230 = scalar_select %p229, %s226, 7
          %s231 = smul.addr %s228, 8
          %s232 = sadd.s32 %s230, %s231
          %s233 = smul.addr %s232, 8
          %s234 = scalar_lea.vmem %s0, %s233
          %s235 = smul.u32 2, %s20
        $region36: #{tpu_custom_call.1} parent=31 // pred_fallthru
          _
        // Predicated region
        $region37: #{tpu_custom_call.1} parent=31 // pred_check
          %p236 = pneg %p74
        $region38: #{tpu_custom_call.1} parent=31 // pred_check_branch
          %238 = sbr.rel (%p236) target = $region40
        $region39: #{tpu_custom_call.1} parent=31 // pred_region
          %s239 = sand.u32 %s64, 1
          %s240 = sand.u32 %s64, 1
          %s241 = smul.addr %s240, 48
          %s242 = scalar_lea.vmem [#allocation2], %s241
          %s243 = smul.u32 2, %s20
          %s244 = smul.addr %s19, 24
          %s245 = sadd.s32 %s243, %s244
          %s246 = smul.addr %s245, 8
          %s247 = scalar_lea.vmem %s1, %s246
          // Predicated region
          $region41: #{tpu_custom_call.1} parent=39 // pred_check
            _
          $region42: #{tpu_custom_call.1} parent=39 // pred_check_branch
            %249 = sbr.rel (0) target = $region44
          $region43: #{tpu_custom_call.1} parent=39 // pred_region
            // Predicated region
            $region45: #{tpu_custom_call.1} parent=43 // pred_check
              _
            $region46: #{tpu_custom_call.1} parent=43 // pred_check_branch
              %251 = sbr.rel (0) target = $region48
            $region47: #{tpu_custom_call.1} parent=43 // pred_region
              // Predicated region
              $region60: #{tpu_custom_call.1} parent=47 // pred_check
                _
              $region61: #{tpu_custom_call.1} parent=47 // pred_check_branch
                %276 = sbr.rel (0) target = $region63
              $region62: #{tpu_custom_call.1} parent=47 // pred_region
                loop: start=0, step=1, limit=1
                $region64: #{tpu_custom_call.1} parent=62 // loop_pre_header
                  _
                $region65: #{tpu_custom_call.1} parent=62 // loop_header
                  %s278 = sphi 0, %s282
                  %p279 = scmp.ge.s32.totalorder %s278, 1
                  %s283 = sphi %s247, %s247
                  %s284 = sphi %s242, %s242
                $region66: #{tpu_custom_call.1} parent=62 // loop_header_branch
                  %281 = sbr.rel (%p279) target = $region70
                $region67: #{tpu_custom_call.1} parent=62 // loop_body
                  %v285 = vld [vmem:[%s283] sm:$0xff]
                  %286 = vst [vmem:[%s284] sm:$0xff] %v285
                  %v287 = vld [vmem:[%s283 + $0x8] sm:$0xff]
                  %288 = vst [vmem:[%s284 + $0x8] sm:$0xff] %v287
                  %v289 = vld [vmem:[%s283 + $0x40] sm:$0xff]
                  %290 = vst [vmem:[%s284 + $0x10] sm:$0xff] %v289
                  %v291 = vld [vmem:[%s283 + $0x48] sm:$0xff]
                  %292 = vst [vmem:[%s284 + $0x18] sm:$0xff] %v291
                  %v293 = vld [vmem:[%s283 + $0x80] sm:$0xff]
                  %294 = vst [vmem:[%s284 + $0x20] sm:$0xff] %v293
                  %v295 = vld [vmem:[%s283 + $0x88] sm:$0xff]
                  %296 = vst [vmem:[%s284 + $0x28] sm:$0xff] %v295
                $region68: #{tpu_custom_call.1} parent=62 // loop_footer
                  %s282 = sadd.s32 1, %s278
                $region69: #{tpu_custom_call.1} parent=62 // loop_footer_branch
                  %277 = sbr.rel target = $region65
                $region70: #{tpu_custom_call.1} parent=62 // loop_exit
                  _
              $region63: #{tpu_custom_call.1} parent=47 // pred_fallthru
                _
              // Predicated region
              $region71: #{tpu_custom_call.1} parent=47 // pred_check
                _
              $region72: #{tpu_custom_call.1} parent=47 // pred_check_branch
                %298 = sbr.rel target = $region74
              $region73: #{tpu_custom_call.1} parent=47 // pred_region
                _
              $region74: #{tpu_custom_call.1} parent=47 // pred_fallthru
                _
            $region48: #{tpu_custom_call.1} parent=43 // pred_fallthru
              _
            // Predicated region
            $region49: #{tpu_custom_call.1} parent=43 // pred_check
              _
            $region50: #{tpu_custom_call.1} parent=43 // pred_check_branch
              %253 = sbr.rel target = $region52
            $region51: #{tpu_custom_call.1} parent=43 // pred_region
              loop: start=0, step=1, limit=1
              $region53: #{tpu_custom_call.1} parent=51 // loop_pre_header
                _
              $region54: #{tpu_custom_call.1} parent=51 // loop_header
                %s256 = sphi 0, %s260
                %p257 = scmp.ge.s32.totalorder %s256, 1
                %s261 = sphi %s247, %s247
                %s262 = sphi %s242, %s242
              $region55: #{tpu_custom_call.1} parent=51 // loop_header_branch
                %259 = sbr.rel (%p257) target = $region59
              $region56: #{tpu_custom_call.1} parent=51 // loop_body
                %v263 = vld [vmem:[%s261] sm:$0xff]
                %264 = vst [vmem:[%s262] sm:$0xff] %v263
                %v265 = vld [vmem:[%s261 + $0x8] sm:$0xff]
                %266 = vst [vmem:[%s262 + $0x8] sm:$0xff] %v265
                %v267 = vld [vmem:[%s261 + $0x40] sm:$0xff]
                %268 = vst [vmem:[%s262 + $0x10] sm:$0xff] %v267
                %v269 = vld [vmem:[%s261 + $0x48] sm:$0xff]
                %270 = vst [vmem:[%s262 + $0x18] sm:$0xff] %v269
                %v271 = vld [vmem:[%s261 + $0x80] sm:$0xff]
                %272 = vst [vmem:[%s262 + $0x20] sm:$0xff] %v271
                %v273 = vld [vmem:[%s261 + $0x88] sm:$0xff]
                %274 = vst [vmem:[%s262 + $0x28] sm:$0xff] %v273
              $region57: #{tpu_custom_call.1} parent=51 // loop_footer
                %s260 = sadd.s32 1, %s256
              $region58: #{tpu_custom_call.1} parent=51 // loop_footer_branch
                %255 = sbr.rel target = $region54
              $region59: #{tpu_custom_call.1} parent=51 // loop_exit
                _
            $region52: #{tpu_custom_call.1} parent=43 // pred_fallthru
              _
          $region44: #{tpu_custom_call.1} parent=39 // pred_fallthru
            _
          %299 = vnop
        $region40: #{tpu_custom_call.1} parent=31 // pred_fallthru
          _
      $region32: #{tpu_custom_call.1} parent=5 // pred_fallthru
        _
      %p300 = scmp.le.s32.totalorder 1, %s12
      %p301 = scmp.lt.s32.totalorder %s12, 9
      %p302 = pnand %p300, %p301
      %p303 = pneg %p302
      // Predicated region
      $region75: #{tpu_custom_call.1} parent=5 // pred_check
        _
      $region76: #{tpu_custom_call.1} parent=5 // pred_check_branch
        %305 = sbr.rel (%p302) target = $region78
      $region77: #{tpu_custom_call.1} parent=5 // pred_region
        %s306 = ssub.s32 %s12, 1
        %s307 = sand.u32 %s67, 1
        %s308 = sand.u32 %s67, 1
        %s309 = smul.addr %s308, 48
        %s310 = scalar_lea.vmem [#allocation2], %s309
        // Predicated region
        $region79: #{tpu_custom_call.1} parent=77 // pred_check
          %p311 = pneg %p80
        $region80: #{tpu_custom_call.1} parent=77 // pred_check_branch
          %313 = sbr.rel (%p311) target = $region82
        $region81: #{tpu_custom_call.1} parent=77 // pred_region
          _
        $region82: #{tpu_custom_call.1} parent=77 // pred_fallthru
          _
        %s314 = smul.u32 2, %s22
        %p315 = scmp.lt.s32.totalorder %s21, 1
        %s316 = scalar_select %p315, %s21, 1
        %p317 = scmp.lt.s32.totalorder %s314, 7
        %s318 = scalar_select %p317, %s314, 7
        %s319 = smul.addr %s316, 8
        %s320 = sadd.s32 %s318, %s319
        %s321 = smul.addr %s320, 8
        %s322 = scalar_lea.vmem %s0, %s321
        %p323 = pneg %p52
        %p324 = pneg %p49
        %s325 = sand.u32 %s67, 1
        %s326 = sand.u32 %s67, 1
        %s327 = smul.addr %s326, 48
        %s328 = scalar_lea.vmem [#allocation2], %s327
        %p329 = pneg %p80
        %p330 = pneg %p77
        %p331 = pneg %p101
        %p332 = pneg %p98
        %p333 = pneg %p122
        %p334 = pneg %p119
        %p335 = pneg %p143
        %p336 = pneg %p140
        %p337 = pneg %p164
        %p338 = pneg %p161
        %p339 = pneg %p192
        %p340 = pneg %p189
        %s341 = smul.u32 4, %s22
        %p342 = scmp.lt.s32.totalorder %s21, 1
        %s343 = scalar_select %p342, %s21, 1
        %p344 = scmp.lt.s32.totalorder %s341, 15
        %s345 = scalar_select %p344, %s341, 15
        %s346 = smul.addr %s343, 16
        %s347 = sadd.s32 %s345, %s346
        %s348 = smul.addr %s347, 8
        %s349 = scalar_lea.vmem %s6, %s348
        %s350 = smul.u32 2, %s22
        %p351 = scmp.lt.s32.totalorder %s21, 1
        %s352 = scalar_select %p351, %s21, 1
        %p353 = scmp.lt.s32.totalorder %s350, 7
        %s354 = scalar_select %p353, %s350, 7
        %s355 = smul.addr %s352, 8
        %s356 = sadd.s32 %s354, %s355
        %s357 = smul.addr %s356, 8
        %s358 = scalar_lea.vmem %s0, %s357
        %s359 = smul.u32 2, %s22
        %s360 = smul.u32 2, %s22
        %s361 = smul.u32 4, %s22
        %p362 = scmp.lt.s32.totalorder %s21, 1
        %s363 = scalar_select %p362, %s21, 1
        %p364 = scmp.lt.s32.totalorder %s361, 15
        %s365 = scalar_select %p364, %s361, 15
        %s366 = smul.addr %s363, 16
        %s367 = sadd.s32 %s365, %s366
        %s368 = smul.addr %s367, 8
        %s369 = scalar_lea.vmem %s6, %s368
        %s370 = smul.u32 4, %s22
        %v371 = vld [vmem:[%s358] sm:$0xff]
        %v372 = vld [vmem:[%s358 + $0x8] sm:$0xff]
        %v373 = vld [vmem:[%s310] sm:$0xff]
        %v374 = vld [vmem:[%s310 + $0x8] sm:$0xff]
        %s375 = scalar_lea.vmem %s310, 16 [#allocation2]
        %v376 = vld [vmem:[%s375] sm:$0xff]
        %v377 = vld [vmem:[%s375 + $0x8] sm:$0xff]
        %s378 = scalar_lea.vmem %s310, 32 [#allocation2]
        %v379 = vld [vmem:[%s378] sm:$0xff]
        %v380 = vld [vmem:[%s378 + $0x8] sm:$0xff]
        %v381 = vsub.f32 %v371, %v376
        %v382 = vsub.f32 %v372, %v377
        %v383 = vmul.f32 %v381, 0.5
        %v384 = vmul.f32 %v382, 0.5
        %v385 = vsub.f32 %v373, %v379
        %v386 = vsub.f32 %v374, %v380
        %v387 = vmul.f32 %v385, 0.5
        %v388 = vmul.f32 %v386, 0.5
        %v389 = vadd.f32 %v371, %v376
        %v390 = vadd.f32 %v372, %v377
        %v391 = vmul.f32 %v389, 0.5
        %v392 = vmul.f32 %v390, 0.5
        %v393 = vadd.f32 %v373, %v379
        %v394 = vadd.f32 %v374, %v380
        %v395 = vmul.f32 %v393, 0.5
        %v396 = vmul.f32 %v394, 0.5
        %v397 = vld [vmem:[%s2] sm:$0xff]
        %v398 = vld [vmem:[%s2 + $0x8] sm:$0xff]
        %v399 = vld [vmem:[%s3] sm:$0xff]
        %v400 = vld [vmem:[%s3 + $0x8] sm:$0xff]
        %v401 = vld [vmem:[%s4] sm:$0xff]
        %v402 = vld [vmem:[%s4 + $0x8] sm:$0xff]
        %v403 = vld [vmem:[%s4 + $0x10] sm:$0xff]
        %v404 = vld [vmem:[%s4 + $0x18] sm:$0xff]
        %v405 = vld [vmem:[%s5] sm:$0xff]
        %v406 = vld [vmem:[%s5 + $0x8] sm:$0xff]
        %v407 = vld [vmem:[%s5 + $0x10] sm:$0xff]
        %v408 = vld [vmem:[%s5 + $0x18] sm:$0xff]
        %vm409 = vcmask 130048
        %v411 = vsel %vm409, %v387, 0
        %v414 = vsel %vm409, %v388, 0
        %416 = vmatprep.subr.mxu0 0.0
        %v417 = vand.u32 %v399, 4294901760
        %418 = vmatpush1.msra.mxu0 %v417
        %419 = vmatprep.subr.mxu0 0.0
        %v420 = vand.u32 %v400, 4294901760
        %421 = vmatpush1.msra.mxu0 %v420
        %422 = vmatprep.subr.mxu0 0.0
        %423 = vmatpush1.msra.mxu0 0.0
        %424 = vmatprep.subr.mxu0 0.0
        %425 = vmatpush1.msra.mxu0 0.0
        %426 = vmatprep.subr.mxu0 0.0
        %427 = vmatpush1.msra.mxu0 0.0
        %428 = vmatprep.subr.mxu0 0.0
        %429 = vmatpush1.msra.mxu0 0.0
        %430 = vmatprep.subr.mxu0 0.0
        %431 = vmatpush1.msra.mxu0 0.0
        %432 = vmatprep.subr.mxu0 0.0
        %433 = vmatpush1.msra.mxu0 0.0
        %434 = vmatprep.subr.mxu0 0.0
        %435 = vmatpush1.msra.mxu0 0.0
        %436 = vmatprep.subr.mxu0 0.0
        %437 = vmatpush1.msra.mxu0 0.0
        %438 = vmatprep.subr.mxu0 0.0
        %439 = vmatpush1.msra.mxu0 0.0
        %440 = vmatprep.subr.mxu0 0.0
        %441 = vmatpush1.msra.mxu0 0.0
        %442 = vmatprep.subr.mxu0 0.0
        %443 = vmatpush1.msra.mxu0 0.0
        %444 = vmatprep.subr.mxu0 0.0
        %445 = vmatpush1.msra.mxu0 0.0
        %446 = vmatprep.subr.mxu0 0.0
        %447 = vmatpush1.msra.mxu0 0.0
        %448 = vmatprep.subr.mxu0 0.0
        %449 = vmatpush1.msra.mxu0 0.0
        %450 = vmatprep.subr.mxu0 0.0
        %451 = vmatpush1.msra.mxu0 0.0
        %452 = vmatprep.subr.mxu0 0.0
        %453 = vmatpush1.msra.mxu0 0.0
        %454 = vmatprep.subr.mxu0 0.0
        %455 = vmatpush1.msra.mxu0 0.0
        %456 = vmatprep.subr.mxu0 0.0
        %457 = vmatpush1.msra.mxu0 0.0
        %458 = vmatprep.subr.mxu0 0.0
        %459 = vmatpush1.msra.mxu0 0.0
        %460 = vmatprep.subr.mxu0 0.0
        %461 = vmatpush1.msra.mxu0 0.0
        %462 = vmatprep.subr.mxu0 0.0
        %463 = vmatpush1.msra.mxu0 0.0
        %464 = vmatprep.subr.mxu0 0.0
        %465 = vmatpush1.msra.mxu0 0.0
        %466 = vmatprep.subr.mxu0 0.0
        %467 = vmatpush1.msra.mxu0 0.0
        %468 = vmatprep.subr.mxu0 0.0
        %469 = vmatpush1.msra.mxu0 0.0
        %470 = vmatprep.subr.mxu0 0.0
        %471 = vmatpush1.msra.mxu0 0.0
        %472 = vmatprep.subr.mxu0 0.0
        %473 = vmatpush1.msra.mxu0 0.0
        %474 = vmatprep.subr.mxu0 0.0
        %475 = vmatpush1.msra.mxu0 0.0
        %476 = vmatprep.subr.mxu0 0.0
        %477 = vmatpush1.msra.mxu0 0.0
        %478 = vmatprep.subr.mxu0 0.0
        %479 = vmatpush1.msra.mxu0 0.0
        %480 = vmatprep.subr.mxu0 0.0
        %481 = vmatpush1.msra.mxu0 0.0
        %482 = vmatprep.mubr.f32.mxu0 0.0
        %v483 = vand.u32 %v411, 4294901760
        %v484 = vsub.f32 %v411, %v483
        %v485 = vand.u32 %v484, 4294901760
        %v486 = vsub.f32 %v484, %v485
        %v487 = vand.u32 %v486, 4294901760
        %488 = vmatmul.mubr.f32.gmra.mrb[0].mxu0 %v487
        %v489 = vpop.f32.mrb[0].mxu0
        %v490 = vadd.f32 0.0, %v489
        %v491 = vpop.f32.mrb[0].mxu0
        %492 = vmatprep.mubr.f32.mxu0 0.0
        %v493 = vand.u32 %v414, 4294901760
        %v494 = vsub.f32 %v414, %v493
        %v495 = vand.u32 %v494, 4294901760
        %v496 = vsub.f32 %v494, %v495
        %v497 = vand.u32 %v496, 4294901760
        %498 = vmatmul.mubr.f32.gmra.mrb[0].mxu0 %v497
        %v499 = vpop.f32.mrb[0].mxu0
        %v500 = vadd.f32 0.0, %v499
        %v501 = vpop.f32.mrb[0].mxu0
        %502 = vdwg.mxu0
        %503 = vmatprep.subr.mxu0 0.0
        %v504 = vand.u32 %v399, 4294901760
        %v505 = vsub.f32 %v399, %v504
        %v506 = vand.u32 %v505, 4294901760
        %v507 = vsub.f32 %v505, %v506
        %v508 = vand.u32 %v507, 4294901760
        %509 = vmatpush1.msra.mxu0 %v508
        %510 = vmatprep.subr.mxu0 0.0
        %v511 = vand.u32 %v400, 4294901760
        %v512 = vsub.f32 %v400, %v511
        %v513 = vand.u32 %v512, 4294901760
        %v514 = vsub.f32 %v512, %v513
        %v515 = vand.u32 %v514, 4294901760
        %516 = vmatpush1.msra.mxu0 %v515
        %517 = vmatprep.subr.mxu0 0.0
        %518 = vmatpush1.msra.mxu0 0.0
        %519 = vmatprep.subr.mxu0 0.0
        %520 = vmatpush1.msra.mxu0 0.0
        %521 = vmatprep.subr.mxu0 0.0
        %522 = vmatpush1.msra.mxu0 0.0
        %523 = vmatprep.subr.mxu0 0.0
        %524 = vmatpush1.msra.mxu0 0.0
        %525 = vmatprep.subr.mxu0 0.0
        %526 = vmatpush1.msra.mxu0 0.0
        %527 = vmatprep.subr.mxu0 0.0
        %528 = vmatpush1.msra.mxu0 0.0
        %529 = vmatprep.subr.mxu0 0.0
        %530 = vmatpush1.msra.mxu0 0.0
        %531 = vmatprep.subr.mxu0 0.0
        %532 = vmatpush1.msra.mxu0 0.0
        %533 = vmatprep.subr.mxu0 0.0
        %534 = vmatpush1.msra.mxu0 0.0
        %535 = vmatprep.subr.mxu0 0.0
        %536 = vmatpush1.msra.mxu0 0.0
        %537 = vmatprep.subr.mxu0 0.0
        %538 = vmatpush1.msra.mxu0 0.0
        %539 = vmatprep.subr.mxu0 0.0
        %540 = vmatpush1.msra.mxu0 0.0
        %541 = vmatprep.subr.mxu0 0.0
        %542 = vmatpush1.msra.mxu0 0.0
        %543 = vmatprep.subr.mxu0 0.0
        %544 = vmatpush1.msra.mxu0 0.0
        %545 = vmatprep.subr.mxu0 0.0
        %546 = vmatpush1.msra.mxu0 0.0
        %547 = vmatprep.subr.mxu0 0.0
        %548 = vmatpush1.msra.mxu0 0.0
        %549 = vmatprep.subr.mxu0 0.0
        %550 = vmatpush1.msra.mxu0 0.0
        %551 = vmatprep.subr.mxu0 0.0
        %552 = vmatpush1.msra.mxu0 0.0
        %553 = vmatprep.subr.mxu0 0.0
        %554 = vmatpush1.msra.mxu0 0.0
        %555 = vmatprep.subr.mxu0 0.0
        %556 = vmatpush1.msra.mxu0 0.0
        %557 = vmatprep.subr.mxu0 0.0
        %558 = vmatpush1.msra.mxu0 0.0
        %559 = vmatprep.subr.mxu0 0.0
        %560 = vmatpush1.msra.mxu0 0.0
        %561 = vmatprep.subr.mxu0 0.0
        %562 = vmatpush1.msra.mxu0 0.0
        %563 = vmatprep.subr.mxu0 0.0
        %564 = vmatpush1.msra.mxu0 0.0
        %565 = vmatprep.subr.mxu0 0.0
        %566 = vmatpush1.msra.mxu0 0.0
        %567 = vmatprep.subr.mxu0 0.0
        %568 = vmatpush1.msra.mxu0 0.0
        %569 = vmatprep.subr.mxu0 0.0
        %570 = vmatpush1.msra.mxu0 0.0
        %571 = vmatprep.subr.mxu0 0.0
        %572 = vmatpush1.msra.mxu0 0.0
        %573 = vmatprep.subr.mxu0 0.0
        %574 = vmatpush1.msra.mxu0 0.0
        %575 = vmatprep.subr.mxu0 0.0
        %576 = vmatpush1.msra.mxu0 0.0
        %577 = vmatprep.mubr.f32.mxu0 0.0
        %v578 = vand.u32 %v411, 4294901760
        %579 = vmatmul.mubr.f32.gmra.mrb[0].mxu0 %v578
        %v580 = vpop.f32.mrb[0].mxu0
        %v581 = vadd.f32 %v490, %v580
        %v582 = vpop.f32.mrb[0].mxu0
        %583 = vmatprep.mubr.f32.mxu0 0.0
        %v584 = vand.u32 %v414, 4294901760
        %585 = vmatmul.mubr.f32.gmra.mrb[0].mxu0 %v584
        %v586 = vpop.f32.mrb[0].mxu0
        %v587 = vadd.f32 %v500, %v586
        %v588 = vpop.f32.mrb[0].mxu0
        %589 = vdwg.mxu0
        %590 = vmatprep.subr.mxu0 0.0
        %v591 = vand.u32 %v399, 4294901760
        %v592 = vsub.f32 %v399, %v591
        %593 = vmatpush1.msra.mxu0 %v592
        %594 = vmatprep.subr.mxu0 0.0
        %v595 = vand.u32 %v400, 4294901760
        %v596 = vsub.f32 %v400, %v595
        %597 = vmatpush1.msra.mxu0 %v596
        %598 = vmatprep.subr.mxu0 0.0
        %599 = vmatpush1.msra.mxu0 0.0
        %600 = vmatprep.subr.mxu0 0.0
        %601 = vmatpush1.msra.mxu0 0.0
        %602 = vmatprep.subr.mxu0 0.0
        %603 = vmatpush1.msra.mxu0 0.0
        %604 = vmatprep.subr.mxu0 0.0
        %605 = vmatpush1.msra.mxu0 0.0
        %606 = vmatprep.subr.mxu0 0.0
        %607 = vmatpush1.msra.mxu0 0.0
        %608 = vmatprep.subr.mxu0 0.0
        %609 = vmatpush1.msra.mxu0 0.0
        %610 = vmatprep.subr.mxu0 0.0
        %611 = vmatpush1.msra.mxu0 0.0
        %612 = vmatprep.subr.mxu0 0.0
        %613 = vmatpush1.msra.mxu0 0.0
        %614 = vmatprep.subr.mxu0 0.0
        %615 = vmatpush1.msra.mxu0 0.0
        %616 = vmatprep.subr.mxu0 0.0
        %617 = vmatpush1.msra.mxu0 0.0
        %618 = vmatprep.subr.mxu0 0.0
        %619 = vmatpush1.msra.mxu0 0.0
        %620 = vmatprep.subr.mxu0 0.0
        %621 = vmatpush1.msra.mxu0 0.0
        %622 = vmatprep.subr.mxu0 0.0
        %623 = vmatpush1.msra.mxu0 0.0
        %624 = vmatprep.subr.mxu0 0.0
        %625 = vmatpush1.msra.mxu0 0.0
        %626 = vmatprep.subr.mxu0 0.0
        %627 = vmatpush1.msra.mxu0 0.0
        %628 = vmatprep.subr.mxu0 0.0
        %629 = vmatpush1.msra.mxu0 0.0
        %630 = vmatprep.subr.mxu0 0.0
        %631 = vmatpush1.msra.mxu0 0.0
        %632 = vmatprep.subr.mxu0 0.0
        %633 = vmatpush1.msra.mxu0 0.0
        %634 = vmatprep.subr.mxu0 0.0
        %635 = vmatpush1.msra.mxu0 0.0
        %636 = vmatprep.subr.mxu0 0.0
        %637 = vmatpush1.msra.mxu0 0.0
        %638 = vmatprep.subr.mxu0 0.0
        %639 = vmatpush1.msra.mxu0 0.0
        %640 = vmatprep.subr.mxu0 0.0
        %641 = vmatpush1.msra.mxu0 0.0
        %642 = vmatprep.subr.mxu0 0.0
        %643 = vmatpush1.msra.mxu0 0.0
        %644 = vmatprep.subr.mxu0 0.0
        %645 = vmatpush1.msra.mxu0 0.0
        %646 = vmatprep.subr.mxu0 0.0
        %647 = vmatpush1.msra.mxu0 0.0
        %648 = vmatprep.subr.mxu0 0.0
        %649 = vmatpush1.msra.mxu0 0.0
        %650 = vmatprep.subr.mxu0 0.0
        %651 = vmatpush1.msra.mxu0 0.0
        %652 = vmatprep.subr.mxu0 0.0
        %653 = vmatpush1.msra.mxu0 0.0
        %654 = vmatprep.subr.mxu0 0.0
        %655 = vmatpush1.msra.mxu0 0.0
        %656 = vmatprep.subr.mxu0 0.0
        %657 = vmatpush1.msra.mxu0 0.0
        %658 = vmatprep.mubr.f32.mxu0 0.0
        %v659 = vand.u32 %v411, 4294901760
        %v660 = vsub.f32 %v411, %v659
        %661 = vmatmul.mubr.f32.gmra.mrb[0].mxu0 %v660
        %v662 = vpop.f32.mrb[0].mxu0
        %v663 = vadd.f32 %v581, %v662
        %v664 = vpop.f32.mrb[0].mxu0
        %665 = vmatprep.mubr.f32.mxu0 0.0
        %v666 = vand.u32 %v414, 4294901760
        %v667 = vsub.f32 %v414, %v666
        %668 = vmatmul.mubr.f32.gmra.mrb[0].mxu0 %v667
        %v669 = vpop.f32.mrb[0].mxu0
        %v670 = vadd.f32 %v587, %v669
        %v671 = vpop.f32.mrb[0].mxu0
        %672 = vdwg.mxu0
        %673 = vmatprep.subr.mxu0 0.0
        %v674 = vand.u32 %v399, 4294901760
        %675 = vmatpush1.msra.mxu0 %v674
        %676 = vmatprep.subr.mxu0 0.0
        %v677 = vand.u32 %v400, 4294901760
        %678 = vmatpush1.msra.mxu0 %v677
        %679 = vmatprep.subr.mxu0 0.0
        %680 = vmatpush1.msra.mxu0 0.0
        %681 = vmatprep.subr.mxu0 0.0
        %682 = vmatpush1.msra.mxu0 0.0
        %683 = vmatprep.subr.mxu0 0.0
        %684 = vmatpush1.msra.mxu0 0.0
        %685 = vmatprep.subr.mxu0 0.0
        %686 = vmatpush1.msra.mxu0 0.0
        %687 = vmatprep.subr.mxu0 0.0
        %688 = vmatpush1.msra.mxu0 0.0
        %689 = vmatprep.subr.mxu0 0.0
        %690 = vmatpush1.msra.mxu0 0.0
        %691 = vmatprep.subr.mxu0 0.0
        %692 = vmatpush1.msra.mxu0 0.0
        %693 = vmatprep.subr.mxu0 0.0
        %694 = vmatpush1.msra.mxu0 0.0
        %695 = vmatprep.subr.mxu0 0.0
        %696 = vmatpush1.msra.mxu0 0.0
        %697 = vmatprep.subr.mxu0 0.0
        %698 = vmatpush1.msra.mxu0 0.0
        %699 = vmatprep.subr.mxu0 0.0
        %700 = vmatpush1.msra.mxu0 0.0
        %701 = vmatprep.subr.mxu0 0.0
        %702 = vmatpush1.msra.mxu0 0.0
        %703 = vmatprep.subr.mxu0 0.0
        %704 = vmatpush1.msra.mxu0 0.0
        %705 = vmatprep.subr.mxu0 0.0
        %706 = vmatpush1.msra.mxu0 0.0
        %707 = vmatprep.subr.mxu0 0.0
        %708 = vmatpush1.msra.mxu0 0.0
        %709 = vmatprep.subr.mxu0 0.0
        %710 = vmatpush1.msra.mxu0 0.0
        %711 = vmatprep.subr.mxu0 0.0
        %712 = vmatpush1.msra.mxu0 0.0
        %713 = vmatprep.subr.mxu0 0.0
        %714 = vmatpush1.msra.mxu0 0.0
        %715 = vmatprep.subr.mxu0 0.0
        %716 = vmatpush1.msra.mxu0 0.0
        %717 = vmatprep.subr.mxu0 0.0
        %718 = vmatpush1.msra.mxu0 0.0
        %719 = vmatprep.subr.mxu0 0.0
        %720 = vmatpush1.msra.mxu0 0.0
        %721 = vmatprep.subr.mxu0 0.0
        %722 = vmatpush1.msra.mxu0 0.0
        %723 = vmatprep.subr.mxu0 0.0
        %724 = vmatpush1.msra.mxu0 0.0
        %725 = vmatprep.subr.mxu0 0.0
        %726 = vmatpush1.msra.mxu0 0.0
        %727 = vmatprep.subr.mxu0 0.0
        %728 = vmatpush1.msra.mxu0 0.0
        %729 = vmatprep.subr.mxu0 0.0
        %730 = vmatpush1.msra.mxu0 0.0
        %731 = vmatprep.subr.mxu0 0.0
        %732 = vmatpush1.msra.mxu0 0.0
        %733 = vmatprep.subr.mxu0 0.0
        %734 = vmatpush1.msra.mxu0 0.0
        %735 = vmatprep.subr.mxu0 0.0
        %736 = vmatpush1.msra.mxu0 0.0
        %737 = vmatprep.subr.mxu0 0.0
        %738 = vmatpush1.msra.mxu0 0.0
        %739 = vmatprep.mubr.f32.mxu0 0.0
        %v740 = vand.u32 %v411, 4294901760
        %v741 = vsub.f32 %v411, %v740
        %v742 = vand.u32 %v741, 4294901760
        %743 = vmatmul.mubr.f32.gmra.mrb[0].mxu0 %v742
        %v744 = vpop.f32.mrb[0].mxu0
        %v745 = vadd.f32 %v663, %v744
        %v746 = vpop.f32.mrb[0].mxu0
        %747 = vmatprep.mubr.f32.mxu0 0.0
        %v748 = vand.u32 %v414, 4294901760
        %v749 = vsub.f32 %v414, %v748
        %v750 = vand.u32 %v749, 4294901760
        %751 = vmatmul.mubr.f32.gmra.mrb[0].mxu0 %v750
        %v752 = vpop.f32.mrb[0].mxu0
        %v753 = vadd.f32 %v670, %v752
        %v754 = vpop.f32.mrb[0].mxu0
        %755 = vdwg.mxu0
        %756 = vmatprep.subr.mxu0 0.0
        %v757 = vand.u32 %v399, 4294901760
        %v758 = vsub.f32 %v399, %v757
        %v759 = vand.u32 %v758, 4294901760
        %760 = vmatpush1.msra.mxu0 %v759
        %761 = vmatprep.subr.mxu0 0.0
        %v762 = vand.u32 %v400, 4294901760
        %v763 = vsub.f32 %v400, %v762
        %v764 = vand.u32 %v763, 4294901760
        %765 = vmatpush1.msra.mxu0 %v764
        %766 = vmatprep.subr.mxu0 0.0
        %767 = vmatpush1.msra.mxu0 0.0
        %768 = vmatprep.subr.mxu0 0.0
        %769 = vmatpush1.msra.mxu0 0.0
        %770 = vmatprep.subr.mxu0 0.0
        %771 = vmatpush1.msra.mxu0 0.0
        %772 = vmatprep.subr.mxu0 0.0
        %773 = vmatpush1.msra.mxu0 0.0
        %774 = vmatprep.subr.mxu0 0.0
        %775 = vmatpush1.msra.mxu0 0.0
        %776 = vmatprep.subr.mxu0 0.0
        %777 = vmatpush1.msra.mxu0 0.0
        %778 = vmatprep.subr.mxu0 0.0
        %779 = vmatpush1.msra.mxu0 0.0
        %780 = vmatprep.subr.mxu0 0.0
        %781 = vmatpush1.msra.mxu0 0.0
        %782 = vmatprep.subr.mxu0 0.0
        %783 = vmatpush1.msra.mxu0 0.0
        %784 = vmatprep.subr.mxu0 0.0
        %785 = vmatpush1.msra.mxu0 0.0
        %786 = vmatprep.subr.mxu0 0.0
        %787 = vmatpush1.msra.mxu0 0.0
        %788 = vmatprep.subr.mxu0 0.0
        %789 = vmatpush1.msra.mxu0 0.0
        %790 = vmatprep.subr.mxu0 0.0
        %791 = vmatpush1.msra.mxu0 0.0
        %792 = vmatprep.subr.mxu0 0.0
        %793 = vmatpush1.msra.mxu0 0.0
        %794 = vmatprep.subr.mxu0 0.0
        %795 = vmatpush1.msra.mxu0 0.0
        %796 = vmatprep.subr.mxu0 0.0
        %797 = vmatpush1.msra.mxu0 0.0
        %798 = vmatprep.subr.mxu0 0.0
        %799 = vmatpush1.msra.mxu0 0.0
        %800 = vmatprep.subr.mxu0 0.0
        %801 = vmatpush1.msra.mxu0 0.0
        %802 = vmatprep.subr.mxu0 0.0
        %803 = vmatpush1.msra.mxu0 0.0
        %804 = vmatprep.subr.mxu0 0.0
        %805 = vmatpush1.msra.mxu0 0.0
        %806 = vmatprep.subr.mxu0 0.0
        %807 = vmatpush1.msra.mxu0 0.0
        %808 = vmatprep.subr.mxu0 0.0
        %809 = vmatpush1.msra.mxu0 0.0
        %810 = vmatprep.subr.mxu0 0.0
        %811 = vmatpush1.msra.mxu0 0.0
        %812 = vmatprep.subr.mxu0 0.0
        %813 = vmatpush1.msra.mxu0 0.0
        %814 = vmatprep.subr.mxu0 0.0
        %815 = vmatpush1.msra.mxu0 0.0
        %816 = vmatprep.subr.mxu0 0.0
        %817 = vmatpush1.msra.mxu0 0.0
        %818 = vmatprep.subr.mxu0 0.0
        %819 = vmatpush1.msra.mxu0 0.0
        %820 = vmatprep.subr.mxu0 0.0
        %821 = vmatpush1.msra.mxu0 0.0
        %822 = vmatprep.subr.mxu0 0.0
        %823 = vmatpush1.msra.mxu0 0.0
        %824 = vmatprep.subr.mxu0 0.0
        %825 = vmatpush1.msra.mxu0 0.0
        %826 = vmatprep.mubr.f32.mxu0 0.0
        %v827 = vand.u32 %v411, 4294901760
        %828 = vmatmul.mubr.f32.gmra.mrb[0].mxu0 %v827
        %v829 = vpop.f32.mrb[0].mxu0
        %v830 = vadd.f32 %v745, %v829
        %v831 = vpop.f32.mrb[0].mxu0
        %832 = vmatprep.mubr.f32.mxu0 0.0
        %v833 = vand.u32 %v414, 4294901760
        %834 = vmatmul.mubr.f32.gmra.mrb[0].mxu0 %v833
        %v835 = vpop.f32.mrb[0].mxu0
        %v836 = vadd.f32 %v753, %v835
        %v837 = vpop.f32.mrb[0].mxu0
        %838 = vdwg.mxu0
        %839 = vmatprep.subr.mxu0 0.0
        %v840 = vand.u32 %v399, 4294901760
        %841 = vmatpush1.msra.mxu0 %v840
        %842 = vmatprep.subr.mxu0 0.0
        %v843 = vand.u32 %v400, 4294901760
        %844 = vmatpush1.msra.mxu0 %v843
        %845 = vmatprep.subr.mxu0 0.0
        %846 = vmatpush1.msra.mxu0 0.0
        %847 = vmatprep.subr.mxu0 0.0
        %848 = vmatpush1.msra.mxu0 0.0
        %849 = vmatprep.subr.mxu0 0.0
        %850 = vmatpush1.msra.mxu0 0.0
        %851 = vmatprep.subr.mxu0 0.0
        %852 = vmatpush1.msra.mxu0 0.0
        %853 = vmatprep.subr.mxu0 0.0
        %854 = vmatpush1.msra.mxu0 0.0
        %855 = vmatprep.subr.mxu0 0.0
        %856 = vmatpush1.msra.mxu0 0.0
        %857 = vmatprep.subr.mxu0 0.0
        %858 = vmatpush1.msra.mxu0 0.0
        %859 = vmatprep.subr.mxu0 0.0
        %860 = vmatpush1.msra.mxu0 0.0
        %861 = vmatprep.subr.mxu0 0.0
        %862 = vmatpush1.msra.mxu0 0.0
        %863 = vmatprep.subr.mxu0 0.0
        %864 = vmatpush1.msra.mxu0 0.0
        %865 = vmatprep.subr.mxu0 0.0
        %866 = vmatpush1.msra.mxu0 0.0
        %867 = vmatprep.subr.mxu0 0.0
        %868 = vmatpush1.msra.mxu0 0.0
        %869 = vmatprep.subr.mxu0 0.0
        %870 = vmatpush1.msra.mxu0 0.0
        %871 = vmatprep.subr.mxu0 0.0
        %872 = vmatpush1.msra.mxu0 0.0
        %873 = vmatprep.subr.mxu0 0.0
        %874 = vmatpush1.msra.mxu0 0.0
        %875 = vmatprep.subr.mxu0 0.0
        %876 = vmatpush1.msra.mxu0 0.0
        %877 = vmatprep.subr.mxu0 0.0
        %878 = vmatpush1.msra.mxu0 0.0
        %879 = vmatprep.subr.mxu0 0.0
        %880 = vmatpush1.msra.mxu0 0.0
        %881 = vmatprep.subr.mxu0 0.0
        %882 = vmatpush1.msra.mxu0 0.0
        %883 = vmatprep.subr.mxu0 0.0
        %884 = vmatpush1.msra.mxu0 0.0
        %885 = vmatprep.subr.mxu0 0.0
        %886 = vmatpush1.msra.mxu0 0.0
        %887 = vmatprep.subr.mxu0 0.0
        %888 = vmatpush1.msra.mxu0 0.0
        %889 = vmatprep.subr.mxu0 0.0
        %890 = vmatpush1.msra.mxu0 0.0
        %891 = vmatprep.subr.mxu0 0.0
        %892 = vmatpush1.msra.mxu0 0.0
        %893 = vmatprep.subr.mxu0 0.0
        %894 = vmatpush1.msra.mxu0 0.0
        %895 = vmatprep.subr.mxu0 0.0
        %896 = vmatpush1.msra.mxu0 0.0
        %897 = vmatprep.subr.mxu0 0.0
        %898 = vmatpush1.msra.mxu0 0.0
        %899 = vmatprep.subr.mxu0 0.0
        %900 = vmatpush1.msra.mxu0 0.0
        %901 = vmatprep.subr.mxu0 0.0
        %902 = vmatpush1.msra.mxu0 0.0
        %903 = vmatprep.subr.mxu0 0.0
        %904 = vmatpush1.msra.mxu0 0.0
        %905 = vmatprep.mubr.f32.mxu0 0.0
        %v906 = vand.u32 %v411, 4294901760
        %907 = vmatmul.mubr.f32.gmra.mrb[0].mxu0 %v906
        %v908 = vpop.f32.mrb[0].mxu0
        %v909 = vadd.f32 %v830, %v908
        %v910 = vpop.f32.mrb[0].mxu0
        %911 = vmatprep.mubr.f32.mxu0 0.0
        %v912 = vand.u32 %v414, 4294901760
        %913 = vmatmul.mubr.f32.gmra.mrb[0].mxu0 %v912
        %v914 = vpop.f32.mrb[0].mxu0
        %v915 = vadd.f32 %v836, %v914
        %v916 = vpop.f32.mrb[0].mxu0
        %917 = vdwg.mxu0
        %v919 = vsel %vm409, %v383, 0
        %v922 = vsel %vm409, %v384, 0
        %924 = vmatprep.subr.mxu0 0.0
        %v925 = vand.u32 %v397, 4294901760
        %926 = vmatpush1.msra.mxu0 %v925
        %927 = vmatprep.subr.mxu0 0.0
        %v928 = vand.u32 %v398, 4294901760
        %929 = vmatpush1.msra.mxu0 %v928
        %930 = vmatprep.subr.mxu0 0.0
        %931 = vmatpush1.msra.mxu0 0.0
        %932 = vmatprep.subr.mxu0 0.0
        %933 = vmatpush1.msra.mxu0 0.0
        %934 = vmatprep.subr.mxu0 0.0
        %935 = vmatpush1.msra.mxu0 0.0
        %936 = vmatprep.subr.mxu0 0.0
        %937 = vmatpush1.msra.mxu0 0.0
        %938 = vmatprep.subr.mxu0 0.0
        %939 = vmatpush1.msra.mxu0 0.0
        %940 = vmatprep.subr.mxu0 0.0
        %941 = vmatpush1.msra.mxu0 0.0
        %942 = vmatprep.subr.mxu0 0.0
        %943 = vmatpush1.msra.mxu0 0.0
        %944 = vmatprep.subr.mxu0 0.0
        %945 = vmatpush1.msra.mxu0 0.0
        %946 = vmatprep.subr.mxu0 0.0
        %947 = vmatpush1.msra.mxu0 0.0
        %948 = vmatprep.subr.mxu0 0.0
        %949 = vmatpush1.msra.mxu0 0.0
        %950 = vmatprep.subr.mxu0 0.0
        %951 = vmatpush1.msra.mxu0 0.0
        %952 = vmatprep.subr.mxu0 0.0
        %953 = vmatpush1.msra.mxu0 0.0
        %954 = vmatprep.subr.mxu0 0.0
        %955 = vmatpush1.msra.mxu0 0.0
        %956 = vmatprep.subr.mxu0 0.0
        %957 = vmatpush1.msra.mxu0 0.0
        %958 = vmatprep.subr.mxu0 0.0
        %959 = vmatpush1.msra.mxu0 0.0
        %960 = vmatprep.subr.mxu0 0.0
        %961 = vmatpush1.msra.mxu0 0.0
        %962 = vmatprep.subr.mxu0 0.0
        %963 = vmatpush1.msra.mxu0 0.0
        %964 = vmatprep.subr.mxu0 0.0
        %965 = vmatpush1.msra.mxu0 0.0
        %966 = vmatprep.subr.mxu0 0.0
        %967 = vmatpush1.msra.mxu0 0.0
        %968 = vmatprep.subr.mxu0 0.0
        %969 = vmatpush1.msra.mxu0 0.0
        %970 = vmatprep.subr.mxu0 0.0
        %971 = vmatpush1.msra.mxu0 0.0
        %972 = vmatprep.subr.mxu0 0.0
        %973 = vmatpush1.msra.mxu0 0.0
        %974 = vmatprep.subr.mxu0 0.0
        %975 = vmatpush1.msra.mxu0 0.0
        %976 = vmatprep.subr.mxu0 0.0
        %977 = vmatpush1.msra.mxu0 0.0
        %978 = vmatprep.subr.mxu0 0.0
        %979 = vmatpush1.msra.mxu0 0.0
        %980 = vmatprep.subr.mxu0 0.0
        %981 = vmatpush1.msra.mxu0 0.0
        %982 = vmatprep.subr.mxu0 0.0
        %983 = vmatpush1.msra.mxu0 0.0
        %984 = vmatprep.subr.mxu0 0.0
        %985 = vmatpush1.msra.mxu0 0.0
        %986 = vmatprep.subr.mxu0 0.0
        %987 = vmatpush1.msra.mxu0 0.0
        %988 = vmatprep.subr.mxu0 0.0
        %989 = vmatpush1.msra.mxu0 0.0
        %990 = vmatprep.mubr.f32.mxu0 0.0
        %v991 = vand.u32 %v919, 4294901760
        %v992 = vsub.f32 %v919, %v991
        %v993 = vand.u32 %v992, 4294901760
        %v994 = vsub.f32 %v992, %v993
        %v995 = vand.u32 %v994, 4294901760
        %996 = vmatmul.mubr.f32.gmra.mrb[0].mxu0 %v995
        %v997 = vpop.f32.mrb[0].mxu0
        %v998 = vadd.f32 %v909, %v997
        %v999 = vpop.f32.mrb[0].mxu0
        %1000 = vmatprep.mubr.f32.mxu0 0.0
        %v1001 = vand.u32 %v922, 4294901760
        %v1002 = vsub.f32 %v922, %v1001
        %v1003 = vand.u32 %v1002, 4294901760
        %v1004 = vsub.f32 %v1002, %v1003
        %v1005 = vand.u32 %v1004, 4294901760
        %1006 = vmatmul.mubr.f32.gmra.mrb[0].mxu0 %v1005
        %v1007 = vpop.f32.mrb[0].mxu0
        %v1008 = vadd.f32 %v915, %v1007
        %v1009 = vpop.f32.mrb[0].mxu0
        %1010 = vdwg.mxu0
        %1011 = vmatprep.subr.mxu0 0.0
        %v1012 = vand.u32 %v397, 4294901760
        %v1013 = vsub.f32 %v397, %v1012
        %v1014 = vand.u32 %v1013, 4294901760
        %v1015 = vsub.f32 %v1013, %v1014
        %v1016 = vand.u32 %v1015, 4294901760
        %1017 = vmatpush1.msra.mxu0 %v1016
        %1018 = vmatprep.subr.mxu0 0.0
        %v1019 = vand.u32 %v398, 4294901760
        %v1020 = vsub.f32 %v398, %v1019
        %v1021 = vand.u32 %v1020, 4294901760
        %v1022 = vsub.f32 %v1020, %v1021
        %v1023 = vand.u32 %v1022, 4294901760
        %1024 = vmatpush1.msra.mxu0 %v1023
        %1025 = vmatprep.subr.mxu0 0.0
        %1026 = vmatpush1.msra.mxu0 0.0
        %1027 = vmatprep.subr.mxu0 0.0
        %1028 = vmatpush1.msra.mxu0 0.0
        %1029 = vmatprep.subr.mxu0 0.0
        %1030 = vmatpush1.msra.mxu0 0.0
        %1031 = vmatprep.subr.mxu0 0.0
        %1032 = vmatpush1.msra.mxu0 0.0
        %1033 = vmatprep.subr.mxu0 0.0
        %1034 = vmatpush1.msra.mxu0 0.0
        %1035 = vmatprep.subr.mxu0 0.0
        %1036 = vmatpush1.msra.mxu0 0.0
        %1037 = vmatprep.subr.mxu0 0.0
        %1038 = vmatpush1.msra.mxu0 0.0
        %1039 = vmatprep.subr.mxu0 0.0
        %1040 = vmatpush1.msra.mxu0 0.0
        %1041 = vmatprep.subr.mxu0 0.0
        %1042 = vmatpush1.msra.mxu0 0.0
        %1043 = vmatprep.subr.mxu0 0.0
        %1044 = vmatpush1.msra.mxu0 0.0
        %1045 = vmatprep.subr.mxu0 0.0
        %1046 = vmatpush1.msra.mxu0 0.0
        %1047 = vmatprep.subr.mxu0 0.0
        %1048 = vmatpush1.msra.mxu0 0.0
        %1049 = vmatprep.subr.mxu0 0.0
        %1050 = vmatpush1.msra.mxu0 0.0
        %1051 = vmatprep.subr.mxu0 0.0
        %1052 = vmatpush1.msra.mxu0 0.0
        %1053 = vmatprep.subr.mxu0 0.0
        %1054 = vmatpush1.msra.mxu0 0.0
        %1055 = vmatprep.subr.mxu0 0.0
        %1056 = vmatpush1.msra.mxu0 0.0
        %1057 = vmatprep.subr.mxu0 0.0
        %1058 = vmatpush1.msra.mxu0 0.0
        %1059 = vmatprep.subr.mxu0 0.0
        %1060 = vmatpush1.msra.mxu0 0.0
        %1061 = vmatprep.subr.mxu0 0.0
        %1062 = vmatpush1.msra.mxu0 0.0
        %1063 = vmatprep.subr.mxu0 0.0
        %1064 = vmatpush1.msra.mxu0 0.0
        %1065 = vmatprep.subr.mxu0 0.0
        %1066 = vmatpush1.msra.mxu0 0.0
        %1067 = vmatprep.subr.mxu0 0.0
        %1068 = vmatpush1.msra.mxu0 0.0
        %1069 = vmatprep.subr.mxu0 0.0
        %1070 = vmatpush1.msra.mxu0 0.0
        %1071 = vmatprep.subr.mxu0 0.0
        %1072 = vmatpush1.msra.mxu0 0.0
        %1073 = vmatprep.subr.mxu0 0.0
        %1074 = vmatpush1.msra.mxu0 0.0
        %1075 = vmatprep.subr.mxu0 0.0
        %1076 = vmatpush1.msra.mxu0 0.0
        %1077 = vmatprep.subr.mxu0 0.0
        %1078 = vmatpush1.msra.mxu0 0.0
        %1079 = vmatprep.subr.mxu0 0.0
        %1080 = vmatpush1.msra.mxu0 0.0
        %1081 = vmatprep.subr.mxu0 0.0
        %1082 = vmatpush1.msra.mxu0 0.0
        %1083 = vmatprep.subr.mxu0 0.0
        %1084 = vmatpush1.msra.mxu0 0.0
        %1085 = vmatprep.mubr.f32.mxu0 0.0
        %v1086 = vand.u32 %v919, 4294901760
        %1087 = vmatmul.mubr.f32.gmra.mrb[0].mxu0 %v1086
        %v1088 = vpop.f32.mrb[0].mxu0
        %v1089 = vadd.f32 %v998, %v1088
        %v1090 = vpop.f32.mrb[0].mxu0
        %1091 = vmatprep.mubr.f32.mxu0 0.0
        %v1092 = vand.u32 %v922, 4294901760
        %1093 = vmatmul.mubr.f32.gmra.mrb[0].mxu0 %v1092
        %v1094 = vpop.f32.mrb[0].mxu0
        %v1095 = vadd.f32 %v1008, %v1094
        %v1096 = vpop.f32.mrb[0].mxu0
        %1097 = vdwg.mxu0
        %1098 = vmatprep.subr.mxu0 0.0
        %v1099 = vand.u32 %v397, 4294901760
        %v1100 = vsub.f32 %v397, %v1099
        %1101 = vmatpush1.msra.mxu0 %v1100
        %1102 = vmatprep.subr.mxu0 0.0
        %v1103 = vand.u32 %v398, 4294901760
        %v1104 = vsub.f32 %v398, %v1103
        %1105 = vmatpush1.msra.mxu0 %v1104
        %1106 = vmatprep.subr.mxu0 0.0
        %1107 = vmatpush1.msra.mxu0 0.0
        %1108 = vmatprep.subr.mxu0 0.0
        %1109 = vmatpush1.msra.mxu0 0.0
        %1110 = vmatprep.subr.mxu0 0.0
        %1111 = vmatpush1.msra.mxu0 0.0
        %1112 = vmatprep.subr.mxu0 0.0
        %1113 = vmatpush1.msra.mxu0 0.0
        %1114 = vmatprep.subr.mxu0 0.0
        %1115 = vmatpush1.msra.mxu0 0.0
        %1116 = vmatprep.subr.mxu0 0.0
        %1117 = vmatpush1.msra.mxu0 0.0
        %1118 = vmatprep.subr.mxu0 0.0
        %1119 = vmatpush1.msra.mxu0 0.0
        %1120 = vmatprep.subr.mxu0 0.0
        %1121 = vmatpush1.msra.mxu0 0.0
        %1122 = vmatprep.subr.mxu0 0.0
        %1123 = vmatpush1.msra.mxu0 0.0
        %1124 = vmatprep.subr.mxu0 0.0
        %1125 = vmatpush1.msra.mxu0 0.0
        %1126 = vmatprep.subr.mxu0 0.0
        %1127 = vmatpush1.msra.mxu0 0.0
        %1128 = vmatprep.subr.mxu0 0.0
        %1129 = vmatpush1.msra.mxu0 0.0
        %1130 = vmatprep.subr.mxu0 0.0
        %1131 = vmatpush1.msra.mxu0 0.0
        %1132 = vmatprep.subr.mxu0 0.0
        %1133 = vmatpush1.msra.mxu0 0.0
        %1134 = vmatprep.subr.mxu0 0.0
        %1135 = vmatpush1.msra.mxu0 0.0
        %1136 = vmatprep.subr.mxu0 0.0
        %1137 = vmatpush1.msra.mxu0 0.0
        %1138 = vmatprep.subr.mxu0 0.0
        %1139 = vmatpush1.msra.mxu0 0.0
        %1140 = vmatprep.subr.mxu0 0.0
        %1141 = vmatpush1.msra.mxu0 0.0
        %1142 = vmatprep.subr.mxu0 0.0
        %1143 = vmatpush1.msra.mxu0 0.0
        %1144 = vmatprep.subr.mxu0 0.0
        %1145 = vmatpush1.msra.mxu0 0.0
        %1146 = vmatprep.subr.mxu0 0.0
        %1147 = vmatpush1.msra.mxu0 0.0
        %1148 = vmatprep.subr.mxu0 0.0
        %1149 = vmatpush1.msra.mxu0 0.0
        %1150 = vmatprep.subr.mxu0 0.0
        %1151 = vmatpush1.msra.mxu0 0.0
        %1152 = vmatprep.subr.mxu0 0.0
        %1153 = vmatpush1.msra.mxu0 0.0
        %1154 = vmatprep.subr.mxu0 0.0
        %1155 = vmatpush1.msra.mxu0 0.0
        %1156 = vmatprep.subr.mxu0 0.0
        %1157 = vmatpush1.msra.mxu0 0.0
        %1158 = vmatprep.subr.mxu0 0.0
        %1159 = vmatpush1.msra.mxu0 0.0
        %1160 = vmatprep.subr.mxu0 0.0
        %1161 = vmatpush1.msra.mxu0 0.0
        %1162 = vmatprep.subr.mxu0 0.0
        %1163 = vmatpush1.msra.mxu0 0.0
        %1164 = vmatprep.subr.mxu0 0.0
        %1165 = vmatpush1.msra.mxu0 0.0
        %1166 = vmatprep.mubr.f32.mxu0 0.0
        %v1167 = vand.u32 %v919, 4294901760
        %v1168 = vsub.f32 %v919, %v1167
        %1169 = vmatmul.mubr.f32.gmra.mrb[0].mxu0 %v1168
        %v1170 = vpop.f32.mrb[0].mxu0
        %v1171 = vadd.f32 %v1089, %v1170
        %v1172 = vpop.f32.mrb[0].mxu0
        %1173 = vmatprep.mubr.f32.mxu0 0.0
        %v1174 = vand.u32 %v922, 4294901760
        %v1175 = vsub.f32 %v922, %v1174
        %1176 = vmatmul.mubr.f32.gmra.mrb[0].mxu0 %v1175
        %v1177 = vpop.f32.mrb[0].mxu0
        %v1178 = vadd.f32 %v1095, %v1177
        %v1179 = vpop.f32.mrb[0].mxu0
        %1180 = vdwg.mxu0
        %1181 = vmatprep.subr.mxu0 0.0
        %v1182 = vand.u32 %v397, 4294901760
        %1183 = vmatpush1.msra.mxu0 %v1182
        %1184 = vmatprep.subr.mxu0 0.0
        %v1185 = vand.u32 %v398, 4294901760
        %1186 = vmatpush1.msra.mxu0 %v1185
        %1187 = vmatprep.subr.mxu0 0.0
        %1188 = vmatpush1.msra.mxu0 0.0
        %1189 = vmatprep.subr.mxu0 0.0
        %1190 = vmatpush1.msra.mxu0 0.0
        %1191 = vmatprep.subr.mxu0 0.0
        %1192 = vmatpush1.msra.mxu0 0.0
        %1193 = vmatprep.subr.mxu0 0.0
        %1194 = vmatpush1.msra.mxu0 0.0
        %1195 = vmatprep.subr.mxu0 0.0
        %1196 = vmatpush1.msra.mxu0 0.0
        %1197 = vmatprep.subr.mxu0 0.0
        %1198 = vmatpush1.msra.mxu0 0.0
        %1199 = vmatprep.subr.mxu0 0.0
        %1200 = vmatpush1.msra.mxu0 0.0
        %1201 = vmatprep.subr.mxu0 0.0
        %1202 = vmatpush1.msra.mxu0 0.0
        %1203 = vmatprep.subr.mxu0 0.0
        %1204 = vmatpush1.msra.mxu0 0.0
        %1205 = vmatprep.subr.mxu0 0.0
        %1206 = vmatpush1.msra.mxu0 0.0
        %1207 = vmatprep.subr.mxu0 0.0
        %1208 = vmatpush1.msra.mxu0 0.0
        %1209 = vmatprep.subr.mxu0 0.0
        %1210 = vmatpush1.msra.mxu0 0.0
        %1211 = vmatprep.subr.mxu0 0.0
        %1212 = vmatpush1.msra.mxu0 0.0
        %1213 = vmatprep.subr.mxu0 0.0
        %1214 = vmatpush1.msra.mxu0 0.0
        %1215 = vmatprep.subr.mxu0 0.0
        %1216 = vmatpush1.msra.mxu0 0.0
        %1217 = vmatprep.subr.mxu0 0.0
        %1218 = vmatpush1.msra.mxu0 0.0
        %1219 = vmatprep.subr.mxu0 0.0
        %1220 = vmatpush1.msra.mxu0 0.0
        %1221 = vmatprep.subr.mxu0 0.0
        %1222 = vmatpush1.msra.mxu0 0.0
        %1223 = vmatprep.subr.mxu0 0.0
        %1224 = vmatpush1.msra.mxu0 0.0
        %1225 = vmatprep.subr.mxu0 0.0
        %1226 = vmatpush1.msra.mxu0 0.0
        %1227 = vmatprep.subr.mxu0 0.0
        %1228 = vmatpush1.msra.mxu0 0.0
        %1229 = vmatprep.subr.mxu0 0.0
        %1230 = vmatpush1.msra.mxu0 0.0
        %1231 = vmatprep.subr.mxu0 0.0
        %1232 = vmatpush1.msra.mxu0 0.0
        %1233 = vmatprep.subr.mxu0 0.0
        %1234 = vmatpush1.msra.mxu0 0.0
        %1235 = vmatprep.subr.mxu0 0.0
        %1236 = vmatpush1.msra.mxu0 0.0
        %1237 = vmatprep.subr.mxu0 0.0
        %1238 = vmatpush1.msra.mxu0 0.0
        %1239 = vmatprep.subr.mxu0 0.0
        %1240 = vmatpush1.msra.mxu0 0.0
        %1241 = vmatprep.subr.mxu0 0.0
        %1242 = vmatpush1.msra.mxu0 0.0
        %1243 = vmatprep.subr.mxu0 0.0
        %1244 = vmatpush1.msra.mxu0 0.0
        %1245 = vmatprep.subr.mxu0 0.0
        %1246 = vmatpush1.msra.mxu0 0.0
        %1247 = vmatprep.mubr.f32.mxu0 0.0
        %v1248 = vand.u32 %v919, 4294901760
        %v1249 = vsub.f32 %v919, %v1248
        %v1250 = vand.u32 %v1249, 4294901760
        %1251 = vmatmul.mubr.f32.gmra.mrb[0].mxu0 %v1250
        %v1252 = vpop.f32.mrb[0].mxu0
        %v1253 = vadd.f32 %v1171, %v1252
        %v1254 = vpop.f32.mrb[0].mxu0
        %1255 = vmatprep.mubr.f32.mxu0 0.0
        %v1256 = vand.u32 %v922, 4294901760
        %v1257 = vsub.f32 %v922, %v1256
        %v1258 = vand.u32 %v1257, 4294901760
        %1259 = vmatmul.mubr.f32.gmra.mrb[0].mxu0 %v1258
        %v1260 = vpop.f32.mrb[0].mxu0
        %v1261 = vadd.f32 %v1178, %v1260
        %v1262 = vpop.f32.mrb[0].mxu0
        %1263 = vdwg.mxu0
        %1264 = vmatprep.subr.mxu0 0.0
        %v1265 = vand.u32 %v397, 4294901760
        %v1266 = vsub.f32 %v397, %v1265
        %v1267 = vand.u32 %v1266, 4294901760
        %1268 = vmatpush1.msra.mxu0 %v1267
        %1269 = vmatprep.subr.mxu0 0.0
        %v1270 = vand.u32 %v398, 4294901760
        %v1271 = vsub.f32 %v398, %v1270
        %v1272 = vand.u32 %v1271, 4294901760
        %1273 = vmatpush1.msra.mxu0 %v1272
        %1274 = vmatprep.subr.mxu0 0.0
        %1275 = vmatpush1.msra.mxu0 0.0
        %1276 = vmatprep.subr.mxu0 0.0
        %1277 = vmatpush1.msra.mxu0 0.0
        %1278 = vmatprep.subr.mxu0 0.0
        %1279 = vmatpush1.msra.mxu0 0.0
        %1280 = vmatprep.subr.mxu0 0.0
        %1281 = vmatpush1.msra.mxu0 0.0
        %1282 = vmatprep.subr.mxu0 0.0
        %1283 = vmatpush1.msra.mxu0 0.0
        %1284 = vmatprep.subr.mxu0 0.0
        %1285 = vmatpush1.msra.mxu0 0.0
        %1286 = vmatprep.subr.mxu0 0.0
        %1287 = vmatpush1.msra.mxu0 0.0
        %1288 = vmatprep.subr.mxu0 0.0
        %1289 = vmatpush1.msra.mxu0 0.0
        %1290 = vmatprep.subr.mxu0 0.0
        %1291 = vmatpush1.msra.mxu0 0.0
        %1292 = vmatprep.subr.mxu0 0.0
        %1293 = vmatpush1.msra.mxu0 0.0
        %1294 = vmatprep.subr.mxu0 0.0
        %1295 = vmatpush1.msra.mxu0 0.0
        %1296 = vmatprep.subr.mxu0 0.0
        %1297 = vmatpush1.msra.mxu0 0.0
        %1298 = vmatprep.subr.mxu0 0.0
        %1299 = vmatpush1.msra.mxu0 0.0
        %1300 = vmatprep.subr.mxu0 0.0
        %1301 = vmatpush1.msra.mxu0 0.0
        %1302 = vmatprep.subr.mxu0 0.0
        %1303 = vmatpush1.msra.mxu0 0.0
        %1304 = vmatprep.subr.mxu0 0.0
        %1305 = vmatpush1.msra.mxu0 0.0
        %1306 = vmatprep.subr.mxu0 0.0
        %1307 = vmatpush1.msra.mxu0 0.0
        %1308 = vmatprep.subr.mxu0 0.0
        %1309 = vmatpush1.msra.mxu0 0.0
        %1310 = vmatprep.subr.mxu0 0.0
        %1311 = vmatpush1.msra.mxu0 0.0
        %1312 = vmatprep.subr.mxu0 0.0
        %1313 = vmatpush1.msra.mxu0 0.0
        %1314 = vmatprep.subr.mxu0 0.0
        %1315 = vmatpush1.msra.mxu0 0.0
        %1316 = vmatprep.subr.mxu0 0.0
        %1317 = vmatpush1.msra.mxu0 0.0
        %1318 = vmatprep.subr.mxu0 0.0
        %1319 = vmatpush1.msra.mxu0 0.0
        %1320 = vmatprep.subr.mxu0 0.0
        %1321 = vmatpush1.msra.mxu0 0.0
        %1322 = vmatprep.subr.mxu0 0.0
        %1323 = vmatpush1.msra.mxu0 0.0
        %1324 = vmatprep.subr.mxu0 0.0
        %1325 = vmatpush1.msra.mxu0 0.0
        %1326 = vmatprep.subr.mxu0 0.0
        %1327 = vmatpush1.msra.mxu0 0.0
        %1328 = vmatprep.subr.mxu0 0.0
        %1329 = vmatpush1.msra.mxu0 0.0
        %1330 = vmatprep.subr.mxu0 0.0
        %1331 = vmatpush1.msra.mxu0 0.0
        %1332 = vmatprep.subr.mxu0 0.0
        %1333 = vmatpush1.msra.mxu0 0.0
        %1334 = vmatprep.mubr.f32.mxu0 0.0
        %v1335 = vand.u32 %v919, 4294901760
        %1336 = vmatmul.mubr.f32.gmra.mrb[0].mxu0 %v1335
        %v1337 = vpop.f32.mrb[0].mxu0
        %v1338 = vadd.f32 %v1253, %v1337
        %v1339 = vpop.f32.mrb[0].mxu0
        %1340 = vmatprep.mubr.f32.mxu0 0.0
        %v1341 = vand.u32 %v922, 4294901760
        %1342 = vmatmul.mubr.f32.gmra.mrb[0].mxu0 %v1341
        %v1343 = vpop.f32.mrb[0].mxu0
        %v1344 = vadd.f32 %v1261, %v1343
        %v1345 = vpop.f32.mrb[0].mxu0
        %1346 = vdwg.mxu0
        %1347 = vmatprep.subr.mxu0 0.0
        %v1348 = vand.u32 %v397, 4294901760
        %1349 = vmatpush1.msra.mxu0 %v1348
        %1350 = vmatprep.subr.mxu0 0.0
        %v1351 = vand.u32 %v398, 4294901760
        %1352 = vmatpush1.msra.mxu0 %v1351
        %1353 = vmatprep.subr.mxu0 0.0
        %1354 = vmatpush1.msra.mxu0 0.0
        %1355 = vmatprep.subr.mxu0 0.0
        %1356 = vmatpush1.msra.mxu0 0.0
        %1357 = vmatprep.subr.mxu0 0.0
        %1358 = vmatpush1.msra.mxu0 0.0
        %1359 = vmatprep.subr.mxu0 0.0
        %1360 = vmatpush1.msra.mxu0 0.0
        %1361 = vmatprep.subr.mxu0 0.0
        %1362 = vmatpush1.msra.mxu0 0.0
        %1363 = vmatprep.subr.mxu0 0.0
        %1364 = vmatpush1.msra.mxu0 0.0
        %1365 = vmatprep.subr.mxu0 0.0
        %1366 = vmatpush1.msra.mxu0 0.0
        %1367 = vmatprep.subr.mxu0 0.0
        %1368 = vmatpush1.msra.mxu0 0.0
        %1369 = vmatprep.subr.mxu0 0.0
        %1370 = vmatpush1.msra.mxu0 0.0
        %1371 = vmatprep.subr.mxu0 0.0
        %1372 = vmatpush1.msra.mxu0 0.0
        %1373 = vmatprep.subr.mxu0 0.0
        %1374 = vmatpush1.msra.mxu0 0.0
        %1375 = vmatprep.subr.mxu0 0.0
        %1376 = vmatpush1.msra.mxu0 0.0
        %1377 = vmatprep.subr.mxu0 0.0
        %1378 = vmatpush1.msra.mxu0 0.0
        %1379 = vmatprep.subr.mxu0 0.0
        %1380 = vmatpush1.msra.mxu0 0.0
        %1381 = vmatprep.subr.mxu0 0.0
        %1382 = vmatpush1.msra.mxu0 0.0
        %1383 = vmatprep.subr.mxu0 0.0
        %1384 = vmatpush1.msra.mxu0 0.0
        %1385 = vmatprep.subr.mxu0 0.0
        %1386 = vmatpush1.msra.mxu0 0.0
        %1387 = vmatprep.subr.mxu0 0.0
        %1388 = vmatpush1.msra.mxu0 0.0
        %1389 = vmatprep.subr.mxu0 0.0
        %1390 = vmatpush1.msra.mxu0 0.0
        %1391 = vmatprep.subr.mxu0 0.0
        %1392 = vmatpush1.msra.mxu0 0.0
        %1393 = vmatprep.subr.mxu0 0.0
        %1394 = vmatpush1.msra.mxu0 0.0
        %1395 = vmatprep.subr.mxu0 0.0
        %1396 = vmatpush1.msra.mxu0 0.0
        %1397 = vmatprep.subr.mxu0 0.0
        %1398 = vmatpush1.msra.mxu0 0.0
        %1399 = vmatprep.subr.mxu0 0.0
        %1400 = vmatpush1.msra.mxu0 0.0
        %1401 = vmatprep.subr.mxu0 0.0
        %1402 = vmatpush1.msra.mxu0 0.0
        %1403 = vmatprep.subr.mxu0 0.0
        %1404 = vmatpush1.msra.mxu0 0.0
        %1405 = vmatprep.subr.mxu0 0.0
        %1406 = vmatpush1.msra.mxu0 0.0
        %1407 = vmatprep.subr.mxu0 0.0
        %1408 = vmatpush1.msra.mxu0 0.0
        %1409 = vmatprep.subr.mxu0 0.0
        %1410 = vmatpush1.msra.mxu0 0.0
        %1411 = vmatprep.subr.mxu0 0.0
        %1412 = vmatpush1.msra.mxu0 0.0
        %1413 = vmatprep.mubr.f32.mxu0 0.0
        %v1414 = vand.u32 %v919, 4294901760
        %1415 = vmatmul.mubr.f32.gmra.mrb[0].mxu0 %v1414
        %v1416 = vpop.f32.mrb[0].mxu0
        %v1417 = vadd.f32 %v1338, %v1416
        %v1418 = vpop.f32.mrb[0].mxu0
        %1419 = vmatprep.mubr.f32.mxu0 0.0
        %v1420 = vand.u32 %v922, 4294901760
        %1421 = vmatmul.mubr.f32.gmra.mrb[0].mxu0 %v1420
        %v1422 = vpop.f32.mrb[0].mxu0
        %v1423 = vadd.f32 %v1344, %v1422
        %v1424 = vpop.f32.mrb[0].mxu0
        %1425 = vdwg.mxu0
        %v1427 = vsel %vm409, %v395, 0
        %v1430 = vsel %vm409, %v396, 0
        %1432 = vmatprep.subr.mxu0 0.0
        %v1433 = vand.u32 %v399, 4294901760
        %1434 = vmatpush1.msra.mxu0 %v1433
        %1435 = vmatprep.subr.mxu0 0.0
        %v1436 = vand.u32 %v400, 4294901760
        %1437 = vmatpush1.msra.mxu0 %v1436
        %1438 = vmatprep.subr.mxu0 0.0
        %1439 = vmatpush1.msra.mxu0 0.0
        %1440 = vmatprep.subr.mxu0 0.0
        %1441 = vmatpush1.msra.mxu0 0.0
        %1442 = vmatprep.subr.mxu0 0.0
        %1443 = vmatpush1.msra.mxu0 0.0
        %1444 = vmatprep.subr.mxu0 0.0
        %1445 = vmatpush1.msra.mxu0 0.0
        %1446 = vmatprep.subr.mxu0 0.0
        %1447 = vmatpush1.msra.mxu0 0.0
        %1448 = vmatprep.subr.mxu0 0.0
        %1449 = vmatpush1.msra.mxu0 0.0
        %1450 = vmatprep.subr.mxu0 0.0
        %1451 = vmatpush1.msra.mxu0 0.0
        %1452 = vmatprep.subr.mxu0 0.0
        %1453 = vmatpush1.msra.mxu0 0.0
        %1454 = vmatprep.subr.mxu0 0.0
        %1455 = vmatpush1.msra.mxu0 0.0
        %1456 = vmatprep.subr.mxu0 0.0
        %1457 = vmatpush1.msra.mxu0 0.0
        %1458 = vmatprep.subr.mxu0 0.0
        %1459 = vmatpush1.msra.mxu0 0.0
        %1460 = vmatprep.subr.mxu0 0.0
        %1461 = vmatpush1.msra.mxu0 0.0
        %1462 = vmatprep.subr.mxu0 0.0
        %1463 = vmatpush1.msra.mxu0 0.0
        %1464 = vmatprep.subr.mxu0 0.0
        %1465 = vmatpush1.msra.mxu0 0.0
        %1466 = vmatprep.subr.mxu0 0.0
        %1467 = vmatpush1.msra.mxu0 0.0
        %1468 = vmatprep.subr.mxu0 0.0
        %1469 = vmatpush1.msra.mxu0 0.0
        %1470 = vmatprep.subr.mxu0 0.0
        %1471 = vmatpush1.msra.mxu0 0.0
        %1472 = vmatprep.subr.mxu0 0.0
        %1473 = vmatpush1.msra.mxu0 0.0
        %1474 = vmatprep.subr.mxu0 0.0
        %1475 = vmatpush1.msra.mxu0 0.0
        %1476 = vmatprep.subr.mxu0 0.0
        %1477 = vmatpush1.msra.mxu0 0.0
        %1478 = vmatprep.subr.mxu0 0.0
        %1479 = vmatpush1.msra.mxu0 0.0
        %1480 = vmatprep.subr.mxu0 0.0
        %1481 = vmatpush1.msra.mxu0 0.0
        %1482 = vmatprep.subr.mxu0 0.0
        %1483 = vmatpush1.msra.mxu0 0.0
        %1484 = vmatprep.subr.mxu0 0.0
        %1485 = vmatpush1.msra.mxu0 0.0
        %1486 = vmatprep.subr.mxu0 0.0
        %1487 = vmatpush1.msra.mxu0 0.0
        %1488 = vmatprep.subr.mxu0 0.0
        %1489 = vmatpush1.msra.mxu0 0.0
        %1490 = vmatprep.subr.mxu0 0.0
        %1491 = vmatpush1.msra.mxu0 0.0
        %1492 = vmatprep.subr.mxu0 0.0
        %1493 = vmatpush1.msra.mxu0 0.0
        %1494 = vmatprep.subr.mxu0 0.0
        %1495 = vmatpush1.msra.mxu0 0.0
        %1496 = vmatprep.subr.mxu0 0.0
        %1497 = vmatpush1.msra.mxu0 0.0
        %1498 = vmatprep.mubr.f32.mxu0 0.0
        %v1499 = vand.u32 %v1427, 4294901760
        %v1500 = vsub.f32 %v1427, %v1499
        %v1501 = vand.u32 %v1500, 4294901760
        %v1502 = vsub.f32 %v1500, %v1501
        %v1503 = vand.u32 %v1502, 4294901760
        %1504 = vmatmul.mubr.f32.gmra.mrb[0].mxu0 %v1503
        %v1505 = vpop.f32.mrb[0].mxu0
        %v1506 = vadd.f32 0.0, %v1505
        %v1507 = vpop.f32.mrb[0].mxu0
        %1508 = vmatprep.mubr.f32.mxu0 0.0
        %v1509 = vand.u32 %v1430, 4294901760
        %v1510 = vsub.f32 %v1430, %v1509
        %v1511 = vand.u32 %v1510, 4294901760
        %v1512 = vsub.f32 %v1510, %v1511
        %v1513 = vand.u32 %v1512, 4294901760
        %1514 = vmatmul.mubr.f32.gmra.mrb[0].mxu0 %v1513
        %v1515 = vpop.f32.mrb[0].mxu0
        %v1516 = vadd.f32 0.0, %v1515
        %v1517 = vpop.f32.mrb[0].mxu0
        %1518 = vdwg.mxu0
        %1519 = vmatprep.subr.mxu0 0.0
        %v1520 = vand.u32 %v399, 4294901760
        %v1521 = vsub.f32 %v399, %v1520
        %v1522 = vand.u32 %v1521, 4294901760
        %v1523 = vsub.f32 %v1521, %v1522
        %v1524 = vand.u32 %v1523, 4294901760
        %1525 = vmatpush1.msra.mxu0 %v1524
        %1526 = vmatprep.subr.mxu0 0.0
        %v1527 = vand.u32 %v400, 4294901760
        %v1528 = vsub.f32 %v400, %v1527
        %v1529 = vand.u32 %v1528, 4294901760
        %v1530 = vsub.f32 %v1528, %v1529
        %v1531 = vand.u32 %v1530, 4294901760
        %1532 = vmatpush1.msra.mxu0 %v1531
        %1533 = vmatprep.subr.mxu0 0.0
        %1534 = vmatpush1.msra.mxu0 0.0
        %1535 = vmatprep.subr.mxu0 0.0
        %1536 = vmatpush1.msra.mxu0 0.0
        %1537 = vmatprep.subr.mxu0 0.0
        %1538 = vmatpush1.msra.mxu0 0.0
        %1539 = vmatprep.subr.mxu0 0.0
        %1540 = vmatpush1.msra.mxu0 0.0
        %1541 = vmatprep.subr.mxu0 0.0
        %1542 = vmatpush1.msra.mxu0 0.0
        %1543 = vmatprep.subr.mxu0 0.0
        %1544 = vmatpush1.msra.mxu0 0.0
        %1545 = vmatprep.subr.mxu0 0.0
        %1546 = vmatpush1.msra.mxu0 0.0
        %1547 = vmatprep.subr.mxu0 0.0
        %1548 = vmatpush1.msra.mxu0 0.0
        %1549 = vmatprep.subr.mxu0 0.0
        %1550 = vmatpush1.msra.mxu0 0.0
        %1551 = vmatprep.subr.mxu0 0.0
        %1552 = vmatpush1.msra.mxu0 0.0
        %1553 = vmatprep.subr.mxu0 0.0
        %1554 = vmatpush1.msra.mxu0 0.0
        %1555 = vmatprep.subr.mxu0 0.0
        %1556 = vmatpush1.msra.mxu0 0.0
        %1557 = vmatprep.subr.mxu0 0.0
        %1558 = vmatpush1.msra.mxu0 0.0
        %1559 = vmatprep.subr.mxu0 0.0
        %1560 = vmatpush1.msra.mxu0 0.0
        %1561 = vmatprep.subr.mxu0 0.0
        %1562 = vmatpush1.msra.mxu0 0.0
        %1563 = vmatprep.subr.mxu0 0.0
        %1564 = vmatpush1.msra.mxu0 0.0
        %1565 = vmatprep.subr.mxu0 0.0
        %1566 = vmatpush1.msra.mxu0 0.0
        %1567 = vmatprep.subr.mxu0 0.0
        %1568 = vmatpush1.msra.mxu0 0.0
        %1569 = vmatprep.subr.mxu0 0.0
        %1570 = vmatpush1.msra.mxu0 0.0
        %1571 = vmatprep.subr.mxu0 0.0
        %1572 = vmatpush1.msra.mxu0 0.0
        %1573 = vmatprep.subr.mxu0 0.0
        %1574 = vmatpush1.msra.mxu0 0.0
        %1575 = vmatprep.subr.mxu0 0.0
        %1576 = vmatpush1.msra.mxu0 0.0
        %1577 = vmatprep.subr.mxu0 0.0
        %1578 = vmatpush1.msra.mxu0 0.0
        %1579 = vmatprep.subr.mxu0 0.0
        %1580 = vmatpush1.msra.mxu0 0.0
        %1581 = vmatprep.subr.mxu0 0.0
        %1582 = vmatpush1.msra.mxu0 0.0
        %1583 = vmatprep.subr.mxu0 0.0
        %1584 = vmatpush1.msra.mxu0 0.0
        %1585 = vmatprep.subr.mxu0 0.0
        %1586 = vmatpush1.msra.mxu0 0.0
        %1587 = vmatprep.subr.mxu0 0.0
        %1588 = vmatpush1.msra.mxu0 0.0
        %1589 = vmatprep.subr.mxu0 0.0
        %1590 = vmatpush1.msra.mxu0 0.0
        %1591 = vmatprep.subr.mxu0 0.0
        %1592 = vmatpush1.msra.mxu0 0.0
        %1593 = vmatprep.mubr.f32.mxu0 0.0
        %v1594 = vand.u32 %v1427, 4294901760
        %1595 = vmatmul.mubr.f32.gmra.mrb[0].mxu0 %v1594
        %v1596 = vpop.f32.mrb[0].mxu0
        %v1597 = vadd.f32 %v1506, %v1596
        %v1598 = vpop.f32.mrb[0].mxu0
        %1599 = vmatprep.mubr.f32.mxu0 0.0
        %v1600 = vand.u32 %v1430, 4294901760
        %1601 = vmatmul.mubr.f32.gmra.mrb[0].mxu0 %v1600
        %v1602 = vpop.f32.mrb[0].mxu0
        %v1603 = vadd.f32 %v1516, %v1602
        %v1604 = vpop.f32.mrb[0].mxu0
        %1605 = vdwg.mxu0
        %1606 = vmatprep.subr.mxu0 0.0
        %v1607 = vand.u32 %v399, 4294901760
        %v1608 = vsub.f32 %v399, %v1607
        %1609 = vmatpush1.msra.mxu0 %v1608
        %1610 = vmatprep.subr.mxu0 0.0
        %v1611 = vand.u32 %v400, 4294901760
        %v1612 = vsub.f32 %v400, %v1611
        %1613 = vmatpush1.msra.mxu0 %v1612
        %1614 = vmatprep.subr.mxu0 0.0
        %1615 = vmatpush1.msra.mxu0 0.0
        %1616 = vmatprep.subr.mxu0 0.0
        %1617 = vmatpush1.msra.mxu0 0.0
        %1618 = vmatprep.subr.mxu0 0.0
        %1619 = vmatpush1.msra.mxu0 0.0
        %1620 = vmatprep.subr.mxu0 0.0
        %1621 = vmatpush1.msra.mxu0 0.0
        %1622 = vmatprep.subr.mxu0 0.0
        %1623 = vmatpush1.msra.mxu0 0.0
        %1624 = vmatprep.subr.mxu0 0.0
        %1625 = vmatpush1.msra.mxu0 0.0
        %1626 = vmatprep.subr.mxu0 0.0
        %1627 = vmatpush1.msra.mxu0 0.0
        %1628 = vmatprep.subr.mxu0 0.0
        %1629 = vmatpush1.msra.mxu0 0.0
        %1630 = vmatprep.subr.mxu0 0.0
        %1631 = vmatpush1.msra.mxu0 0.0
        %1632 = vmatprep.subr.mxu0 0.0
        %1633 = vmatpush1.msra.mxu0 0.0
        %1634 = vmatprep.subr.mxu0 0.0
        %1635 = vmatpush1.msra.mxu0 0.0
        %1636 = vmatprep.subr.mxu0 0.0
        %1637 = vmatpush1.msra.mxu0 0.0
        %1638 = vmatprep.subr.mxu0 0.0
        %1639 = vmatpush1.msra.mxu0 0.0
        %1640 = vmatprep.subr.mxu0 0.0
        %1641 = vmatpush1.msra.mxu0 0.0
        %1642 = vmatprep.subr.mxu0 0.0
        %1643 = vmatpush1.msra.mxu0 0.0
        %1644 = vmatprep.subr.mxu0 0.0
        %1645 = vmatpush1.msra.mxu0 0.0
        %1646 = vmatprep.subr.mxu0 0.0
        %1647 = vmatpush1.msra.mxu0 0.0
        %1648 = vmatprep.subr.mxu0 0.0
        %1649 = vmatpush1.msra.mxu0 0.0
        %1650 = vmatprep.subr.mxu0 0.0
        %1651 = vmatpush1.msra.mxu0 0.0
        %1652 = vmatprep.subr.mxu0 0.0
        %1653 = vmatpush1.msra.mxu0 0.0
        %1654 = vmatprep.subr.mxu0 0.0
        %1655 = vmatpush1.msra.mxu0 0.0
        %1656 = vmatprep.subr.mxu0 0.0
        %1657 = vmatpush1.msra.mxu0 0.0
        %1658 = vmatprep.subr.mxu0 0.0
        %1659 = vmatpush1.msra.mxu0 0.0
        %1660 = vmatprep.subr.mxu0 0.0
        %1661 = vmatpush1.msra.mxu0 0.0
        %1662 = vmatprep.subr.mxu0 0.0
        %1663 = vmatpush1.msra.mxu0 0.0
        %1664 = vmatprep.subr.mxu0 0.0
        %1665 = vmatpush1.msra.mxu0 0.0
        %1666 = vmatprep.subr.mxu0 0.0
        %1667 = vmatpush1.msra.mxu0 0.0
        %1668 = vmatprep.subr.mxu0 0.0
        %1669 = vmatpush1.msra.mxu0 0.0
        %1670 = vmatprep.subr.mxu0 0.0
        %1671 = vmatpush1.msra.mxu0 0.0
        %1672 = vmatprep.subr.mxu0 0.0
        %1673 = vmatpush1.msra.mxu0 0.0
        %1674 = vmatprep.mubr.f32.mxu0 0.0
        %v1675 = vand.u32 %v1427, 4294901760
        %v1676 = vsub.f32 %v1427, %v1675
        %1677 = vmatmul.mubr.f32.gmra.mrb[0].mxu0 %v1676
        %v1678 = vpop.f32.mrb[0].mxu0
        %v1679 = vadd.f32 %v1597, %v1678
        %v1680 = vpop.f32.mrb[0].mxu0
        %1681 = vmatprep.mubr.f32.mxu0 0.0
        %v1682 = vand.u32 %v1430, 4294901760
        %v1683 = vsub.f32 %v1430, %v1682
        %1684 = vmatmul.mubr.f32.gmra.mrb[0].mxu0 %v1683
        %v1685 = vpop.f32.mrb[0].mxu0
        %v1686 = vadd.f32 %v1603, %v1685
        %v1687 = vpop.f32.mrb[0].mxu0
        %1688 = vdwg.mxu0
        %1689 = vmatprep.subr.mxu0 0.0
        %v1690 = vand.u32 %v399, 4294901760
        %1691 = vmatpush1.msra.mxu0 %v1690
        %1692 = vmatprep.subr.mxu0 0.0
        %v1693 = vand.u32 %v400, 4294901760
        %1694 = vmatpush1.msra.mxu0 %v1693
        %1695 = vmatprep.subr.mxu0 0.0
        %1696 = vmatpush1.msra.mxu0 0.0
        %1697 = vmatprep.subr.mxu0 0.0
        %1698 = vmatpush1.msra.mxu0 0.0
        %1699 = vmatprep.subr.mxu0 0.0
        %1700 = vmatpush1.msra.mxu0 0.0
        %1701 = vmatprep.subr.mxu0 0.0
        %1702 = vmatpush1.msra.mxu0 0.0
        %1703 = vmatprep.subr.mxu0 0.0
        %1704 = vmatpush1.msra.mxu0 0.0
        %1705 = vmatprep.subr.mxu0 0.0
        %1706 = vmatpush1.msra.mxu0 0.0
        %1707 = vmatprep.subr.mxu0 0.0
        %1708 = vmatpush1.msra.mxu0 0.0
        %1709 = vmatprep.subr.mxu0 0.0
        %1710 = vmatpush1.msra.mxu0 0.0
        %1711 = vmatprep.subr.mxu0 0.0
        %1712 = vmatpush1.msra.mxu0 0.0
        %1713 = vmatprep.subr.mxu0 0.0
        %1714 = vmatpush1.msra.mxu0 0.0
        %1715 = vmatprep.subr.mxu0 0.0
        %1716 = vmatpush1.msra.mxu0 0.0
        %1717 = vmatprep.subr.mxu0 0.0
        %1718 = vmatpush1.msra.mxu0 0.0
        %1719 = vmatprep.subr.mxu0 0.0
        %1720 = vmatpush1.msra.mxu0 0.0
        %1721 = vmatprep.subr.mxu0 0.0
        %1722 = vmatpush1.msra.mxu0 0.0
        %1723 = vmatprep.subr.mxu0 0.0
        %1724 = vmatpush1.msra.mxu0 0.0
        %1725 = vmatprep.subr.mxu0 0.0
        %1726 = vmatpush1.msra.mxu0 0.0
        %1727 = vmatprep.subr.mxu0 0.0
        %1728 = vmatpush1.msra.mxu0 0.0
        %1729 = vmatprep.subr.mxu0 0.0
        %1730 = vmatpush1.msra.mxu0 0.0
        %1731 = vmatprep.subr.mxu0 0.0
        %1732 = vmatpush1.msra.mxu0 0.0
        %1733 = vmatprep.subr.mxu0 0.0
        %1734 = vmatpush1.msra.mxu0 0.0
        %1735 = vmatprep.subr.mxu0 0.0
        %1736 = vmatpush1.msra.mxu0 0.0
        %1737 = vmatprep.subr.mxu0 0.0
        %1738 = vmatpush1.msra.mxu0 0.0
        %1739 = vmatprep.subr.mxu0 0.0
        %1740 = vmatpush1.msra.mxu0 0.0
        %1741 = vmatprep.subr.mxu0 0.0
        %1742 = vmatpush1.msra.mxu0 0.0
        %1743 = vmatprep.subr.mxu0 0.0
        %1744 = vmatpush1.msra.mxu0 0.0
        %1745 = vmatprep.subr.mxu0 0.0
        %1746 = vmatpush1.msra.mxu0 0.0
        %1747 = vmatprep.subr.mxu0 0.0
        %1748 = vmatpush1.msra.mxu0 0.0
        %1749 = vmatprep.subr.mxu0 0.0
        %1750 = vmatpush1.msra.mxu0 0.0
        %1751 = vmatprep.subr.mxu0 0.0
        %1752 = vmatpush1.msra.mxu0 0.0
        %1753 = vmatprep.subr.mxu0 0.0
        %1754 = vmatpush1.msra.mxu0 0.0
        %1755 = vmatprep.mubr.f32.mxu0 0.0
        %v1756 = vand.u32 %v1427, 4294901760
        %v1757 = vsub.f32 %v1427, %v1756
        %v1758 = vand.u32 %v1757, 4294901760
        %1759 = vmatmul.mubr.f32.gmra.mrb[0].mxu0 %v1758
        %v1760 = vpop.f32.mrb[0].mxu0
        %v1761 = vadd.f32 %v1679, %v1760
        %v1762 = vpop.f32.mrb[0].mxu0
        %1763 = vmatprep.mubr.f32.mxu0 0.0
        %v1764 = vand.u32 %v1430, 4294901760
        %v1765 = vsub.f32 %v1430, %v1764
        %v1766 = vand.u32 %v1765, 4294901760
        %1767 = vmatmul.mubr.f32.gmra.mrb[0].mxu0 %v1766
        %v1768 = vpop.f32.mrb[0].mxu0
        %v1769 = vadd.f32 %v1686, %v1768
        %v1770 = vpop.f32.mrb[0].mxu0
        %1771 = vdwg.mxu0
        %1772 = vmatprep.subr.mxu0 0.0
        %v1773 = vand.u32 %v399, 4294901760
        %v1774 = vsub.f32 %v399, %v1773
        %v1775 = vand.u32 %v1774, 4294901760
        %1776 = vmatpush1.msra.mxu0 %v1775
        %1777 = vmatprep.subr.mxu0 0.0
        %v1778 = vand.u32 %v400, 4294901760
        %v1779 = vsub.f32 %v400, %v1778
        %v1780 = vand.u32 %v1779, 4294901760
        %1781 = vmatpush1.msra.mxu0 %v1780
        %1782 = vmatprep.subr.mxu0 0.0
        %1783 = vmatpush1.msra.mxu0 0.0
        %1784 = vmatprep.subr.mxu0 0.0
        %1785 = vmatpush1.msra.mxu0 0.0
        %1786 = vmatprep.subr.mxu0 0.0
        %1787 = vmatpush1.msra.mxu0 0.0
        %1788 = vmatprep.subr.mxu0 0.0
        %1789 = vmatpush1.msra.mxu0 0.0
        %1790 = vmatprep.subr.mxu0 0.0
        %1791 = vmatpush1.msra.mxu0 0.0
        %1792 = vmatprep.subr.mxu0 0.0
        %1793 = vmatpush1.msra.mxu0 0.0
        %1794 = vmatprep.subr.mxu0 0.0
        %1795 = vmatpush1.msra.mxu0 0.0
        %1796 = vmatprep.subr.mxu0 0.0
        %1797 = vmatpush1.msra.mxu0 0.0
        %1798 = vmatprep.subr.mxu0 0.0
        %1799 = vmatpush1.msra.mxu0 0.0
        %1800 = vmatprep.subr.mxu0 0.0
        %1801 = vmatpush1.msra.mxu0 0.0
        %1802 = vmatprep.subr.mxu0 0.0
        %1803 = vmatpush1.msra.mxu0 0.0
        %1804 = vmatprep.subr.mxu0 0.0
        %1805 = vmatpush1.msra.mxu0 0.0
        %1806 = vmatprep.subr.mxu0 0.0
        %1807 = vmatpush1.msra.mxu0 0.0
        %1808 = vmatprep.subr.mxu0 0.0
        %1809 = vmatpush1.msra.mxu0 0.0
        %1810 = vmatprep.subr.mxu0 0.0
        %1811 = vmatpush1.msra.mxu0 0.0
        %1812 = vmatprep.subr.mxu0 0.0
        %1813 = vmatpush1.msra.mxu0 0.0
        %1814 = vmatprep.subr.mxu0 0.0
        %1815 = vmatpush1.msra.mxu0 0.0
        %1816 = vmatprep.subr.mxu0 0.0
        %1817 = vmatpush1.msra.mxu0 0.0
        %1818 = vmatprep.subr.mxu0 0.0
        %1819 = vmatpush1.msra.mxu0 0.0
        %1820 = vmatprep.subr.mxu0 0.0
        %1821 = vmatpush1.msra.mxu0 0.0
        %1822 = vmatprep.subr.mxu0 0.0
        %1823 = vmatpush1.msra.mxu0 0.0
        %1824 = vmatprep.subr.mxu0 0.0
        %1825 = vmatpush1.msra.mxu0 0.0
        %1826 = vmatprep.subr.mxu0 0.0
        %1827 = vmatpush1.msra.mxu0 0.0
        %1828 = vmatprep.subr.mxu0 0.0
        %1829 = vmatpush1.msra.mxu0 0.0
        %1830 = vmatprep.subr.mxu0 0.0
        %1831 = vmatpush1.msra.mxu0 0.0
        %1832 = vmatprep.subr.mxu0 0.0
        %1833 = vmatpush1.msra.mxu0 0.0
        %1834 = vmatprep.subr.mxu0 0.0
        %1835 = vmatpush1.msra.mxu0 0.0
        %1836 = vmatprep.subr.mxu0 0.0
        %1837 = vmatpush1.msra.mxu0 0.0
        %1838 = vmatprep.subr.mxu0 0.0
        %1839 = vmatpush1.msra.mxu0 0.0
        %1840 = vmatprep.subr.mxu0 0.0
        %1841 = vmatpush1.msra.mxu0 0.0
        %1842 = vmatprep.mubr.f32.mxu0 0.0
        %v1843 = vand.u32 %v1427, 4294901760
        %1844 = vmatmul.mubr.f32.gmra.mrb[0].mxu0 %v1843
        %v1845 = vpop.f32.mrb[0].mxu0
        %v1846 = vadd.f32 %v1761, %v1845
        %v1847 = vpop.f32.mrb[0].mxu0
        %1848 = vmatprep.mubr.f32.mxu0 0.0
        %v1849 = vand.u32 %v1430, 4294901760
        %1850 = vmatmul.mubr.f32.gmra.mrb[0].mxu0 %v1849
        %v1851 = vpop.f32.mrb[0].mxu0
        %v1852 = vadd.f32 %v1769, %v1851
        %v1853 = vpop.f32.mrb[0].mxu0
        %1854 = vdwg.mxu0
        %1855 = vmatprep.subr.mxu0 0.0
        %v1856 = vand.u32 %v399, 4294901760
        %1857 = vmatpush1.msra.mxu0 %v1856
        %1858 = vmatprep.subr.mxu0 0.0
        %v1859 = vand.u32 %v400, 4294901760
        %1860 = vmatpush1.msra.mxu0 %v1859
        %1861 = vmatprep.subr.mxu0 0.0
        %1862 = vmatpush1.msra.mxu0 0.0
        %1863 = vmatprep.subr.mxu0 0.0
        %1864 = vmatpush1.msra.mxu0 0.0
        %1865 = vmatprep.subr.mxu0 0.0
        %1866 = vmatpush1.msra.mxu0 0.0
        %1867 = vmatprep.subr.mxu0 0.0
        %1868 = vmatpush1.msra.mxu0 0.0
        %1869 = vmatprep.subr.mxu0 0.0
        %1870 = vmatpush1.msra.mxu0 0.0
        %1871 = vmatprep.subr.mxu0 0.0
        %1872 = vmatpush1.msra.mxu0 0.0
        %1873 = vmatprep.subr.mxu0 0.0
        %1874 = vmatpush1.msra.mxu0 0.0
        %1875 = vmatprep.subr.mxu0 0.0
        %1876 = vmatpush1.msra.mxu0 0.0
        %1877 = vmatprep.subr.mxu0 0.0
        %1878 = vmatpush1.msra.mxu0 0.0
        %1879 = vmatprep.subr.mxu0 0.0
        %1880 = vmatpush1.msra.mxu0 0.0
        %1881 = vmatprep.subr.mxu0 0.0
        %1882 = vmatpush1.msra.mxu0 0.0
        %1883 = vmatprep.subr.mxu0 0.0
        %1884 = vmatpush1.msra.mxu0 0.0
        %1885 = vmatprep.subr.mxu0 0.0
        %1886 = vmatpush1.msra.mxu0 0.0
        %1887 = vmatprep.subr.mxu0 0.0
        %1888 = vmatpush1.msra.mxu0 0.0
        %1889 = vmatprep.subr.mxu0 0.0
        %1890 = vmatpush1.msra.mxu0 0.0
        %1891 = vmatprep.subr.mxu0 0.0
        %1892 = vmatpush1.msra.mxu0 0.0
        %1893 = vmatprep.subr.mxu0 0.0
        %1894 = vmatpush1.msra.mxu0 0.0
        %1895 = vmatprep.subr.mxu0 0.0
        %1896 = vmatpush1.msra.mxu0 0.0
        %1897 = vmatprep.subr.mxu0 0.0
        %1898 = vmatpush1.msra.mxu0 0.0
        %1899 = vmatprep.subr.mxu0 0.0
        %1900 = vmatpush1.msra.mxu0 0.0
        %1901 = vmatprep.subr.mxu0 0.0
        %1902 = vmatpush1.msra.mxu0 0.0
        %1903 = vmatprep.subr.mxu0 0.0
        %1904 = vmatpush1.msra.mxu0 0.0
        %1905 = vmatprep.subr.mxu0 0.0
        %1906 = vmatpush1.msra.mxu0 0.0
        %1907 = vmatprep.subr.mxu0 0.0
        %1908 = vmatpush1.msra.mxu0 0.0
        %1909 = vmatprep.subr.mxu0 0.0
        %1910 = vmatpush1.msra.mxu0 0.0
        %1911 = vmatprep.subr.mxu0 0.0
        %1912 = vmatpush1.msra.mxu0 0.0
        %1913 = vmatprep.subr.mxu0 0.0
        %1914 = vmatpush1.msra.mxu0 0.0
        %1915 = vmatprep.subr.mxu0 0.0
        %1916 = vmatpush1.msra.mxu0 0.0
        %1917 = vmatprep.subr.mxu0 0.0
        %1918 = vmatpush1.msra.mxu0 0.0
        %1919 = vmatprep.subr.mxu0 0.0
        %1920 = vmatpush1.msra.mxu0 0.0
        %1921 = vmatprep.mubr.f32.mxu0 0.0
        %v1922 = vand.u32 %v1427, 4294901760
        %1923 = vmatmul.mubr.f32.gmra.mrb[0].mxu0 %v1922
        %v1924 = vpop.f32.mrb[0].mxu0
        %v1925 = vadd.f32 %v1846, %v1924
        %v1926 = vpop.f32.mrb[0].mxu0
        %1927 = vmatprep.mubr.f32.mxu0 0.0
        %v1928 = vand.u32 %v1430, 4294901760
        %1929 = vmatmul.mubr.f32.gmra.mrb[0].mxu0 %v1928
        %v1930 = vpop.f32.mrb[0].mxu0
        %v1931 = vadd.f32 %v1852, %v1930
        %v1932 = vpop.f32.mrb[0].mxu0
        %1933 = vdwg.mxu0
        %v1935 = vsel %vm409, %v391, 0
        %v1938 = vsel %vm409, %v392, 0
        %1940 = vmatprep.subr.mxu0 0.0
        %v1941 = vand.u32 %v397, 4294901760
        %1942 = vmatpush1.msra.mxu0 %v1941
        %1943 = vmatprep.subr.mxu0 0.0
        %v1944 = vand.u32 %v398, 4294901760
        %1945 = vmatpush1.msra.mxu0 %v1944
        %1946 = vmatprep.subr.mxu0 0.0
        %1947 = vmatpush1.msra.mxu0 0.0
        %1948 = vmatprep.subr.mxu0 0.0
        %1949 = vmatpush1.msra.mxu0 0.0
        %1950 = vmatprep.subr.mxu0 0.0
        %1951 = vmatpush1.msra.mxu0 0.0
        %1952 = vmatprep.subr.mxu0 0.0
        %1953 = vmatpush1.msra.mxu0 0.0
        %1954 = vmatprep.subr.mxu0 0.0
        %1955 = vmatpush1.msra.mxu0 0.0
        %1956 = vmatprep.subr.mxu0 0.0
        %1957 = vmatpush1.msra.mxu0 0.0
        %1958 = vmatprep.subr.mxu0 0.0
        %1959 = vmatpush1.msra.mxu0 0.0
        %1960 = vmatprep.subr.mxu0 0.0
        %1961 = vmatpush1.msra.mxu0 0.0
        %1962 = vmatprep.subr.mxu0 0.0
        %1963 = vmatpush1.msra.mxu0 0.0
        %1964 = vmatprep.subr.mxu0 0.0
        %1965 = vmatpush1.msra.mxu0 0.0
        %1966 = vmatprep.subr.mxu0 0.0
        %1967 = vmatpush1.msra.mxu0 0.0
        %1968 = vmatprep.subr.mxu0 0.0
        %1969 = vmatpush1.msra.mxu0 0.0
        %1970 = vmatprep.subr.mxu0 0.0
        %1971 = vmatpush1.msra.mxu0 0.0
        %1972 = vmatprep.subr.mxu0 0.0
        %1973 = vmatpush1.msra.mxu0 0.0
        %1974 = vmatprep.subr.mxu0 0.0
        %1975 = vmatpush1.msra.mxu0 0.0
        %1976 = vmatprep.subr.mxu0 0.0
        %1977 = vmatpush1.msra.mxu0 0.0
        %1978 = vmatprep.subr.mxu0 0.0
        %1979 = vmatpush1.msra.mxu0 0.0
        %1980 = vmatprep.subr.mxu0 0.0
        %1981 = vmatpush1.msra.mxu0 0.0
        %1982 = vmatprep.subr.mxu0 0.0
        %1983 = vmatpush1.msra.mxu0 0.0
        %1984 = vmatprep.subr.mxu0 0.0
        %1985 = vmatpush1.msra.mxu0 0.0
        %1986 = vmatprep.subr.mxu0 0.0
        %1987 = vmatpush1.msra.mxu0 0.0
        %1988 = vmatprep.subr.mxu0 0.0
        %1989 = vmatpush1.msra.mxu0 0.0
        %1990 = vmatprep.subr.mxu0 0.0
        %1991 = vmatpush1.msra.mxu0 0.0
        %1992 = vmatprep.subr.mxu0 0.0
        %1993 = vmatpush1.msra.mxu0 0.0
        %1994 = vmatprep.subr.mxu0 0.0
        %1995 = vmatpush1.msra.mxu0 0.0
        %1996 = vmatprep.subr.mxu0 0.0
        %1997 = vmatpush1.msra.mxu0 0.0
        %1998 = vmatprep.subr.mxu0 0.0
        %1999 = vmatpush1.msra.mxu0 0.0
        %2000 = vmatprep.subr.mxu0 0.0
        %2001 = vmatpush1.msra.mxu0 0.0
        %2002 = vmatprep.subr.mxu0 0.0
        %2003 = vmatpush1.msra.mxu0 0.0
        %2004 = vmatprep.subr.mxu0 0.0
        %2005 = vmatpush1.msra.mxu0 0.0
        %2006 = vmatprep.mubr.f32.mxu0 0.0
        %v2007 = vand.u32 %v1935, 4294901760
        %v2008 = vsub.f32 %v1935, %v2007
        %v2009 = vand.u32 %v2008, 4294901760
        %v2010 = vsub.f32 %v2008, %v2009
        %v2011 = vand.u32 %v2010, 4294901760
        %2012 = vmatmul.mubr.f32.gmra.mrb[0].mxu0 %v2011
        %v2013 = vpop.f32.mrb[0].mxu0
        %v2014 = vadd.f32 %v1925, %v2013
        %v2015 = vpop.f32.mrb[0].mxu0
        %2016 = vmatprep.mubr.f32.mxu0 0.0
        %v2017 = vand.u32 %v1938, 4294901760
        %v2018 = vsub.f32 %v1938, %v2017
        %v2019 = vand.u32 %v2018, 4294901760
        %v2020 = vsub.f32 %v2018, %v2019
        %v2021 = vand.u32 %v2020, 4294901760
        %2022 = vmatmul.mubr.f32.gmra.mrb[0].mxu0 %v2021
        %v2023 = vpop.f32.mrb[0].mxu0
        %v2024 = vadd.f32 %v1931, %v2023
        %v2025 = vpop.f32.mrb[0].mxu0
        %2026 = vdwg.mxu0
        %2027 = vmatprep.subr.mxu0 0.0
        %v2028 = vand.u32 %v397, 4294901760
        %v2029 = vsub.f32 %v397, %v2028
        %v2030 = vand.u32 %v2029, 4294901760
        %v2031 = vsub.f32 %v2029, %v2030
        %v2032 = vand.u32 %v2031, 4294901760
        %2033 = vmatpush1.msra.mxu0 %v2032
        %2034 = vmatprep.subr.mxu0 0.0
        %v2035 = vand.u32 %v398, 4294901760
        %v2036 = vsub.f32 %v398, %v2035
        %v2037 = vand.u32 %v2036, 4294901760
        %v2038 = vsub.f32 %v2036, %v2037
        %v2039 = vand.u32 %v2038, 4294901760
        %2040 = vmatpush1.msra.mxu0 %v2039
        %2041 = vmatprep.subr.mxu0 0.0
        %2042 = vmatpush1.msra.mxu0 0.0
        %2043 = vmatprep.subr.mxu0 0.0
        %2044 = vmatpush1.msra.mxu0 0.0
        %2045 = vmatprep.subr.mxu0 0.0
        %2046 = vmatpush1.msra.mxu0 0.0
        %2047 = vmatprep.subr.mxu0 0.0
        %2048 = vmatpush1.msra.mxu0 0.0
        %2049 = vmatprep.subr.mxu0 0.0
        %2050 = vmatpush1.msra.mxu0 0.0
        %2051 = vmatprep.subr.mxu0 0.0
        %2052 = vmatpush1.msra.mxu0 0.0
        %2053 = vmatprep.subr.mxu0 0.0
        %2054 = vmatpush1.msra.mxu0 0.0
        %2055 = vmatprep.subr.mxu0 0.0
        %2056 = vmatpush1.msra.mxu0 0.0
        %2057 = vmatprep.subr.mxu0 0.0
        %2058 = vmatpush1.msra.mxu0 0.0
        %2059 = vmatprep.subr.mxu0 0.0
        %2060 = vmatpush1.msra.mxu0 0.0
        %2061 = vmatprep.subr.mxu0 0.0
        %2062 = vmatpush1.msra.mxu0 0.0
        %2063 = vmatprep.subr.mxu0 0.0
        %2064 = vmatpush1.msra.mxu0 0.0
        %2065 = vmatprep.subr.mxu0 0.0
        %2066 = vmatpush1.msra.mxu0 0.0
        %2067 = vmatprep.subr.mxu0 0.0
        %2068 = vmatpush1.msra.mxu0 0.0
        %2069 = vmatprep.subr.mxu0 0.0
        %2070 = vmatpush1.msra.mxu0 0.0
        %2071 = vmatprep.subr.mxu0 0.0
        %2072 = vmatpush1.msra.mxu0 0.0
        %2073 = vmatprep.subr.mxu0 0.0
        %2074 = vmatpush1.msra.mxu0 0.0
        %2075 = vmatprep.subr.mxu0 0.0
        %2076 = vmatpush1.msra.mxu0 0.0
        %2077 = vmatprep.subr.mxu0 0.0
        %2078 = vmatpush1.msra.mxu0 0.0
        %2079 = vmatprep.subr.mxu0 0.0
        %2080 = vmatpush1.msra.mxu0 0.0
        %2081 = vmatprep.subr.mxu0 0.0
        %2082 = vmatpush1.msra.mxu0 0.0
        %2083 = vmatprep.subr.mxu0 0.0
        %2084 = vmatpush1.msra.mxu0 0.0
        %2085 = vmatprep.subr.mxu0 0.0
        %2086 = vmatpush1.msra.mxu0 0.0
        %2087 = vmatprep.subr.mxu0 0.0
        %2088 = vmatpush1.msra.mxu0 0.0
        %2089 = vmatprep.subr.mxu0 0.0
        %2090 = vmatpush1.msra.mxu0 0.0
        %2091 = vmatprep.subr.mxu0 0.0
        %2092 = vmatpush1.msra.mxu0 0.0
        %2093 = vmatprep.subr.mxu0 0.0
        %2094 = vmatpush1.msra.mxu0 0.0
        %2095 = vmatprep.subr.mxu0 0.0
        %2096 = vmatpush1.msra.mxu0 0.0
        %2097 = vmatprep.subr.mxu0 0.0
        %2098 = vmatpush1.msra.mxu0 0.0
        %2099 = vmatprep.subr.mxu0 0.0
        %2100 = vmatpush1.msra.mxu0 0.0
        %2101 = vmatprep.mubr.f32.mxu0 0.0
        %v2102 = vand.u32 %v1935, 4294901760
        %2103 = vmatmul.mubr.f32.gmra.mrb[0].mxu0 %v2102
        %v2104 = vpop.f32.mrb[0].mxu0
        %v2105 = vadd.f32 %v2014, %v2104
        %v2106 = vpop.f32.mrb[0].mxu0
        %2107 = vmatprep.mubr.f32.mxu0 0.0
        %v2108 = vand.u32 %v1938, 4294901760
        %2109 = vmatmul.mubr.f32.gmra.mrb[0].mxu0 %v2108
        %v2110 = vpop.f32.mrb[0].mxu0
        %v2111 = vadd.f32 %v2024, %v2110
        %v2112 = vpop.f32.mrb[0].mxu0
        %2113 = vdwg.mxu0
        %2114 = vmatprep.subr.mxu0 0.0
        %v2115 = vand.u32 %v397, 4294901760
        %v2116 = vsub.f32 %v397, %v2115
        %2117 = vmatpush1.msra.mxu0 %v2116
        %2118 = vmatprep.subr.mxu0 0.0
        %v2119 = vand.u32 %v398, 4294901760
        %v2120 = vsub.f32 %v398, %v2119
        %2121 = vmatpush1.msra.mxu0 %v2120
        %2122 = vmatprep.subr.mxu0 0.0
        %2123 = vmatpush1.msra.mxu0 0.0
        %2124 = vmatprep.subr.mxu0 0.0
        %2125 = vmatpush1.msra.mxu0 0.0
        %2126 = vmatprep.subr.mxu0 0.0
        %2127 = vmatpush1.msra.mxu0 0.0
        %2128 = vmatprep.subr.mxu0 0.0
        %2129 = vmatpush1.msra.mxu0 0.0
        %2130 = vmatprep.subr.mxu0 0.0
        %2131 = vmatpush1.msra.mxu0 0.0
        %2132 = vmatprep.subr.mxu0 0.0
        %2133 = vmatpush1.msra.mxu0 0.0
        %2134 = vmatprep.subr.mxu0 0.0
        %2135 = vmatpush1.msra.mxu0 0.0
        %2136 = vmatprep.subr.mxu0 0.0
        %2137 = vmatpush1.msra.mxu0 0.0
        %2138 = vmatprep.subr.mxu0 0.0
        %2139 = vmatpush1.msra.mxu0 0.0
        %2140 = vmatprep.subr.mxu0 0.0
        %2141 = vmatpush1.msra.mxu0 0.0
        %2142 = vmatprep.subr.mxu0 0.0
        %2143 = vmatpush1.msra.mxu0 0.0
        %2144 = vmatprep.subr.mxu0 0.0
        %2145 = vmatpush1.msra.mxu0 0.0
        %2146 = vmatprep.subr.mxu0 0.0
        %2147 = vmatpush1.msra.mxu0 0.0
        %2148 = vmatprep.subr.mxu0 0.0
        %2149 = vmatpush1.msra.mxu0 0.0
        %2150 = vmatprep.subr.mxu0 0.0
        %2151 = vmatpush1.msra.mxu0 0.0
        %2152 = vmatprep.subr.mxu0 0.0
        %2153 = vmatpush1.msra.mxu0 0.0
        %2154 = vmatprep.subr.mxu0 0.0
        %2155 = vmatpush1.msra.mxu0 0.0
        %2156 = vmatprep.subr.mxu0 0.0
        %2157 = vmatpush1.msra.mxu0 0.0
        %2158 = vmatprep.subr.mxu0 0.0
        %2159 = vmatpush1.msra.mxu0 0.0
        %2160 = vmatprep.subr.mxu0 0.0
        %2161 = vmatpush1.msra.mxu0 0.0
        %2162 = vmatprep.subr.mxu0 0.0
        %2163 = vmatpush1.msra.mxu0 0.0
        %2164 = vmatprep.subr.mxu0 0.0
        %2165 = vmatpush1.msra.mxu0 0.0
        %2166 = vmatprep.subr.mxu0 0.0
        %2167 = vmatpush1.msra.mxu0 0.0
        %2168 = vmatprep.subr.mxu0 0.0
        %2169 = vmatpush1.msra.mxu0 0.0
        %2170 = vmatprep.subr.mxu0 0.0
        %2171 = vmatpush1.msra.mxu0 0.0
        %2172 = vmatprep.subr.mxu0 0.0
        %2173 = vmatpush1.msra.mxu0 0.0
        %2174 = vmatprep.subr.mxu0 0.0
        %2175 = vmatpush1.msra.mxu0 0.0
        %2176 = vmatprep.subr.mxu0 0.0
        %2177 = vmatpush1.msra.mxu0 0.0
        %2178 = vmatprep.subr.mxu0 0.0
        %2179 = vmatpush1.msra.mxu0 0.0
        %2180 = vmatprep.subr.mxu0 0.0
        %2181 = vmatpush1.msra.mxu0 0.0
        %2182 = vmatprep.mubr.f32.mxu0 0.0
        %v2183 = vand.u32 %v1935, 4294901760
        %v2184 = vsub.f32 %v1935, %v2183
        %2185 = vmatmul.mubr.f32.gmra.mrb[0].mxu0 %v2184
        %v2186 = vpop.f32.mrb[0].mxu0
        %v2187 = vadd.f32 %v2105, %v2186
        %v2188 = vpop.f32.mrb[0].mxu0
        %2189 = vmatprep.mubr.f32.mxu0 0.0
        %v2190 = vand.u32 %v1938, 4294901760
        %v2191 = vsub.f32 %v1938, %v2190
        %2192 = vmatmul.mubr.f32.gmra.mrb[0].mxu0 %v2191
        %v2193 = vpop.f32.mrb[0].mxu0
        %v2194 = vadd.f32 %v2111, %v2193
        %v2195 = vpop.f32.mrb[0].mxu0
        %2196 = vdwg.mxu0
        %2197 = vmatprep.subr.mxu0 0.0
        %v2198 = vand.u32 %v397, 4294901760
        %2199 = vmatpush1.msra.mxu0 %v2198
        %2200 = vmatprep.subr.mxu0 0.0
        %v2201 = vand.u32 %v398, 4294901760
        %2202 = vmatpush1.msra.mxu0 %v2201
        %2203 = vmatprep.subr.mxu0 0.0
        %2204 = vmatpush1.msra.mxu0 0.0
        %2205 = vmatprep.subr.mxu0 0.0
        %2206 = vmatpush1.msra.mxu0 0.0
        %2207 = vmatprep.subr.mxu0 0.0
        %2208 = vmatpush1.msra.mxu0 0.0
        %2209 = vmatprep.subr.mxu0 0.0
        %2210 = vmatpush1.msra.mxu0 0.0
        %2211 = vmatprep.subr.mxu0 0.0
        %2212 = vmatpush1.msra.mxu0 0.0
        %2213 = vmatprep.subr.mxu0 0.0
        %2214 = vmatpush1.msra.mxu0 0.0
        %2215 = vmatprep.subr.mxu0 0.0
        %2216 = vmatpush1.msra.mxu0 0.0
        %2217 = vmatprep.subr.mxu0 0.0
        %2218 = vmatpush1.msra.mxu0 0.0
        %2219 = vmatprep.subr.mxu0 0.0
        %2220 = vmatpush1.msra.mxu0 0.0
        %2221 = vmatprep.subr.mxu0 0.0
        %2222 = vmatpush1.msra.mxu0 0.0
        %2223 = vmatprep.subr.mxu0 0.0
        %2224 = vmatpush1.msra.mxu0 0.0
        %2225 = vmatprep.subr.mxu0 0.0
        %2226 = vmatpush1.msra.mxu0 0.0
        %2227 = vmatprep.subr.mxu0 0.0
        %2228 = vmatpush1.msra.mxu0 0.0
        %2229 = vmatprep.subr.mxu0 0.0
        %2230 = vmatpush1.msra.mxu0 0.0
        %2231 = vmatprep.subr.mxu0 0.0
        %2232 = vmatpush1.msra.mxu0 0.0
        %2233 = vmatprep.subr.mxu0 0.0
        %2234 = vmatpush1.msra.mxu0 0.0
        %2235 = vmatprep.subr.mxu0 0.0
        %2236 = vmatpush1.msra.mxu0 0.0
        %2237 = vmatprep.subr.mxu0 0.0
        %2238 = vmatpush1.msra.mxu0 0.0
        %2239 = vmatprep.subr.mxu0 0.0
        %2240 = vmatpush1.msra.mxu0 0.0
        %2241 = vmatprep.subr.mxu0 0.0
        %2242 = vmatpush1.msra.mxu0 0.0
        %2243 = vmatprep.subr.mxu0 0.0
        %2244 = vmatpush1.msra.mxu0 0.0
        %2245 = vmatprep.subr.mxu0 0.0
        %2246 = vmatpush1.msra.mxu0 0.0
        %2247 = vmatprep.subr.mxu0 0.0
        %2248 = vmatpush1.msra.mxu0 0.0
        %2249 = vmatprep.subr.mxu0 0.0
        %2250 = vmatpush1.msra.mxu0 0.0
        %2251 = vmatprep.subr.mxu0 0.0
        %2252 = vmatpush1.msra.mxu0 0.0
        %2253 = vmatprep.subr.mxu0 0.0
        %2254 = vmatpush1.msra.mxu0 0.0
        %2255 = vmatprep.subr.mxu0 0.0
        %2256 = vmatpush1.msra.mxu0 0.0
        %2257 = vmatprep.subr.mxu0 0.0
        %2258 = vmatpush1.msra.mxu0 0.0
        %2259 = vmatprep.subr.mxu0 0.0
        %2260 = vmatpush1.msra.mxu0 0.0
        %2261 = vmatprep.subr.mxu0 0.0
        %2262 = vmatpush1.msra.mxu0 0.0
        %2263 = vmatprep.mubr.f32.mxu0 0.0
        %v2264 = vand.u32 %v1935, 4294901760
        %v2265 = vsub.f32 %v1935, %v2264
        %v2266 = vand.u32 %v2265, 4294901760
        %2267 = vmatmul.mubr.f32.gmra.mrb[0].mxu0 %v2266
        %v2268 = vpop.f32.mrb[0].mxu0
        %v2269 = vadd.f32 %v2187, %v2268
        %v2270 = vpop.f32.mrb[0].mxu0
        %2271 = vmatprep.mubr.f32.mxu0 0.0
        %v2272 = vand.u32 %v1938, 4294901760
        %v2273 = vsub.f32 %v1938, %v2272
        %v2274 = vand.u32 %v2273, 4294901760
        %2275 = vmatmul.mubr.f32.gmra.mrb[0].mxu0 %v2274
        %v2276 = vpop.f32.mrb[0].mxu0
        %v2277 = vadd.f32 %v2194, %v2276
        %v2278 = vpop.f32.mrb[0].mxu0
        %2279 = vdwg.mxu0
        %2280 = vmatprep.subr.mxu0 0.0
        %v2281 = vand.u32 %v397, 4294901760
        %v2282 = vsub.f32 %v397, %v2281
        %v2283 = vand.u32 %v2282, 4294901760
        %2284 = vmatpush1.msra.mxu0 %v2283
        %2285 = vmatprep.subr.mxu0 0.0
        %v2286 = vand.u32 %v398, 4294901760
        %v2287 = vsub.f32 %v398, %v2286
        %v2288 = vand.u32 %v2287, 4294901760
        %2289 = vmatpush1.msra.mxu0 %v2288
        %2290 = vmatprep.subr.mxu0 0.0
        %2291 = vmatpush1.msra.mxu0 0.0
        %2292 = vmatprep.subr.mxu0 0.0
        %2293 = vmatpush1.msra.mxu0 0.0
        %2294 = vmatprep.subr.mxu0 0.0
        %2295 = vmatpush1.msra.mxu0 0.0
        %2296 = vmatprep.subr.mxu0 0.0
        %2297 = vmatpush1.msra.mxu0 0.0
        %2298 = vmatprep.subr.mxu0 0.0
        %2299 = vmatpush1.msra.mxu0 0.0
        %2300 = vmatprep.subr.mxu0 0.0
        %2301 = vmatpush1.msra.mxu0 0.0
        %2302 = vmatprep.subr.mxu0 0.0
        %2303 = vmatpush1.msra.mxu0 0.0
        %2304 = vmatprep.subr.mxu0 0.0
        %2305 = vmatpush1.msra.mxu0 0.0
        %2306 = vmatprep.subr.mxu0 0.0
        %2307 = vmatpush1.msra.mxu0 0.0
        %2308 = vmatprep.subr.mxu0 0.0
        %2309 = vmatpush1.msra.mxu0 0.0
        %2310 = vmatprep.subr.mxu0 0.0
        %2311 = vmatpush1.msra.mxu0 0.0
        %2312 = vmatprep.subr.mxu0 0.0
        %2313 = vmatpush1.msra.mxu0 0.0
        %2314 = vmatprep.subr.mxu0 0.0
        %2315 = vmatpush1.msra.mxu0 0.0
        %2316 = vmatprep.subr.mxu0 0.0
        %2317 = vmatpush1.msra.mxu0 0.0
        %2318 = vmatprep.subr.mxu0 0.0
        %2319 = vmatpush1.msra.mxu0 0.0
        %2320 = vmatprep.subr.mxu0 0.0
        %2321 = vmatpush1.msra.mxu0 0.0
        %2322 = vmatprep.subr.mxu0 0.0
        %2323 = vmatpush1.msra.mxu0 0.0
        %2324 = vmatprep.subr.mxu0 0.0
        %2325 = vmatpush1.msra.mxu0 0.0
        %2326 = vmatprep.subr.mxu0 0.0
        %2327 = vmatpush1.msra.mxu0 0.0
        %2328 = vmatprep.subr.mxu0 0.0
        %2329 = vmatpush1.msra.mxu0 0.0
        %2330 = vmatprep.subr.mxu0 0.0
        %2331 = vmatpush1.msra.mxu0 0.0
        %2332 = vmatprep.subr.mxu0 0.0
        %2333 = vmatpush1.msra.mxu0 0.0
        %2334 = vmatprep.subr.mxu0 0.0
        %2335 = vmatpush1.msra.mxu0 0.0
        %2336 = vmatprep.subr.mxu0 0.0
        %2337 = vmatpush1.msra.mxu0 0.0
        %2338 = vmatprep.subr.mxu0 0.0
        %2339 = vmatpush1.msra.mxu0 0.0
        %2340 = vmatprep.subr.mxu0 0.0
        %2341 = vmatpush1.msra.mxu0 0.0
        %2342 = vmatprep.subr.mxu0 0.0
        %2343 = vmatpush1.msra.mxu0 0.0
        %2344 = vmatprep.subr.mxu0 0.0
        %2345 = vmatpush1.msra.mxu0 0.0
        %2346 = vmatprep.subr.mxu0 0.0
        %2347 = vmatpush1.msra.mxu0 0.0
        %2348 = vmatprep.subr.mxu0 0.0
        %2349 = vmatpush1.msra.mxu0 0.0
        %2350 = vmatprep.mubr.f32.mxu0 0.0
        %v2351 = vand.u32 %v1935, 4294901760
        %2352 = vmatmul.mubr.f32.gmra.mrb[0].mxu0 %v2351
        %v2353 = vpop.f32.mrb[0].mxu0
        %v2354 = vadd.f32 %v2269, %v2353
        %v2355 = vpop.f32.mrb[0].mxu0
        %2356 = vmatprep.mubr.f32.mxu0 0.0
        %v2357 = vand.u32 %v1938, 4294901760
        %2358 = vmatmul.mubr.f32.gmra.mrb[0].mxu0 %v2357
        %v2359 = vpop.f32.mrb[0].mxu0
        %v2360 = vadd.f32 %v2277, %v2359
        %v2361 = vpop.f32.mrb[0].mxu0
        %2362 = vdwg.mxu0
        %2363 = vmatprep.subr.mxu0 0.0
        %v2364 = vand.u32 %v397, 4294901760
        %2365 = vmatpush1.msra.mxu0 %v2364
        %2366 = vmatprep.subr.mxu0 0.0
        %v2367 = vand.u32 %v398, 4294901760
        %2368 = vmatpush1.msra.mxu0 %v2367
        %2369 = vmatprep.subr.mxu0 0.0
        %2370 = vmatpush1.msra.mxu0 0.0
        %2371 = vmatprep.subr.mxu0 0.0
        %2372 = vmatpush1.msra.mxu0 0.0
        %2373 = vmatprep.subr.mxu0 0.0
        %2374 = vmatpush1.msra.mxu0 0.0
        %2375 = vmatprep.subr.mxu0 0.0
        %2376 = vmatpush1.msra.mxu0 0.0
        %2377 = vmatprep.subr.mxu0 0.0
        %2378 = vmatpush1.msra.mxu0 0.0
        %2379 = vmatprep.subr.mxu0 0.0
        %2380 = vmatpush1.msra.mxu0 0.0
        %2381 = vmatprep.subr.mxu0 0.0
        %2382 = vmatpush1.msra.mxu0 0.0
        %2383 = vmatprep.subr.mxu0 0.0
        %2384 = vmatpush1.msra.mxu0 0.0
        %2385 = vmatprep.subr.mxu0 0.0
        %2386 = vmatpush1.msra.mxu0 0.0
        %2387 = vmatprep.subr.mxu0 0.0
        %2388 = vmatpush1.msra.mxu0 0.0
        %2389 = vmatprep.subr.mxu0 0.0
        %2390 = vmatpush1.msra.mxu0 0.0
        %2391 = vmatprep.subr.mxu0 0.0
        %2392 = vmatpush1.msra.mxu0 0.0
        %2393 = vmatprep.subr.mxu0 0.0
        %2394 = vmatpush1.msra.mxu0 0.0
        %2395 = vmatprep.subr.mxu0 0.0
        %2396 = vmatpush1.msra.mxu0 0.0
        %2397 = vmatprep.subr.mxu0 0.0
        %2398 = vmatpush1.msra.mxu0 0.0
        %2399 = vmatprep.subr.mxu0 0.0
        %2400 = vmatpush1.msra.mxu0 0.0
        %2401 = vmatprep.subr.mxu0 0.0
        %2402 = vmatpush1.msra.mxu0 0.0
        %2403 = vmatprep.subr.mxu0 0.0
        %2404 = vmatpush1.msra.mxu0 0.0
        %2405 = vmatprep.subr.mxu0 0.0
        %2406 = vmatpush1.msra.mxu0 0.0
        %2407 = vmatprep.subr.mxu0 0.0
        %2408 = vmatpush1.msra.mxu0 0.0
        %2409 = vmatprep.subr.mxu0 0.0
        %2410 = vmatpush1.msra.mxu0 0.0
        %2411 = vmatprep.subr.mxu0 0.0
        %2412 = vmatpush1.msra.mxu0 0.0
        %2413 = vmatprep.subr.mxu0 0.0
        %2414 = vmatpush1.msra.mxu0 0.0
        %2415 = vmatprep.subr.mxu0 0.0
        %2416 = vmatpush1.msra.mxu0 0.0
        %2417 = vmatprep.subr.mxu0 0.0
        %2418 = vmatpush1.msra.mxu0 0.0
        %2419 = vmatprep.subr.mxu0 0.0
        %2420 = vmatpush1.msra.mxu0 0.0
        %2421 = vmatprep.subr.mxu0 0.0
        %2422 = vmatpush1.msra.mxu0 0.0
        %2423 = vmatprep.subr.mxu0 0.0
        %2424 = vmatpush1.msra.mxu0 0.0
        %2425 = vmatprep.subr.mxu0 0.0
        %2426 = vmatpush1.msra.mxu0 0.0
        %2427 = vmatprep.subr.mxu0 0.0
        %2428 = vmatpush1.msra.mxu0 0.0
        %2429 = vmatprep.mubr.f32.mxu0 0.0
        %v2430 = vand.u32 %v1935, 4294901760
        %2431 = vmatmul.mubr.f32.gmra.mrb[0].mxu0 %v2430
        %v2432 = vpop.f32.mrb[0].mxu0
        %v2433 = vadd.f32 %v2354, %v2432
        %v2434 = vpop.f32.mrb[0].mxu0
        %2435 = vmatprep.mubr.f32.mxu0 0.0
        %v2436 = vand.u32 %v1938, 4294901760
        %2437 = vmatmul.mubr.f32.gmra.mrb[0].mxu0 %v2436
        %v2438 = vpop.f32.mrb[0].mxu0
        %v2439 = vadd.f32 %v2360, %v2438
        %v2440 = vpop.f32.mrb[0].mxu0
        %2441 = vdwg.mxu0
        %v2443 = vsel %vm409, %v405, 0
        %v2446 = vsel %vm409, %v406, 0
        %v2449 = vsel %vm409, %v407, 0
        %v2452 = vsel %vm409, %v408, 0
        %2454 = vmatprep.subr.mxu0 0.0
        %v2455 = vand.u32 %v2433, 4294901760
        %2456 = vmatpush1.msra.mxu0 %v2455
        %2457 = vmatprep.subr.mxu0 0.0
        %v2458 = vand.u32 %v2439, 4294901760
        %2459 = vmatpush1.msra.mxu0 %v2458
        %2460 = vmatprep.subr.mxu0 0.0
        %2461 = vmatpush1.msra.mxu0 0.0
        %2462 = vmatprep.subr.mxu0 0.0
        %2463 = vmatpush1.msra.mxu0 0.0
        %2464 = vmatprep.subr.mxu0 0.0
        %2465 = vmatpush1.msra.mxu0 0.0
        %2466 = vmatprep.subr.mxu0 0.0
        %2467 = vmatpush1.msra.mxu0 0.0
        %2468 = vmatprep.subr.mxu0 0.0
        %2469 = vmatpush1.msra.mxu0 0.0
        %2470 = vmatprep.subr.mxu0 0.0
        %2471 = vmatpush1.msra.mxu0 0.0
        %2472 = vmatprep.subr.mxu0 0.0
        %2473 = vmatpush1.msra.mxu0 0.0
        %2474 = vmatprep.subr.mxu0 0.0
        %2475 = vmatpush1.msra.mxu0 0.0
        %2476 = vmatprep.subr.mxu0 0.0
        %2477 = vmatpush1.msra.mxu0 0.0
        %2478 = vmatprep.subr.mxu0 0.0
        %2479 = vmatpush1.msra.mxu0 0.0
        %2480 = vmatprep.subr.mxu0 0.0
        %2481 = vmatpush1.msra.mxu0 0.0
        %2482 = vmatprep.subr.mxu0 0.0
        %2483 = vmatpush1.msra.mxu0 0.0
        %2484 = vmatprep.subr.mxu0 0.0
        %2485 = vmatpush1.msra.mxu0 0.0
        %2486 = vmatprep.subr.mxu0 0.0
        %2487 = vmatpush1.msra.mxu0 0.0
        %2488 = vmatprep.subr.mxu0 0.0
        %2489 = vmatpush1.msra.mxu0 0.0
        %2490 = vmatprep.subr.mxu0 0.0
        %2491 = vmatpush1.msra.mxu0 0.0
        %2492 = vmatprep.subr.mxu0 0.0
        %2493 = vmatpush1.msra.mxu0 0.0
        %2494 = vmatprep.subr.mxu0 0.0
        %2495 = vmatpush1.msra.mxu0 0.0
        %2496 = vmatprep.subr.mxu0 0.0
        %2497 = vmatpush1.msra.mxu0 0.0
        %2498 = vmatprep.subr.mxu0 0.0
        %2499 = vmatpush1.msra.mxu0 0.0
        %2500 = vmatprep.subr.mxu0 0.0
        %2501 = vmatpush1.msra.mxu0 0.0
        %2502 = vmatprep.subr.mxu0 0.0
        %2503 = vmatpush1.msra.mxu0 0.0
        %2504 = vmatprep.subr.mxu0 0.0
        %2505 = vmatpush1.msra.mxu0 0.0
        %2506 = vmatprep.subr.mxu0 0.0
        %2507 = vmatpush1.msra.mxu0 0.0
        %2508 = vmatprep.subr.mxu0 0.0
        %2509 = vmatpush1.msra.mxu0 0.0
        %2510 = vmatprep.subr.mxu0 0.0
        %2511 = vmatpush1.msra.mxu0 0.0
        %2512 = vmatprep.subr.mxu0 0.0
        %2513 = vmatpush1.msra.mxu0 0.0
        %2514 = vmatprep.subr.mxu0 0.0
        %2515 = vmatpush1.msra.mxu0 0.0
        %2516 = vmatprep.subr.mxu0 0.0
        %2517 = vmatpush1.msra.mxu0 0.0
        %2518 = vmatprep.subr.mxu0 0.0
        %2519 = vmatpush1.msra.mxu0 0.0
        %2520 = vmatprep.mubr.f32.mxu0 0.0
        %v2521 = vand.u32 %v2443, 4294901760
        %v2522 = vsub.f32 %v2443, %v2521
        %v2523 = vand.u32 %v2522, 4294901760
        %v2524 = vsub.f32 %v2522, %v2523
        %v2525 = vand.u32 %v2524, 4294901760
        %2526 = vmatmul.mubr.f32.gmra.mrb[0].mxu0 %v2525
        %v2527 = vpop.f32.mrb[0].mxu0
        %v2528 = vadd.f32 0.0, %v2527
        %v2529 = vpop.f32.mrb[0].mxu0
        %2530 = vmatprep.mubr.f32.mxu0 0.0
        %v2531 = vand.u32 %v2446, 4294901760
        %v2532 = vsub.f32 %v2446, %v2531
        %v2533 = vand.u32 %v2532, 4294901760
        %v2534 = vsub.f32 %v2532, %v2533
        %v2535 = vand.u32 %v2534, 4294901760
        %2536 = vmatmul.mubr.f32.gmra.mrb[0].mxu0 %v2535
        %v2537 = vpop.f32.mrb[0].mxu0
        %v2538 = vadd.f32 0.0, %v2537
        %v2539 = vpop.f32.mrb[0].mxu0
        %2540 = vmatprep.mubr.f32.mxu0 0.0
        %v2541 = vand.u32 %v2449, 4294901760
        %v2542 = vsub.f32 %v2449, %v2541
        %v2543 = vand.u32 %v2542, 4294901760
        %v2544 = vsub.f32 %v2542, %v2543
        %v2545 = vand.u32 %v2544, 4294901760
        %2546 = vmatmul.mubr.f32.gmra.mrb[0].mxu0 %v2545
        %v2547 = vpop.f32.mrb[0].mxu0
        %v2548 = vadd.f32 0.0, %v2547
        %v2549 = vpop.f32.mrb[0].mxu0
        %2550 = vmatprep.mubr.f32.mxu0 0.0
        %v2551 = vand.u32 %v2452, 4294901760
        %v2552 = vsub.f32 %v2452, %v2551
        %v2553 = vand.u32 %v2552, 4294901760
        %v2554 = vsub.f32 %v2552, %v2553
        %v2555 = vand.u32 %v2554, 4294901760
        %2556 = vmatmul.mubr.f32.gmra.mrb[0].mxu0 %v2555
        %v2557 = vpop.f32.mrb[0].mxu0
        %v2558 = vadd.f32 0.0, %v2557
        %v2559 = vpop.f32.mrb[0].mxu0
        %2560 = vdwg.mxu0
        %2561 = vmatprep.subr.mxu0 0.0
        %v2562 = vand.u32 %v2433, 4294901760
        %v2563 = vsub.f32 %v2433, %v2562
        %v2564 = vand.u32 %v2563, 4294901760
        %v2565 = vsub.f32 %v2563, %v2564
        %v2566 = vand.u32 %v2565, 4294901760
        %2567 = vmatpush1.msra.mxu0 %v2566
        %2568 = vmatprep.subr.mxu0 0.0
        %v2569 = vand.u32 %v2439, 4294901760
        %v2570 = vsub.f32 %v2439, %v2569
        %v2571 = vand.u32 %v2570, 4294901760
        %v2572 = vsub.f32 %v2570, %v2571
        %v2573 = vand.u32 %v2572, 4294901760
        %2574 = vmatpush1.msra.mxu0 %v2573
        %2575 = vmatprep.subr.mxu0 0.0
        %2576 = vmatpush1.msra.mxu0 0.0
        %2577 = vmatprep.subr.mxu0 0.0
        %2578 = vmatpush1.msra.mxu0 0.0
        %2579 = vmatprep.subr.mxu0 0.0
        %2580 = vmatpush1.msra.mxu0 0.0
        %2581 = vmatprep.subr.mxu0 0.0
        %2582 = vmatpush1.msra.mxu0 0.0
        %2583 = vmatprep.subr.mxu0 0.0
        %2584 = vmatpush1.msra.mxu0 0.0
        %2585 = vmatprep.subr.mxu0 0.0
        %2586 = vmatpush1.msra.mxu0 0.0
        %2587 = vmatprep.subr.mxu0 0.0
        %2588 = vmatpush1.msra.mxu0 0.0
        %2589 = vmatprep.subr.mxu0 0.0
        %2590 = vmatpush1.msra.mxu0 0.0
        %2591 = vmatprep.subr.mxu0 0.0
        %2592 = vmatpush1.msra.mxu0 0.0
        %2593 = vmatprep.subr.mxu0 0.0
        %2594 = vmatpush1.msra.mxu0 0.0
        %2595 = vmatprep.subr.mxu0 0.0
        %2596 = vmatpush1.msra.mxu0 0.0
        %2597 = vmatprep.subr.mxu0 0.0
        %2598 = vmatpush1.msra.mxu0 0.0
        %2599 = vmatprep.subr.mxu0 0.0
        %2600 = vmatpush1.msra.mxu0 0.0
        %2601 = vmatprep.subr.mxu0 0.0
        %2602 = vmatpush1.msra.mxu0 0.0
        %2603 = vmatprep.subr.mxu0 0.0
        %2604 = vmatpush1.msra.mxu0 0.0
        %2605 = vmatprep.subr.mxu0 0.0
        %2606 = vmatpush1.msra.mxu0 0.0
        %2607 = vmatprep.subr.mxu0 0.0
        %2608 = vmatpush1.msra.mxu0 0.0
        %2609 = vmatprep.subr.mxu0 0.0
        %2610 = vmatpush1.msra.mxu0 0.0
        %2611 = vmatprep.subr.mxu0 0.0
        %2612 = vmatpush1.msra.mxu0 0.0
        %2613 = vmatprep.subr.mxu0 0.0
        %2614 = vmatpush1.msra.mxu0 0.0
        %2615 = vmatprep.subr.mxu0 0.0
        %2616 = vmatpush1.msra.mxu0 0.0
        %2617 = vmatprep.subr.mxu0 0.0
        %2618 = vmatpush1.msra.mxu0 0.0
        %2619 = vmatprep.subr.mxu0 0.0
        %2620 = vmatpush1.msra.mxu0 0.0
        %2621 = vmatprep.subr.mxu0 0.0
        %2622 = vmatpush1.msra.mxu0 0.0
        %2623 = vmatprep.subr.mxu0 0.0
        %2624 = vmatpush1.msra.mxu0 0.0
        %2625 = vmatprep.subr.mxu0 0.0
        %2626 = vmatpush1.msra.mxu0 0.0
        %2627 = vmatprep.subr.mxu0 0.0
        %2628 = vmatpush1.msra.mxu0 0.0
        %2629 = vmatprep.subr.mxu0 0.0
        %2630 = vmatpush1.msra.mxu0 0.0
        %2631 = vmatprep.subr.mxu0 0.0
        %2632 = vmatpush1.msra.mxu0 0.0
        %2633 = vmatprep.subr.mxu0 0.0
        %2634 = vmatpush1.msra.mxu0 0.0
        %2635 = vmatprep.mubr.f32.mxu0 0.0
        %v2636 = vand.u32 %v2443, 4294901760
        %2637 = vmatmul.mubr.f32.gmra.mrb[0].mxu0 %v2636
        %v2638 = vpop.f32.mrb[0].mxu0
        %v2639 = vadd.f32 %v2528, %v2638
        %v2640 = vpop.f32.mrb[0].mxu0
        %2641 = vmatprep.mubr.f32.mxu0 0.0
        %v2642 = vand.u32 %v2446, 4294901760
        %2643 = vmatmul.mubr.f32.gmra.mrb[0].mxu0 %v2642
        %v2644 = vpop.f32.mrb[0].mxu0
        %v2645 = vadd.f32 %v2538, %v2644
        %v2646 = vpop.f32.mrb[0].mxu0
        %2647 = vmatprep.mubr.f32.mxu0 0.0
        %v2648 = vand.u32 %v2449, 4294901760
        %2649 = vmatmul.mubr.f32.gmra.mrb[0].mxu0 %v2648
        %v2650 = vpop.f32.mrb[0].mxu0
        %v2651 = vadd.f32 %v2548, %v2650
        %v2652 = vpop.f32.mrb[0].mxu0
        %2653 = vmatprep.mubr.f32.mxu0 0.0
        %v2654 = vand.u32 %v2452, 4294901760
        %2655 = vmatmul.mubr.f32.gmra.mrb[0].mxu0 %v2654
        %v2656 = vpop.f32.mrb[0].mxu0
        %v2657 = vadd.f32 %v2558, %v2656
        %v2658 = vpop.f32.mrb[0].mxu0
        %2659 = vdwg.mxu0
        %2660 = vmatprep.subr.mxu0 0.0
        %v2661 = vand.u32 %v2433, 4294901760
        %v2662 = vsub.f32 %v2433, %v2661
        %2663 = vmatpush1.msra.mxu0 %v2662
        %2664 = vmatprep.subr.mxu0 0.0
        %v2665 = vand.u32 %v2439, 4294901760
        %v2666 = vsub.f32 %v2439, %v2665
        %2667 = vmatpush1.msra.mxu0 %v2666
        %2668 = vmatprep.subr.mxu0 0.0
        %2669 = vmatpush1.msra.mxu0 0.0
        %2670 = vmatprep.subr.mxu0 0.0
        %2671 = vmatpush1.msra.mxu0 0.0
        %2672 = vmatprep.subr.mxu0 0.0
        %2673 = vmatpush1.msra.mxu0 0.0
        %2674 = vmatprep.subr.mxu0 0.0
        %2675 = vmatpush1.msra.mxu0 0.0
        %2676 = vmatprep.subr.mxu0 0.0
        %2677 = vmatpush1.msra.mxu0 0.0
        %2678 = vmatprep.subr.mxu0 0.0
        %2679 = vmatpush1.msra.mxu0 0.0
        %2680 = vmatprep.subr.mxu0 0.0
        %2681 = vmatpush1.msra.mxu0 0.0
        %2682 = vmatprep.subr.mxu0 0.0
        %2683 = vmatpush1.msra.mxu0 0.0
        %2684 = vmatprep.subr.mxu0 0.0
        %2685 = vmatpush1.msra.mxu0 0.0
        %2686 = vmatprep.subr.mxu0 0.0
        %2687 = vmatpush1.msra.mxu0 0.0
        %2688 = vmatprep.subr.mxu0 0.0
        %2689 = vmatpush1.msra.mxu0 0.0
        %2690 = vmatprep.subr.mxu0 0.0
        %2691 = vmatpush1.msra.mxu0 0.0
        %2692 = vmatprep.subr.mxu0 0.0
        %2693 = vmatpush1.msra.mxu0 0.0
        %2694 = vmatprep.subr.mxu0 0.0
        %2695 = vmatpush1.msra.mxu0 0.0
        %2696 = vmatprep.subr.mxu0 0.0
        %2697 = vmatpush1.msra.mxu0 0.0
        %2698 = vmatprep.subr.mxu0 0.0
        %2699 = vmatpush1.msra.mxu0 0.0
        %2700 = vmatprep.subr.mxu0 0.0
        %2701 = vmatpush1.msra.mxu0 0.0
        %2702 = vmatprep.subr.mxu0 0.0
        %2703 = vmatpush1.msra.mxu0 0.0
        %2704 = vmatprep.subr.mxu0 0.0
        %2705 = vmatpush1.msra.mxu0 0.0
        %2706 = vmatprep.subr.mxu0 0.0
        %2707 = vmatpush1.msra.mxu0 0.0
        %2708 = vmatprep.subr.mxu0 0.0
        %2709 = vmatpush1.msra.mxu0 0.0
        %2710 = vmatprep.subr.mxu0 0.0
        %2711 = vmatpush1.msra.mxu0 0.0
        %2712 = vmatprep.subr.mxu0 0.0
        %2713 = vmatpush1.msra.mxu0 0.0
        %2714 = vmatprep.subr.mxu0 0.0
        %2715 = vmatpush1.msra.mxu0 0.0
        %2716 = vmatprep.subr.mxu0 0.0
        %2717 = vmatpush1.msra.mxu0 0.0
        %2718 = vmatprep.subr.mxu0 0.0
        %2719 = vmatpush1.msra.mxu0 0.0
        %2720 = vmatprep.subr.mxu0 0.0
        %2721 = vmatpush1.msra.mxu0 0.0
        %2722 = vmatprep.subr.mxu0 0.0
        %2723 = vmatpush1.msra.mxu0 0.0
        %2724 = vmatprep.subr.mxu0 0.0
        %2725 = vmatpush1.msra.mxu0 0.0
        %2726 = vmatprep.subr.mxu0 0.0
        %2727 = vmatpush1.msra.mxu0 0.0
        %2728 = vmatprep.mubr.f32.mxu0 0.0
        %v2729 = vand.u32 %v2443, 4294901760
        %v2730 = vsub.f32 %v2443, %v2729
        %2731 = vmatmul.mubr.f32.gmra.mrb[0].mxu0 %v2730
        %v2732 = vpop.f32.mrb[0].mxu0
        %v2733 = vadd.f32 %v2639, %v2732
        %v2734 = vpop.f32.mrb[0].mxu0
        %2735 = vmatprep.mubr.f32.mxu0 0.0
        %v2736 = vand.u32 %v2446, 4294901760
        %v2737 = vsub.f32 %v2446, %v2736
        %2738 = vmatmul.mubr.f32.gmra.mrb[0].mxu0 %v2737
        %v2739 = vpop.f32.mrb[0].mxu0
        %v2740 = vadd.f32 %v2645, %v2739
        %v2741 = vpop.f32.mrb[0].mxu0
        %2742 = vmatprep.mubr.f32.mxu0 0.0
        %v2743 = vand.u32 %v2449, 4294901760
        %v2744 = vsub.f32 %v2449, %v2743
        %2745 = vmatmul.mubr.f32.gmra.mrb[0].mxu0 %v2744
        %v2746 = vpop.f32.mrb[0].mxu0
        %v2747 = vadd.f32 %v2651, %v2746
        %v2748 = vpop.f32.mrb[0].mxu0
        %2749 = vmatprep.mubr.f32.mxu0 0.0
        %v2750 = vand.u32 %v2452, 4294901760
        %v2751 = vsub.f32 %v2452, %v2750
        %2752 = vmatmul.mubr.f32.gmra.mrb[0].mxu0 %v2751
        %v2753 = vpop.f32.mrb[0].mxu0
        %v2754 = vadd.f32 %v2657, %v2753
        %v2755 = vpop.f32.mrb[0].mxu0
        %2756 = vdwg.mxu0
        %2757 = vmatprep.subr.mxu0 0.0
        %v2758 = vand.u32 %v2433, 4294901760
        %2759 = vmatpush1.msra.mxu0 %v2758
        %2760 = vmatprep.subr.mxu0 0.0
        %v2761 = vand.u32 %v2439, 4294901760
        %2762 = vmatpush1.msra.mxu0 %v2761
        %2763 = vmatprep.subr.mxu0 0.0
        %2764 = vmatpush1.msra.mxu0 0.0
        %2765 = vmatprep.subr.mxu0 0.0
        %2766 = vmatpush1.msra.mxu0 0.0
        %2767 = vmatprep.subr.mxu0 0.0
        %2768 = vmatpush1.msra.mxu0 0.0
        %2769 = vmatprep.subr.mxu0 0.0
        %2770 = vmatpush1.msra.mxu0 0.0
        %2771 = vmatprep.subr.mxu0 0.0
        %2772 = vmatpush1.msra.mxu0 0.0
        %2773 = vmatprep.subr.mxu0 0.0
        %2774 = vmatpush1.msra.mxu0 0.0
        %2775 = vmatprep.subr.mxu0 0.0
        %2776 = vmatpush1.msra.mxu0 0.0
        %2777 = vmatprep.subr.mxu0 0.0
        %2778 = vmatpush1.msra.mxu0 0.0
        %2779 = vmatprep.subr.mxu0 0.0
        %2780 = vmatpush1.msra.mxu0 0.0
        %2781 = vmatprep.subr.mxu0 0.0
        %2782 = vmatpush1.msra.mxu0 0.0
        %2783 = vmatprep.subr.mxu0 0.0
        %2784 = vmatpush1.msra.mxu0 0.0
        %2785 = vmatprep.subr.mxu0 0.0
        %2786 = vmatpush1.msra.mxu0 0.0
        %2787 = vmatprep.subr.mxu0 0.0
        %2788 = vmatpush1.msra.mxu0 0.0
        %2789 = vmatprep.subr.mxu0 0.0
        %2790 = vmatpush1.msra.mxu0 0.0
        %2791 = vmatprep.subr.mxu0 0.0
        %2792 = vmatpush1.msra.mxu0 0.0
        %2793 = vmatprep.subr.mxu0 0.0
        %2794 = vmatpush1.msra.mxu0 0.0
        %2795 = vmatprep.subr.mxu0 0.0
        %2796 = vmatpush1.msra.mxu0 0.0
        %2797 = vmatprep.subr.mxu0 0.0
        %2798 = vmatpush1.msra.mxu0 0.0
        %2799 = vmatprep.subr.mxu0 0.0
        %2800 = vmatpush1.msra.mxu0 0.0
        %2801 = vmatprep.subr.mxu0 0.0
        %2802 = vmatpush1.msra.mxu0 0.0
        %2803 = vmatprep.subr.mxu0 0.0
        %2804 = vmatpush1.msra.mxu0 0.0
        %2805 = vmatprep.subr.mxu0 0.0
        %2806 = vmatpush1.msra.mxu0 0.0
        %2807 = vmatprep.subr.mxu0 0.0
        %2808 = vmatpush1.msra.mxu0 0.0
        %2809 = vmatprep.subr.mxu0 0.0
        %2810 = vmatpush1.msra.mxu0 0.0
        %2811 = vmatprep.subr.mxu0 0.0
        %2812 = vmatpush1.msra.mxu0 0.0
        %2813 = vmatprep.subr.mxu0 0.0
        %2814 = vmatpush1.msra.mxu0 0.0
        %2815 = vmatprep.subr.mxu0 0.0
        %2816 = vmatpush1.msra.mxu0 0.0
        %2817 = vmatprep.subr.mxu0 0.0
        %2818 = vmatpush1.msra.mxu0 0.0
        %2819 = vmatprep.subr.mxu0 0.0
        %2820 = vmatpush1.msra.mxu0 0.0
        %2821 = vmatprep.subr.mxu0 0.0
        %2822 = vmatpush1.msra.mxu0 0.0
        %2823 = vmatprep.mubr.f32.mxu0 0.0
        %v2824 = vand.u32 %v2443, 4294901760
        %v2825 = vsub.f32 %v2443, %v2824
        %v2826 = vand.u32 %v2825, 4294901760
        %2827 = vmatmul.mubr.f32.gmra.mrb[0].mxu0 %v2826
        %v2828 = vpop.f32.mrb[0].mxu0
        %v2829 = vadd.f32 %v2733, %v2828
        %v2830 = vpop.f32.mrb[0].mxu0
        %2831 = vmatprep.mubr.f32.mxu0 0.0
        %v2832 = vand.u32 %v2446, 4294901760
        %v2833 = vsub.f32 %v2446, %v2832
        %v2834 = vand.u32 %v2833, 4294901760
        %2835 = vmatmul.mubr.f32.gmra.mrb[0].mxu0 %v2834
        %v2836 = vpop.f32.mrb[0].mxu0
        %v2837 = vadd.f32 %v2740, %v2836
        %v2838 = vpop.f32.mrb[0].mxu0
        %2839 = vmatprep.mubr.f32.mxu0 0.0
        %v2840 = vand.u32 %v2449, 4294901760
        %v2841 = vsub.f32 %v2449, %v2840
        %v2842 = vand.u32 %v2841, 4294901760
        %2843 = vmatmul.mubr.f32.gmra.mrb[0].mxu0 %v2842
        %v2844 = vpop.f32.mrb[0].mxu0
        %v2845 = vadd.f32 %v2747, %v2844
        %v2846 = vpop.f32.mrb[0].mxu0
        %2847 = vmatprep.mubr.f32.mxu0 0.0
        %v2848 = vand.u32 %v2452, 4294901760
        %v2849 = vsub.f32 %v2452, %v2848
        %v2850 = vand.u32 %v2849, 4294901760
        %2851 = vmatmul.mubr.f32.gmra.mrb[0].mxu0 %v2850
        %v2852 = vpop.f32.mrb[0].mxu0
        %v2853 = vadd.f32 %v2754, %v2852
        %v2854 = vpop.f32.mrb[0].mxu0
        %2855 = vdwg.mxu0
        %2856 = vmatprep.subr.mxu0 0.0
        %v2857 = vand.u32 %v2433, 4294901760
        %v2858 = vsub.f32 %v2433, %v2857
        %v2859 = vand.u32 %v2858, 4294901760
        %2860 = vmatpush1.msra.mxu0 %v2859
        %2861 = vmatprep.subr.mxu0 0.0
        %v2862 = vand.u32 %v2439, 4294901760
        %v2863 = vsub.f32 %v2439, %v2862
        %v2864 = vand.u32 %v2863, 4294901760
        %2865 = vmatpush1.msra.mxu0 %v2864
        %2866 = vmatprep.subr.mxu0 0.0
        %2867 = vmatpush1.msra.mxu0 0.0
        %2868 = vmatprep.subr.mxu0 0.0
        %2869 = vmatpush1.msra.mxu0 0.0
        %2870 = vmatprep.subr.mxu0 0.0
        %2871 = vmatpush1.msra.mxu0 0.0
        %2872 = vmatprep.subr.mxu0 0.0
        %2873 = vmatpush1.msra.mxu0 0.0
        %2874 = vmatprep.subr.mxu0 0.0
        %2875 = vmatpush1.msra.mxu0 0.0
        %2876 = vmatprep.subr.mxu0 0.0
        %2877 = vmatpush1.msra.mxu0 0.0
        %2878 = vmatprep.subr.mxu0 0.0
        %2879 = vmatpush1.msra.mxu0 0.0
        %2880 = vmatprep.subr.mxu0 0.0
        %2881 = vmatpush1.msra.mxu0 0.0
        %2882 = vmatprep.subr.mxu0 0.0
        %2883 = vmatpush1.msra.mxu0 0.0
        %2884 = vmatprep.subr.mxu0 0.0
        %2885 = vmatpush1.msra.mxu0 0.0
        %2886 = vmatprep.subr.mxu0 0.0
        %2887 = vmatpush1.msra.mxu0 0.0
        %2888 = vmatprep.subr.mxu0 0.0
        %2889 = vmatpush1.msra.mxu0 0.0
        %2890 = vmatprep.subr.mxu0 0.0
        %2891 = vmatpush1.msra.mxu0 0.0
        %2892 = vmatprep.subr.mxu0 0.0
        %2893 = vmatpush1.msra.mxu0 0.0
        %2894 = vmatprep.subr.mxu0 0.0
        %2895 = vmatpush1.msra.mxu0 0.0
        %2896 = vmatprep.subr.mxu0 0.0
        %2897 = vmatpush1.msra.mxu0 0.0
        %2898 = vmatprep.subr.mxu0 0.0
        %2899 = vmatpush1.msra.mxu0 0.0
        %2900 = vmatprep.subr.mxu0 0.0
        %2901 = vmatpush1.msra.mxu0 0.0
        %2902 = vmatprep.subr.mxu0 0.0
        %2903 = vmatpush1.msra.mxu0 0.0
        %2904 = vmatprep.subr.mxu0 0.0
        %2905 = vmatpush1.msra.mxu0 0.0
        %2906 = vmatprep.subr.mxu0 0.0
        %2907 = vmatpush1.msra.mxu0 0.0
        %2908 = vmatprep.subr.mxu0 0.0
        %2909 = vmatpush1.msra.mxu0 0.0
        %2910 = vmatprep.subr.mxu0 0.0
        %2911 = vmatpush1.msra.mxu0 0.0
        %2912 = vmatprep.subr.mxu0 0.0
        %2913 = vmatpush1.msra.mxu0 0.0
        %2914 = vmatprep.subr.mxu0 0.0
        %2915 = vmatpush1.msra.mxu0 0.0
        %2916 = vmatprep.subr.mxu0 0.0
        %2917 = vmatpush1.msra.mxu0 0.0
        %2918 = vmatprep.subr.mxu0 0.0
        %2919 = vmatpush1.msra.mxu0 0.0
        %2920 = vmatprep.subr.mxu0 0.0
        %2921 = vmatpush1.msra.mxu0 0.0
        %2922 = vmatprep.subr.mxu0 0.0
        %2923 = vmatpush1.msra.mxu0 0.0
        %2924 = vmatprep.subr.mxu0 0.0
        %2925 = vmatpush1.msra.mxu0 0.0
        %2926 = vmatprep.mubr.f32.mxu0 0.0
        %v2927 = vand.u32 %v2443, 4294901760
        %2928 = vmatmul.mubr.f32.gmra.mrb[0].mxu0 %v2927
        %v2929 = vpop.f32.mrb[0].mxu0
        %v2930 = vadd.f32 %v2829, %v2929
        %v2931 = vpop.f32.mrb[0].mxu0
        %2932 = vmatprep.mubr.f32.mxu0 0.0
        %v2933 = vand.u32 %v2446, 4294901760
        %2934 = vmatmul.mubr.f32.gmra.mrb[0].mxu0 %v2933
        %v2935 = vpop.f32.mrb[0].mxu0
        %v2936 = vadd.f32 %v2837, %v2935
        %v2937 = vpop.f32.mrb[0].mxu0
        %2938 = vmatprep.mubr.f32.mxu0 0.0
        %v2939 = vand.u32 %v2449, 4294901760
        %2940 = vmatmul.mubr.f32.gmra.mrb[0].mxu0 %v2939
        %v2941 = vpop.f32.mrb[0].mxu0
        %v2942 = vadd.f32 %v2845, %v2941
        %v2943 = vpop.f32.mrb[0].mxu0
        %2944 = vmatprep.mubr.f32.mxu0 0.0
        %v2945 = vand.u32 %v2452, 4294901760
        %2946 = vmatmul.mubr.f32.gmra.mrb[0].mxu0 %v2945
        %v2947 = vpop.f32.mrb[0].mxu0
        %v2948 = vadd.f32 %v2853, %v2947
        %v2949 = vpop.f32.mrb[0].mxu0
        %2950 = vdwg.mxu0
        %2951 = vmatprep.subr.mxu0 0.0
        %v2952 = vand.u32 %v2433, 4294901760
        %2953 = vmatpush1.msra.mxu0 %v2952
        %2954 = vmatprep.subr.mxu0 0.0
        %v2955 = vand.u32 %v2439, 4294901760
        %2956 = vmatpush1.msra.mxu0 %v2955
        %2957 = vmatprep.subr.mxu0 0.0
        %2958 = vmatpush1.msra.mxu0 0.0
        %2959 = vmatprep.subr.mxu0 0.0
        %2960 = vmatpush1.msra.mxu0 0.0
        %2961 = vmatprep.subr.mxu0 0.0
        %2962 = vmatpush1.msra.mxu0 0.0
        %2963 = vmatprep.subr.mxu0 0.0
        %2964 = vmatpush1.msra.mxu0 0.0
        %2965 = vmatprep.subr.mxu0 0.0
        %2966 = vmatpush1.msra.mxu0 0.0
        %2967 = vmatprep.subr.mxu0 0.0
        %2968 = vmatpush1.msra.mxu0 0.0
        %2969 = vmatprep.subr.mxu0 0.0
        %2970 = vmatpush1.msra.mxu0 0.0
        %2971 = vmatprep.subr.mxu0 0.0
        %2972 = vmatpush1.msra.mxu0 0.0
        %2973 = vmatprep.subr.mxu0 0.0
        %2974 = vmatpush1.msra.mxu0 0.0
        %2975 = vmatprep.subr.mxu0 0.0
        %2976 = vmatpush1.msra.mxu0 0.0
        %2977 = vmatprep.subr.mxu0 0.0
        %2978 = vmatpush1.msra.mxu0 0.0
        %2979 = vmatprep.subr.mxu0 0.0
        %2980 = vmatpush1.msra.mxu0 0.0
        %2981 = vmatprep.subr.mxu0 0.0
        %2982 = vmatpush1.msra.mxu0 0.0
        %2983 = vmatprep.subr.mxu0 0.0
        %2984 = vmatpush1.msra.mxu0 0.0
        %2985 = vmatprep.subr.mxu0 0.0
        %2986 = vmatpush1.msra.mxu0 0.0
        %2987 = vmatprep.subr.mxu0 0.0
        %2988 = vmatpush1.msra.mxu0 0.0
        %2989 = vmatprep.subr.mxu0 0.0
        %2990 = vmatpush1.msra.mxu0 0.0
        %2991 = vmatprep.subr.mxu0 0.0
        %2992 = vmatpush1.msra.mxu0 0.0
        %2993 = vmatprep.subr.mxu0 0.0
        %2994 = vmatpush1.msra.mxu0 0.0
        %2995 = vmatprep.subr.mxu0 0.0
        %2996 = vmatpush1.msra.mxu0 0.0
        %2997 = vmatprep.subr.mxu0 0.0
        %2998 = vmatpush1.msra.mxu0 0.0
        %2999 = vmatprep.subr.mxu0 0.0
        %3000 = vmatpush1.msra.mxu0 0.0
        %3001 = vmatprep.subr.mxu0 0.0
        %3002 = vmatpush1.msra.mxu0 0.0
        %3003 = vmatprep.subr.mxu0 0.0
        %3004 = vmatpush1.msra.mxu0 0.0
        %3005 = vmatprep.subr.mxu0 0.0
        %3006 = vmatpush1.msra.mxu0 0.0
        %3007 = vmatprep.subr.mxu0 0.0
        %3008 = vmatpush1.msra.mxu0 0.0
        %3009 = vmatprep.subr.mxu0 0.0
        %3010 = vmatpush1.msra.mxu0 0.0
        %3011 = vmatprep.subr.mxu0 0.0
        %3012 = vmatpush1.msra.mxu0 0.0
        %3013 = vmatprep.subr.mxu0 0.0
        %3014 = vmatpush1.msra.mxu0 0.0
        %3015 = vmatprep.subr.mxu0 0.0
        %3016 = vmatpush1.msra.mxu0 0.0
        %3017 = vmatprep.mubr.f32.mxu0 0.0
        %v3018 = vand.u32 %v2443, 4294901760
        %3019 = vmatmul.mubr.f32.gmra.mrb[0].mxu0 %v3018
        %v3020 = vpop.f32.mrb[0].mxu0
        %v3021 = vadd.f32 %v2930, %v3020
        %v3022 = vpop.f32.mrb[0].mxu0
        %3023 = vmatprep.mubr.f32.mxu0 0.0
        %v3024 = vand.u32 %v2446, 4294901760
        %3025 = vmatmul.mubr.f32.gmra.mrb[0].mxu0 %v3024
        %v3026 = vpop.f32.mrb[0].mxu0
        %v3027 = vadd.f32 %v2936, %v3026
        %v3028 = vpop.f32.mrb[0].mxu0
        %3029 = vmatprep.mubr.f32.mxu0 0.0
        %v3030 = vand.u32 %v2449, 4294901760
        %3031 = vmatmul.mubr.f32.gmra.mrb[0].mxu0 %v3030
        %v3032 = vpop.f32.mrb[0].mxu0
        %v3033 = vadd.f32 %v2942, %v3032
        %v3034 = vpop.f32.mrb[0].mxu0
        %3035 = vmatprep.mubr.f32.mxu0 0.0
        %v3036 = vand.u32 %v2452, 4294901760
        %3037 = vmatmul.mubr.f32.gmra.mrb[0].mxu0 %v3036
        %v3038 = vpop.f32.mrb[0].mxu0
        %v3039 = vadd.f32 %v2948, %v3038
        %v3040 = vpop.f32.mrb[0].mxu0
        %3041 = vdwg.mxu0
        %v3043 = vsel %vm409, %v401, 0
        %v3046 = vsel %vm409, %v402, 0
        %v3049 = vsel %vm409, %v403, 0
        %v3052 = vsel %vm409, %v404, 0
        %3054 = vmatprep.subr.mxu0 0.0
        %v3055 = vand.u32 %v1417, 4294901760
        %3056 = vmatpush1.msra.mxu0 %v3055
        %3057 = vmatprep.subr.mxu0 0.0
        %v3058 = vand.u32 %v1423, 4294901760
        %3059 = vmatpush1.msra.mxu0 %v3058
        %3060 = vmatprep.subr.mxu0 0.0
        %3061 = vmatpush1.msra.mxu0 0.0
        %3062 = vmatprep.subr.mxu0 0.0
        %3063 = vmatpush1.msra.mxu0 0.0
        %3064 = vmatprep.subr.mxu0 0.0
        %3065 = vmatpush1.msra.mxu0 0.0
        %3066 = vmatprep.subr.mxu0 0.0
        %3067 = vmatpush1.msra.mxu0 0.0
        %3068 = vmatprep.subr.mxu0 0.0
        %3069 = vmatpush1.msra.mxu0 0.0
        %3070 = vmatprep.subr.mxu0 0.0
        %3071 = vmatpush1.msra.mxu0 0.0
        %3072 = vmatprep.subr.mxu0 0.0
        %3073 = vmatpush1.msra.mxu0 0.0
        %3074 = vmatprep.subr.mxu0 0.0
        %3075 = vmatpush1.msra.mxu0 0.0
        %3076 = vmatprep.subr.mxu0 0.0
        %3077 = vmatpush1.msra.mxu0 0.0
        %3078 = vmatprep.subr.mxu0 0.0
        %3079 = vmatpush1.msra.mxu0 0.0
        %3080 = vmatprep.subr.mxu0 0.0
        %3081 = vmatpush1.msra.mxu0 0.0
        %3082 = vmatprep.subr.mxu0 0.0
        %3083 = vmatpush1.msra.mxu0 0.0
        %3084 = vmatprep.subr.mxu0 0.0
        %3085 = vmatpush1.msra.mxu0 0.0
        %3086 = vmatprep.subr.mxu0 0.0
        %3087 = vmatpush1.msra.mxu0 0.0
        %3088 = vmatprep.subr.mxu0 0.0
        %3089 = vmatpush1.msra.mxu0 0.0
        %3090 = vmatprep.subr.mxu0 0.0
        %3091 = vmatpush1.msra.mxu0 0.0
        %3092 = vmatprep.subr.mxu0 0.0
        %3093 = vmatpush1.msra.mxu0 0.0
        %3094 = vmatprep.subr.mxu0 0.0
        %3095 = vmatpush1.msra.mxu0 0.0
        %3096 = vmatprep.subr.mxu0 0.0
        %3097 = vmatpush1.msra.mxu0 0.0
        %3098 = vmatprep.subr.mxu0 0.0
        %3099 = vmatpush1.msra.mxu0 0.0
        %3100 = vmatprep.subr.mxu0 0.0
        %3101 = vmatpush1.msra.mxu0 0.0
        %3102 = vmatprep.subr.mxu0 0.0
        %3103 = vmatpush1.msra.mxu0 0.0
        %3104 = vmatprep.subr.mxu0 0.0
        %3105 = vmatpush1.msra.mxu0 0.0
        %3106 = vmatprep.subr.mxu0 0.0
        %3107 = vmatpush1.msra.mxu0 0.0
        %3108 = vmatprep.subr.mxu0 0.0
        %3109 = vmatpush1.msra.mxu0 0.0
        %3110 = vmatprep.subr.mxu0 0.0
        %3111 = vmatpush1.msra.mxu0 0.0
        %3112 = vmatprep.subr.mxu0 0.0
        %3113 = vmatpush1.msra.mxu0 0.0
        %3114 = vmatprep.subr.mxu0 0.0
        %3115 = vmatpush1.msra.mxu0 0.0
        %3116 = vmatprep.subr.mxu0 0.0
        %3117 = vmatpush1.msra.mxu0 0.0
        %3118 = vmatprep.subr.mxu0 0.0
        %3119 = vmatpush1.msra.mxu0 0.0
        %3120 = vmatprep.mubr.f32.mxu0 0.0
        %v3121 = vand.u32 %v3043, 4294901760
        %v3122 = vsub.f32 %v3043, %v3121
        %v3123 = vand.u32 %v3122, 4294901760
        %v3124 = vsub.f32 %v3122, %v3123
        %v3125 = vand.u32 %v3124, 4294901760
        %3126 = vmatmul.mubr.f32.gmra.mrb[0].mxu0 %v3125
        %v3127 = vpop.f32.mrb[0].mxu0
        %v3128 = vadd.f32 %v3021, %v3127
        %v3129 = vpop.f32.mrb[0].mxu0
        %3130 = vmatprep.mubr.f32.mxu0 0.0
        %v3131 = vand.u32 %v3046, 4294901760
        %v3132 = vsub.f32 %v3046, %v3131
        %v3133 = vand.u32 %v3132, 4294901760
        %v3134 = vsub.f32 %v3132, %v3133
        %v3135 = vand.u32 %v3134, 4294901760
        %3136 = vmatmul.mubr.f32.gmra.mrb[0].mxu0 %v3135
        %v3137 = vpop.f32.mrb[0].mxu0
        %v3138 = vadd.f32 %v3027, %v3137
        %v3139 = vpop.f32.mrb[0].mxu0
        %3140 = vmatprep.mubr.f32.mxu0 0.0
        %v3141 = vand.u32 %v3049, 4294901760
        %v3142 = vsub.f32 %v3049, %v3141
        %v3143 = vand.u32 %v3142, 4294901760
        %v3144 = vsub.f32 %v3142, %v3143
        %v3145 = vand.u32 %v3144, 4294901760
        %3146 = vmatmul.mubr.f32.gmra.mrb[0].mxu0 %v3145
        %v3147 = vpop.f32.mrb[0].mxu0
        %v3148 = vadd.f32 %v3033, %v3147
        %v3149 = vpop.f32.mrb[0].mxu0
        %3150 = vmatprep.mubr.f32.mxu0 0.0
        %v3151 = vand.u32 %v3052, 4294901760
        %v3152 = vsub.f32 %v3052, %v3151
        %v3153 = vand.u32 %v3152, 4294901760
        %v3154 = vsub.f32 %v3152, %v3153
        %v3155 = vand.u32 %v3154, 4294901760
        %3156 = vmatmul.mubr.f32.gmra.mrb[0].mxu0 %v3155
        %v3157 = vpop.f32.mrb[0].mxu0
        %v3158 = vadd.f32 %v3039, %v3157
        %v3159 = vpop.f32.mrb[0].mxu0
        %3160 = vdwg.mxu0
        %3161 = vmatprep.subr.mxu0 0.0
        %v3162 = vand.u32 %v1417, 4294901760
        %v3163 = vsub.f32 %v1417, %v3162
        %v3164 = vand.u32 %v3163, 4294901760
        %v3165 = vsub.f32 %v3163, %v3164
        %v3166 = vand.u32 %v3165, 4294901760
        %3167 = vmatpush1.msra.mxu0 %v3166
        %3168 = vmatprep.subr.mxu0 0.0
        %v3169 = vand.u32 %v1423, 4294901760
        %v3170 = vsub.f32 %v1423, %v3169
        %v3171 = vand.u32 %v3170, 4294901760
        %v3172 = vsub.f32 %v3170, %v3171
        %v3173 = vand.u32 %v3172, 4294901760
        %3174 = vmatpush1.msra.mxu0 %v3173
        %3175 = vmatprep.subr.mxu0 0.0
        %3176 = vmatpush1.msra.mxu0 0.0
        %3177 = vmatprep.subr.mxu0 0.0
        %3178 = vmatpush1.msra.mxu0 0.0
        %3179 = vmatprep.subr.mxu0 0.0
        %3180 = vmatpush1.msra.mxu0 0.0
        %3181 = vmatprep.subr.mxu0 0.0
        %3182 = vmatpush1.msra.mxu0 0.0
        %3183 = vmatprep.subr.mxu0 0.0
        %3184 = vmatpush1.msra.mxu0 0.0
        %3185 = vmatprep.subr.mxu0 0.0
        %3186 = vmatpush1.msra.mxu0 0.0
        %3187 = vmatprep.subr.mxu0 0.0
        %3188 = vmatpush1.msra.mxu0 0.0
        %3189 = vmatprep.subr.mxu0 0.0
        %3190 = vmatpush1.msra.mxu0 0.0
        %3191 = vmatprep.subr.mxu0 0.0
        %3192 = vmatpush1.msra.mxu0 0.0
        %3193 = vmatprep.subr.mxu0 0.0
        %3194 = vmatpush1.msra.mxu0 0.0
        %3195 = vmatprep.subr.mxu0 0.0
        %3196 = vmatpush1.msra.mxu0 0.0
        %3197 = vmatprep.subr.mxu0 0.0
        %3198 = vmatpush1.msra.mxu0 0.0
        %3199 = vmatprep.subr.mxu0 0.0
        %3200 = vmatpush1.msra.mxu0 0.0
        %3201 = vmatprep.subr.mxu0 0.0
        %3202 = vmatpush1.msra.mxu0 0.0
        %3203 = vmatprep.subr.mxu0 0.0
        %3204 = vmatpush1.msra.mxu0 0.0
        %3205 = vmatprep.subr.mxu0 0.0
        %3206 = vmatpush1.msra.mxu0 0.0
        %3207 = vmatprep.subr.mxu0 0.0
        %3208 = vmatpush1.msra.mxu0 0.0
        %3209 = vmatprep.subr.mxu0 0.0
        %3210 = vmatpush1.msra.mxu0 0.0
        %3211 = vmatprep.subr.mxu0 0.0
        %3212 = vmatpush1.msra.mxu0 0.0
        %3213 = vmatprep.subr.mxu0 0.0
        %3214 = vmatpush1.msra.mxu0 0.0
        %3215 = vmatprep.subr.mxu0 0.0
        %3216 = vmatpush1.msra.mxu0 0.0
        %3217 = vmatprep.subr.mxu0 0.0
        %3218 = vmatpush1.msra.mxu0 0.0
        %3219 = vmatprep.subr.mxu0 0.0
        %3220 = vmatpush1.msra.mxu0 0.0
        %3221 = vmatprep.subr.mxu0 0.0
        %3222 = vmatpush1.msra.mxu0 0.0
        %3223 = vmatprep.subr.mxu0 0.0
        %3224 = vmatpush1.msra.mxu0 0.0
        %3225 = vmatprep.subr.mxu0 0.0
        %3226 = vmatpush1.msra.mxu0 0.0
        %3227 = vmatprep.subr.mxu0 0.0
        %3228 = vmatpush1.msra.mxu0 0.0
        %3229 = vmatprep.subr.mxu0 0.0
        %3230 = vmatpush1.msra.mxu0 0.0
        %3231 = vmatprep.subr.mxu0 0.0
        %3232 = vmatpush1.msra.mxu0 0.0
        %3233 = vmatprep.subr.mxu0 0.0
        %3234 = vmatpush1.msra.mxu0 0.0
        %3235 = vmatprep.mubr.f32.mxu0 0.0
        %v3236 = vand.u32 %v3043, 4294901760
        %3237 = vmatmul.mubr.f32.gmra.mrb[0].mxu0 %v3236
        %v3238 = vpop.f32.mrb[0].mxu0
        %v3239 = vadd.f32 %v3128, %v3238
        %v3240 = vpop.f32.mrb[0].mxu0
        %3241 = vmatprep.mubr.f32.mxu0 0.0
        %v3242 = vand.u32 %v3046, 4294901760
        %3243 = vmatmul.mubr.f32.gmra.mrb[0].mxu0 %v3242
        %v3244 = vpop.f32.mrb[0].mxu0
        %v3245 = vadd.f32 %v3138, %v3244
        %v3246 = vpop.f32.mrb[0].mxu0
        %3247 = vmatprep.mubr.f32.mxu0 0.0
        %v3248 = vand.u32 %v3049, 4294901760
        %3249 = vmatmul.mubr.f32.gmra.mrb[0].mxu0 %v3248
        %v3250 = vpop.f32.mrb[0].mxu0
        %v3251 = vadd.f32 %v3148, %v3250
        %v3252 = vpop.f32.mrb[0].mxu0
        %3253 = vmatprep.mubr.f32.mxu0 0.0
        %v3254 = vand.u32 %v3052, 4294901760
        %3255 = vmatmul.mubr.f32.gmra.mrb[0].mxu0 %v3254
        %v3256 = vpop.f32.mrb[0].mxu0
        %v3257 = vadd.f32 %v3158, %v3256
        %v3258 = vpop.f32.mrb[0].mxu0
        %3259 = vdwg.mxu0
        %3260 = vmatprep.subr.mxu0 0.0
        %v3261 = vand.u32 %v1417, 4294901760
        %v3262 = vsub.f32 %v1417, %v3261
        %3263 = vmatpush1.msra.mxu0 %v3262
        %3264 = vmatprep.subr.mxu0 0.0
        %v3265 = vand.u32 %v1423, 4294901760
        %v3266 = vsub.f32 %v1423, %v3265
        %3267 = vmatpush1.msra.mxu0 %v3266
        %3268 = vmatprep.subr.mxu0 0.0
        %3269 = vmatpush1.msra.mxu0 0.0
        %3270 = vmatprep.subr.mxu0 0.0
        %3271 = vmatpush1.msra.mxu0 0.0
        %3272 = vmatprep.subr.mxu0 0.0
        %3273 = vmatpush1.msra.mxu0 0.0
        %3274 = vmatprep.subr.mxu0 0.0
        %3275 = vmatpush1.msra.mxu0 0.0
        %3276 = vmatprep.subr.mxu0 0.0
        %3277 = vmatpush1.msra.mxu0 0.0
        %3278 = vmatprep.subr.mxu0 0.0
        %3279 = vmatpush1.msra.mxu0 0.0
        %3280 = vmatprep.subr.mxu0 0.0
        %3281 = vmatpush1.msra.mxu0 0.0
        %3282 = vmatprep.subr.mxu0 0.0
        %3283 = vmatpush1.msra.mxu0 0.0
        %3284 = vmatprep.subr.mxu0 0.0
        %3285 = vmatpush1.msra.mxu0 0.0
        %3286 = vmatprep.subr.mxu0 0.0
        %3287 = vmatpush1.msra.mxu0 0.0
        %3288 = vmatprep.subr.mxu0 0.0
        %3289 = vmatpush1.msra.mxu0 0.0
        %3290 = vmatprep.subr.mxu0 0.0
        %3291 = vmatpush1.msra.mxu0 0.0
        %3292 = vmatprep.subr.mxu0 0.0
        %3293 = vmatpush1.msra.mxu0 0.0
        %3294 = vmatprep.subr.mxu0 0.0
        %3295 = vmatpush1.msra.mxu0 0.0
        %3296 = vmatprep.subr.mxu0 0.0
        %3297 = vmatpush1.msra.mxu0 0.0
        %3298 = vmatprep.subr.mxu0 0.0
        %3299 = vmatpush1.msra.mxu0 0.0
        %3300 = vmatprep.subr.mxu0 0.0
        %3301 = vmatpush1.msra.mxu0 0.0
        %3302 = vmatprep.subr.mxu0 0.0
        %3303 = vmatpush1.msra.mxu0 0.0
        %3304 = vmatprep.subr.mxu0 0.0
        %3305 = vmatpush1.msra.mxu0 0.0
        %3306 = vmatprep.subr.mxu0 0.0
        %3307 = vmatpush1.msra.mxu0 0.0
        %3308 = vmatprep.subr.mxu0 0.0
        %3309 = vmatpush1.msra.mxu0 0.0
        %3310 = vmatprep.subr.mxu0 0.0
        %3311 = vmatpush1.msra.mxu0 0.0
        %3312 = vmatprep.subr.mxu0 0.0
        %3313 = vmatpush1.msra.mxu0 0.0
        %3314 = vmatprep.subr.mxu0 0.0
        %3315 = vmatpush1.msra.mxu0 0.0
        %3316 = vmatprep.subr.mxu0 0.0
        %3317 = vmatpush1.msra.mxu0 0.0
        %3318 = vmatprep.subr.mxu0 0.0
        %3319 = vmatpush1.msra.mxu0 0.0
        %3320 = vmatprep.subr.mxu0 0.0
        %3321 = vmatpush1.msra.mxu0 0.0
        %3322 = vmatprep.subr.mxu0 0.0
        %3323 = vmatpush1.msra.mxu0 0.0
        %3324 = vmatprep.subr.mxu0 0.0
        %3325 = vmatpush1.msra.mxu0 0.0
        %3326 = vmatprep.subr.mxu0 0.0
        %3327 = vmatpush1.msra.mxu0 0.0
        %3328 = vmatprep.mubr.f32.mxu0 0.0
        %v3329 = vand.u32 %v3043, 4294901760
        %v3330 = vsub.f32 %v3043, %v3329
        %3331 = vmatmul.mubr.f32.gmra.mrb[0].mxu0 %v3330
        %v3332 = vpop.f32.mrb[0].mxu0
        %v3333 = vadd.f32 %v3239, %v3332
        %v3334 = vpop.f32.mrb[0].mxu0
        %3335 = vmatprep.mubr.f32.mxu0 0.0
        %v3336 = vand.u32 %v3046, 4294901760
        %v3337 = vsub.f32 %v3046, %v3336
        %3338 = vmatmul.mubr.f32.gmra.mrb[0].mxu0 %v3337
        %v3339 = vpop.f32.mrb[0].mxu0
        %v3340 = vadd.f32 %v3245, %v3339
        %v3341 = vpop.f32.mrb[0].mxu0
        %3342 = vmatprep.mubr.f32.mxu0 0.0
        %v3343 = vand.u32 %v3049, 4294901760
        %v3344 = vsub.f32 %v3049, %v3343
        %3345 = vmatmul.mubr.f32.gmra.mrb[0].mxu0 %v3344
        %v3346 = vpop.f32.mrb[0].mxu0
        %v3347 = vadd.f32 %v3251, %v3346
        %v3348 = vpop.f32.mrb[0].mxu0
        %3349 = vmatprep.mubr.f32.mxu0 0.0
        %v3350 = vand.u32 %v3052, 4294901760
        %v3351 = vsub.f32 %v3052, %v3350
        %3352 = vmatmul.mubr.f32.gmra.mrb[0].mxu0 %v3351
        %v3353 = vpop.f32.mrb[0].mxu0
        %v3354 = vadd.f32 %v3257, %v3353
        %v3355 = vpop.f32.mrb[0].mxu0
        %3356 = vdwg.mxu0
        %3357 = vmatprep.subr.mxu0 0.0
        %v3358 = vand.u32 %v1417, 4294901760
        %3359 = vmatpush1.msra.mxu0 %v3358
        %3360 = vmatprep.subr.mxu0 0.0
        %v3361 = vand.u32 %v1423, 4294901760
        %3362 = vmatpush1.msra.mxu0 %v3361
        %3363 = vmatprep.subr.mxu0 0.0
        %3364 = vmatpush1.msra.mxu0 0.0
        %3365 = vmatprep.subr.mxu0 0.0
        %3366 = vmatpush1.msra.mxu0 0.0
        %3367 = vmatprep.subr.mxu0 0.0
        %3368 = vmatpush1.msra.mxu0 0.0
        %3369 = vmatprep.subr.mxu0 0.0
        %3370 = vmatpush1.msra.mxu0 0.0
        %3371 = vmatprep.subr.mxu0 0.0
        %3372 = vmatpush1.msra.mxu0 0.0
        %3373 = vmatprep.subr.mxu0 0.0
        %3374 = vmatpush1.msra.mxu0 0.0
        %3375 = vmatprep.subr.mxu0 0.0
        %3376 = vmatpush1.msra.mxu0 0.0
        %3377 = vmatprep.subr.mxu0 0.0
        %3378 = vmatpush1.msra.mxu0 0.0
        %3379 = vmatprep.subr.mxu0 0.0
        %3380 = vmatpush1.msra.mxu0 0.0
        %3381 = vmatprep.subr.mxu0 0.0
        %3382 = vmatpush1.msra.mxu0 0.0
        %3383 = vmatprep.subr.mxu0 0.0
        %3384 = vmatpush1.msra.mxu0 0.0
        %3385 = vmatprep.subr.mxu0 0.0
        %3386 = vmatpush1.msra.mxu0 0.0
        %3387 = vmatprep.subr.mxu0 0.0
        %3388 = vmatpush1.msra.mxu0 0.0
        %3389 = vmatprep.subr.mxu0 0.0
        %3390 = vmatpush1.msra.mxu0 0.0
        %3391 = vmatprep.subr.mxu0 0.0
        %3392 = vmatpush1.msra.mxu0 0.0
        %3393 = vmatprep.subr.mxu0 0.0
        %3394 = vmatpush1.msra.mxu0 0.0
        %3395 = vmatprep.subr.mxu0 0.0
        %3396 = vmatpush1.msra.mxu0 0.0
        %3397 = vmatprep.subr.mxu0 0.0
        %3398 = vmatpush1.msra.mxu0 0.0
        %3399 = vmatprep.subr.mxu0 0.0
        %3400 = vmatpush1.msra.mxu0 0.0
        %3401 = vmatprep.subr.mxu0 0.0
        %3402 = vmatpush1.msra.mxu0 0.0
        %3403 = vmatprep.subr.mxu0 0.0
        %3404 = vmatpush1.msra.mxu0 0.0
        %3405 = vmatprep.subr.mxu0 0.0
        %3406 = vmatpush1.msra.mxu0 0.0
        %3407 = vmatprep.subr.mxu0 0.0
        %3408 = vmatpush1.msra.mxu0 0.0
        %3409 = vmatprep.subr.mxu0 0.0
        %3410 = vmatpush1.msra.mxu0 0.0
        %3411 = vmatprep.subr.mxu0 0.0
        %3412 = vmatpush1.msra.mxu0 0.0
        %3413 = vmatprep.subr.mxu0 0.0
        %3414 = vmatpush1.msra.mxu0 0.0
        %3415 = vmatprep.subr.mxu0 0.0
        %3416 = vmatpush1.msra.mxu0 0.0
        %3417 = vmatprep.subr.mxu0 0.0
        %3418 = vmatpush1.msra.mxu0 0.0
        %3419 = vmatprep.subr.mxu0 0.0
        %3420 = vmatpush1.msra.mxu0 0.0
        %3421 = vmatprep.subr.mxu0 0.0
        %3422 = vmatpush1.msra.mxu0 0.0
        %3423 = vmatprep.mubr.f32.mxu0 0.0
        %v3424 = vand.u32 %v3043, 4294901760
        %v3425 = vsub.f32 %v3043, %v3424
        %v3426 = vand.u32 %v3425, 4294901760
        %3427 = vmatmul.mubr.f32.gmra.mrb[0].mxu0 %v3426
        %v3428 = vpop.f32.mrb[0].mxu0
        %v3429 = vadd.f32 %v3333, %v3428
        %v3430 = vpop.f32.mrb[0].mxu0
        %3431 = vmatprep.mubr.f32.mxu0 0.0
        %v3432 = vand.u32 %v3046, 4294901760
        %v3433 = vsub.f32 %v3046, %v3432
        %v3434 = vand.u32 %v3433, 4294901760
        %3435 = vmatmul.mubr.f32.gmra.mrb[0].mxu0 %v3434
        %v3436 = vpop.f32.mrb[0].mxu0
        %v3437 = vadd.f32 %v3340, %v3436
        %v3438 = vpop.f32.mrb[0].mxu0
        %3439 = vmatprep.mubr.f32.mxu0 0.0
        %v3440 = vand.u32 %v3049, 4294901760
        %v3441 = vsub.f32 %v3049, %v3440
        %v3442 = vand.u32 %v3441, 4294901760
        %3443 = vmatmul.mubr.f32.gmra.mrb[0].mxu0 %v3442
        %v3444 = vpop.f32.mrb[0].mxu0
        %v3445 = vadd.f32 %v3347, %v3444
        %v3446 = vpop.f32.mrb[0].mxu0
        %3447 = vmatprep.mubr.f32.mxu0 0.0
        %v3448 = vand.u32 %v3052, 4294901760
        %v3449 = vsub.f32 %v3052, %v3448
        %v3450 = vand.u32 %v3449, 4294901760
        %3451 = vmatmul.mubr.f32.gmra.mrb[0].mxu0 %v3450
        %v3452 = vpop.f32.mrb[0].mxu0
        %v3453 = vadd.f32 %v3354, %v3452
        %v3454 = vpop.f32.mrb[0].mxu0
        %3455 = vdwg.mxu0
        %3456 = vmatprep.subr.mxu0 0.0
        %v3457 = vand.u32 %v1417, 4294901760
        %v3458 = vsub.f32 %v1417, %v3457
        %v3459 = vand.u32 %v3458, 4294901760
        %3460 = vmatpush1.msra.mxu0 %v3459
        %3461 = vmatprep.subr.mxu0 0.0
        %v3462 = vand.u32 %v1423, 4294901760
        %v3463 = vsub.f32 %v1423, %v3462
        %v3464 = vand.u32 %v3463, 4294901760
        %3465 = vmatpush1.msra.mxu0 %v3464
        %3466 = vmatprep.subr.mxu0 0.0
        %3467 = vmatpush1.msra.mxu0 0.0
        %3468 = vmatprep.subr.mxu0 0.0
        %3469 = vmatpush1.msra.mxu0 0.0
        %3470 = vmatprep.subr.mxu0 0.0
        %3471 = vmatpush1.msra.mxu0 0.0
        %3472 = vmatprep.subr.mxu0 0.0
        %3473 = vmatpush1.msra.mxu0 0.0
        %3474 = vmatprep.subr.mxu0 0.0
        %3475 = vmatpush1.msra.mxu0 0.0
        %3476 = vmatprep.subr.mxu0 0.0
        %3477 = vmatpush1.msra.mxu0 0.0
        %3478 = vmatprep.subr.mxu0 0.0
        %3479 = vmatpush1.msra.mxu0 0.0
        %3480 = vmatprep.subr.mxu0 0.0
        %3481 = vmatpush1.msra.mxu0 0.0
        %3482 = vmatprep.subr.mxu0 0.0
        %3483 = vmatpush1.msra.mxu0 0.0
        %3484 = vmatprep.subr.mxu0 0.0
        %3485 = vmatpush1.msra.mxu0 0.0
        %3486 = vmatprep.subr.mxu0 0.0
        %3487 = vmatpush1.msra.mxu0 0.0
        %3488 = vmatprep.subr.mxu0 0.0
        %3489 = vmatpush1.msra.mxu0 0.0
        %3490 = vmatprep.subr.mxu0 0.0
        %3491 = vmatpush1.msra.mxu0 0.0
        %3492 = vmatprep.subr.mxu0 0.0
        %3493 = vmatpush1.msra.mxu0 0.0
        %3494 = vmatprep.subr.mxu0 0.0
        %3495 = vmatpush1.msra.mxu0 0.0
        %3496 = vmatprep.subr.mxu0 0.0
        %3497 = vmatpush1.msra.mxu0 0.0
        %3498 = vmatprep.subr.mxu0 0.0
        %3499 = vmatpush1.msra.mxu0 0.0
        %3500 = vmatprep.subr.mxu0 0.0
        %3501 = vmatpush1.msra.mxu0 0.0
        %3502 = vmatprep.subr.mxu0 0.0
        %3503 = vmatpush1.msra.mxu0 0.0
        %3504 = vmatprep.subr.mxu0 0.0
        %3505 = vmatpush1.msra.mxu0 0.0
        %3506 = vmatprep.subr.mxu0 0.0
        %3507 = vmatpush1.msra.mxu0 0.0
        %3508 = vmatprep.subr.mxu0 0.0
        %3509 = vmatpush1.msra.mxu0 0.0
        %3510 = vmatprep.subr.mxu0 0.0
        %3511 = vmatpush1.msra.mxu0 0.0
        %3512 = vmatprep.subr.mxu0 0.0
        %3513 = vmatpush1.msra.mxu0 0.0
        %3514 = vmatprep.subr.mxu0 0.0
        %3515 = vmatpush1.msra.mxu0 0.0
        %3516 = vmatprep.subr.mxu0 0.0
        %3517 = vmatpush1.msra.mxu0 0.0
        %3518 = vmatprep.subr.mxu0 0.0
        %3519 = vmatpush1.msra.mxu0 0.0
        %3520 = vmatprep.subr.mxu0 0.0
        %3521 = vmatpush1.msra.mxu0 0.0
        %3522 = vmatprep.subr.mxu0 0.0
        %3523 = vmatpush1.msra.mxu0 0.0
        %3524 = vmatprep.subr.mxu0 0.0
        %3525 = vmatpush1.msra.mxu0 0.0
        %3526 = vmatprep.mubr.f32.mxu0 0.0
        %v3527 = vand.u32 %v3043, 4294901760
        %3528 = vmatmul.mubr.f32.gmra.mrb[0].mxu0 %v3527
        %v3529 = vpop.f32.mrb[0].mxu0
        %v3530 = vadd.f32 %v3429, %v3529
        %v3531 = vpop.f32.mrb[0].mxu0
        %3532 = vmatprep.mubr.f32.mxu0 0.0
        %v3533 = vand.u32 %v3046, 4294901760
        %3534 = vmatmul.mubr.f32.gmra.mrb[0].mxu0 %v3533
        %v3535 = vpop.f32.mrb[0].mxu0
        %v3536 = vadd.f32 %v3437, %v3535
        %v3537 = vpop.f32.mrb[0].mxu0
        %3538 = vmatprep.mubr.f32.mxu0 0.0
        %v3539 = vand.u32 %v3049, 4294901760
        %3540 = vmatmul.mubr.f32.gmra.mrb[0].mxu0 %v3539
        %v3541 = vpop.f32.mrb[0].mxu0
        %v3542 = vadd.f32 %v3445, %v3541
        %v3543 = vpop.f32.mrb[0].mxu0
        %3544 = vmatprep.mubr.f32.mxu0 0.0
        %v3545 = vand.u32 %v3052, 4294901760
        %3546 = vmatmul.mubr.f32.gmra.mrb[0].mxu0 %v3545
        %v3547 = vpop.f32.mrb[0].mxu0
        %v3548 = vadd.f32 %v3453, %v3547
        %v3549 = vpop.f32.mrb[0].mxu0
        %3550 = vdwg.mxu0
        %3551 = vmatprep.subr.mxu0 0.0
        %v3552 = vand.u32 %v1417, 4294901760
        %3553 = vmatpush1.msra.mxu0 %v3552
        %3554 = vmatprep.subr.mxu0 0.0
        %v3555 = vand.u32 %v1423, 4294901760
        %3556 = vmatpush1.msra.mxu0 %v3555
        %3557 = vmatprep.subr.mxu0 0.0
        %3558 = vmatpush1.msra.mxu0 0.0
        %3559 = vmatprep.subr.mxu0 0.0
        %3560 = vmatpush1.msra.mxu0 0.0
        %3561 = vmatprep.subr.mxu0 0.0
        %3562 = vmatpush1.msra.mxu0 0.0
        %3563 = vmatprep.subr.mxu0 0.0
        %3564 = vmatpush1.msra.mxu0 0.0
        %3565 = vmatprep.subr.mxu0 0.0
        %3566 = vmatpush1.msra.mxu0 0.0
        %3567 = vmatprep.subr.mxu0 0.0
        %3568 = vmatpush1.msra.mxu0 0.0
        %3569 = vmatprep.subr.mxu0 0.0
        %3570 = vmatpush1.msra.mxu0 0.0
        %3571 = vmatprep.subr.mxu0 0.0
        %3572 = vmatpush1.msra.mxu0 0.0
        %3573 = vmatprep.subr.mxu0 0.0
        %3574 = vmatpush1.msra.mxu0 0.0
        %3575 = vmatprep.subr.mxu0 0.0
        %3576 = vmatpush1.msra.mxu0 0.0
        %3577 = vmatprep.subr.mxu0 0.0
        %3578 = vmatpush1.msra.mxu0 0.0
        %3579 = vmatprep.subr.mxu0 0.0
        %3580 = vmatpush1.msra.mxu0 0.0
        %3581 = vmatprep.subr.mxu0 0.0
        %3582 = vmatpush1.msra.mxu0 0.0
        %3583 = vmatprep.subr.mxu0 0.0
        %3584 = vmatpush1.msra.mxu0 0.0
        %3585 = vmatprep.subr.mxu0 0.0
        %3586 = vmatpush1.msra.mxu0 0.0
        %3587 = vmatprep.subr.mxu0 0.0
        %3588 = vmatpush1.msra.mxu0 0.0
        %3589 = vmatprep.subr.mxu0 0.0
        %3590 = vmatpush1.msra.mxu0 0.0
        %3591 = vmatprep.subr.mxu0 0.0
        %3592 = vmatpush1.msra.mxu0 0.0
        %3593 = vmatprep.subr.mxu0 0.0
        %3594 = vmatpush1.msra.mxu0 0.0
        %3595 = vmatprep.subr.mxu0 0.0
        %3596 = vmatpush1.msra.mxu0 0.0
        %3597 = vmatprep.subr.mxu0 0.0
        %3598 = vmatpush1.msra.mxu0 0.0
        %3599 = vmatprep.subr.mxu0 0.0
        %3600 = vmatpush1.msra.mxu0 0.0
        %3601 = vmatprep.subr.mxu0 0.0
        %3602 = vmatpush1.msra.mxu0 0.0
        %3603 = vmatprep.subr.mxu0 0.0
        %3604 = vmatpush1.msra.mxu0 0.0
        %3605 = vmatprep.subr.mxu0 0.0
        %3606 = vmatpush1.msra.mxu0 0.0
        %3607 = vmatprep.subr.mxu0 0.0
        %3608 = vmatpush1.msra.mxu0 0.0
        %3609 = vmatprep.subr.mxu0 0.0
        %3610 = vmatpush1.msra.mxu0 0.0
        %3611 = vmatprep.subr.mxu0 0.0
        %3612 = vmatpush1.msra.mxu0 0.0
        %3613 = vmatprep.subr.mxu0 0.0
        %3614 = vmatpush1.msra.mxu0 0.0
        %3615 = vmatprep.subr.mxu0 0.0
        %3616 = vmatpush1.msra.mxu0 0.0
        %3617 = vmatprep.mubr.f32.mxu0 0.0
        %v3618 = vand.u32 %v3043, 4294901760
        %3619 = vmatmul.mubr.f32.gmra.mrb[0].mxu0 %v3618
        %v3620 = vpop.f32.mrb[0].mxu0
        %v3621 = vadd.f32 %v3530, %v3620
        %v3622 = vpop.f32.mrb[0].mxu0
        %3623 = vmatprep.mubr.f32.mxu0 0.0
        %v3624 = vand.u32 %v3046, 4294901760
        %3625 = vmatmul.mubr.f32.gmra.mrb[0].mxu0 %v3624
        %v3626 = vpop.f32.mrb[0].mxu0
        %v3627 = vadd.f32 %v3536, %v3626
        %v3628 = vpop.f32.mrb[0].mxu0
        %3629 = vmatprep.mubr.f32.mxu0 0.0
        %v3630 = vand.u32 %v3049, 4294901760
        %3631 = vmatmul.mubr.f32.gmra.mrb[0].mxu0 %v3630
        %v3632 = vpop.f32.mrb[0].mxu0
        %v3633 = vadd.f32 %v3542, %v3632
        %v3634 = vpop.f32.mrb[0].mxu0
        %3635 = vmatprep.mubr.f32.mxu0 0.0
        %v3636 = vand.u32 %v3052, 4294901760
        %3637 = vmatmul.mubr.f32.gmra.mrb[0].mxu0 %v3636
        %v3638 = vpop.f32.mrb[0].mxu0
        %v3639 = vadd.f32 %v3548, %v3638
        %v3640 = vpop.f32.mrb[0].mxu0
        %3641 = vdwg.mxu0
        %vm3642 = vcmask 261120
        %3643 = vst.msk [vmem:[%s369] sm:$0xff] %vm3642, %v3621
        %3644 = vst.msk [vmem:[%s369 + $0x8] sm:$0xff] %vm3642, %v3627
        %3645 = vst.msk [vmem:[%s369 + $0x10] sm:$0xff] %vm3642, %v3633
        %3646 = vst.msk [vmem:[%s369 + $0x18] sm:$0xff] %vm3642, %v3639
        %s3647 = smul.u32 4, %s22
        %p3648 = scmp.lt.s32.totalorder %s21, 1
        %s3649 = scalar_select %p3648, %s21, 1
        %p3650 = scmp.lt.s32.totalorder %s3647, 15
        %s3651 = scalar_select %p3650, %s3647, 15
        %s3652 = smul.addr %s3649, 16
        %s3653 = sadd.s32 %s3651, %s3652
        %s3654 = smul.addr %s3653, 8
        %s3655 = scalar_lea.vmem %s6, %s3654
        // Predicated region
        $region83: #{tpu_custom_call.1} parent=77 // pred_check
          %p3656 = pneg %p189
        $region84: #{tpu_custom_call.1} parent=77 // pred_check_branch
          %3658 = sbr.rel (%p3656) target = $region86
        $region85: #{tpu_custom_call.1} parent=77 // pred_region
          %s3659 = smul.u32 4, %s22
        $region86: #{tpu_custom_call.1} parent=77 // pred_fallthru
          _
      $region78: #{tpu_custom_call.1} parent=5 // pred_fallthru
        _
      %p3660 = scmp.le.s32.totalorder 2, %s12
      // Predicated region
      $region87: #{tpu_custom_call.1} parent=5 // pred_check
        %p3661 = pneg %p3660
      $region88: #{tpu_custom_call.1} parent=5 // pred_check_branch
        %3663 = sbr.rel (%p3661) target = $region90
      $region89: #{tpu_custom_call.1} parent=5 // pred_region
        %s3664 = ssub.s32 %s12, 2
        // Predicated region
        $region91: #{tpu_custom_call.1} parent=89 // pred_check
          %p3665 = pneg %p195
        $region92: #{tpu_custom_call.1} parent=89 // pred_check_branch
          %3667 = sbr.rel (%p3665) target = $region94
        $region93: #{tpu_custom_call.1} parent=89 // pred_region
          %s3668 = smul.u32 4, %s24
          %p3669 = scmp.lt.s32.totalorder %s23, 1
          %s3670 = scalar_select %p3669, %s23, 1
          %p3671 = scmp.lt.s32.totalorder %s3668, 15
          %s3672 = scalar_select %p3671, %s3668, 15
          %s3673 = smul.addr %s3670, 16
          %s3674 = sadd.s32 %s3672, %s3673
          %s3675 = smul.addr %s3674, 8
          %s3676 = scalar_lea.vmem %s6, %s3675
        $region94: #{tpu_custom_call.1} parent=89 // pred_fallthru
          _
      $region90: #{tpu_custom_call.1} parent=5 // pred_fallthru
        _
    $region6: #{tpu_custom_call.1} parent=1 // loop_footer
      %s16 = sadd.s32 1, %s12
    $region7: #{tpu_custom_call.1} parent=1 // loop_footer_branch
      %11 = sbr.rel target = $region3
    $region8: #{tpu_custom_call.1} parent=1 // loop_exit
      _

</llo_original>
